<compile_context>
chip_gen: v7x
topology: tpu7x:2x2x1
jax: 0.10.0
libtpu: 0.0.40
codegen_flags: <defaults>
</compile_context>

<pallas_src>
import functools

import jax
import jax.numpy as jnp
from jax import lax
from jax.experimental import pallas as pl
from jax.experimental.pallas import tpu as pltpu


def _round_up(x, m):
    return ((x + m - 1) // m) * m


# ----------------------------------------------------------------------------
# Small capability / budgeting helpers.
# ----------------------------------------------------------------------------
@functools.lru_cache(maxsize=None)
def _buffered_supported():
    """Probe whether BlockSpec(pipeline_mode=pl.Buffered(1)) works on this jax.

    Single-buffering resident weights halves their VMEM footprint; fall back
    silently to default double buffering if unsupported.
    """
    try:
        def k(x_ref, o_ref):
            o_ref[...] = x_ref[...] * 2.0

        spec = pl.BlockSpec((8, 128), lambda i: (0, 0), pipeline_mode=pl.Buffered(1))
        out = pl.pallas_call(
            k,
            out_shape=jax.ShapeDtypeStruct((8, 128), jnp.float32),
            grid=(2,),
            in_specs=[spec],
            out_specs=pl.BlockSpec((8, 128), lambda i: (0, 0)),
        )(jnp.ones((8, 128), jnp.float32))
        return bool(jnp.allclose(jax.block_until_ready(out), 2.0))
    except Exception:
        return False


def _const_spec(block_shape):
    """BlockSpec for an operand that is identical at every grid step (weights)."""
    rank = len(block_shape)
    index_map = lambda *_args, _r=rank: (0,) * _r
    if _buffered_supported():
        return pl.BlockSpec(block_shape, index_map, pipeline_mode=pl.Buffered(1))
    return pl.BlockSpec(block_shape, index_map)


@functools.lru_cache(maxsize=None)
def _vmem_cap_bytes():
    # Leave ~25% headroom below physical per-core VMEM (v7x only has 64 MiB);
    # conservative 48 MiB fallback if the query is unavailable.
    try:
        return int(pltpu.get_tpu_info().vmem_capacity_bytes * 3 // 4)
    except Exception:
        return 48 << 20


def _compiler_params(resident_bytes, tile_bytes, scratch_bytes=0):
    copies = 1 if _buffered_supported() else 2       # weight (single|double) buffering
    est = copies * resident_bytes + 4 * tile_bytes + scratch_bytes + (8 << 20)
    vmem = int(min(_vmem_cap_bytes(), max(32 << 20, est)))
    return pltpu.CompilerParams(
        dimension_semantics=("parallel",),
        vmem_limit_bytes=vmem,
    )


def _row_tiling(m, tm_max=256, min_tiles=2):
    """Balanced row tiles: >=2 grid steps (both v7x TCs busy), minimal padding."""
    nt = max(min_tiles, pl.cdiv(m, tm_max))
    tm = _round_up(pl.cdiv(m, nt), 8)
    nt = max(min_tiles, pl.cdiv(m, tm))
    return tm, nt * tm, nt


# ----------------------------------------------------------------------------
# Patch embedding: Linear (x @ W + b), row tiled; output lane-padded to 128.
# ----------------------------------------------------------------------------
def _linear_kernel(x_ref, w_ref, b_ref, o_ref, *, compute_dtype):
    x = x_ref[...].astype(compute_dtype)                       # MXU operand dtype
    y = jnp.dot(x, w_ref[...], preferred_element_type=jnp.float32)
    y = y + b_ref[...].astype(jnp.float32)
    o_ref[...] = y.astype(o_ref.dtype)


def linear_pallas(x2d, w, b, *, compute_dtype, tm_max=256):
    m, din = x2d.shape
    dout = w.shape[1]
    tm, mp, nt = _row_tiling(m, tm_max)
    if mp != m:
        x2d = jnp.pad(x2d, ((0, mp - m), (0, 0)))
    w_bytes = (din * dout + dout) * jnp.dtype(compute_dtype).itemsize
    cost = pl.CostEstimate(
        flops=int(2 * mp * din * dout),
        transcendentals=0,
        bytes_accessed=int((mp * din + mp * dout) * 4 + w_bytes),
    )
    out = pl.pallas_call(
        functools.partial(_linear_kernel, compute_dtype=compute_dtype),
        out_shape=jax.ShapeDtypeStruct((mp, dout), x2d.dtype),
        grid_spec=pltpu.PrefetchScalarGridSpec(
            num_scalar_prefetch=0,
            grid=(nt,),
            in_specs=[
                pl.BlockSpec((tm, din), lambda i: (i, 0)),
                _const_spec((din, dout)),
                _const_spec((1, dout)),
            ],
            out_specs=pl.BlockSpec((tm, dout), lambda i: (i, 0)),
        ),
        compiler_params=_compiler_params(w_bytes, tm * max(din, dout) * 4),
        cost_estimate=cost,
    )(x2d, w, b.reshape(1, dout))
    return out[:m]


# ----------------------------------------------------------------------------
# Fused transformer layer:
#   PreNorm -> fused-QKV MHA -> out-proj -> residual -> PreNorm -> MLP -> residual
# One grid step per batch element; whole (token-padded) sequence resident.
# Embedding dim is zero-padded to dim_p (multiple of 128); LayerNorm is masked
# to the d_valid real lanes and all padded weight rows/cols are zero, so the
# zero-padding invariant is preserved through every residual.
# ----------------------------------------------------------------------------
def _layer_kernel(x_ref, ag_ref, ab_ref, wqkv_ref, wo_ref, bo_ref,
                  fg_ref, fb_ref, w1_ref, b1_ref, w2_ref, b2_ref, o_ref,
                  *, scale, n_valid, d_valid, heads, dim_head, compute_dtype):
    np_, dim_p = x_ref.shape
    inner = heads * dim_head
    xf = x_ref[...].astype(jnp.float32)

    lane_mask = lax.broadcasted_iota(jnp.int32, (1, dim_p), 1) < d_valid
    row_mask = lax.broadcasted_iota(jnp.int32, (np_, 1), 0) < n_valid
    inv_d = 1.0 / d_valid

    def prenorm(t, g_ref, b_ref):
        # LayerNorm over the valid embedding lanes only (padded lanes are zero).
        mu = jnp.sum(t, axis=-1, keepdims=True) * inv_d
        diff = jnp.where(lane_mask, t - mu, 0.0)
        var = jnp.sum(diff * diff, axis=-1, keepdims=True) * inv_d
        return (diff * lax.rsqrt(var + 1e-5) * g_ref[...].astype(jnp.float32)
                + b_ref[...].astype(jnp.float32))

    # ---- PreNorm + fused-QKV multi-head attention + output proj + residual ----
    xn = jnp.where(row_mask, prenorm(xf, ag_ref, ab_ref), 0.0).astype(compute_dtype)
    qkv = jnp.dot(xn, wqkv_ref[...], preferred_element_type=jnp.float32)  # (Np, 3*inner)

    key_mask = lax.broadcasted_iota(jnp.int32, (np_, np_), 1) < n_valid
    head_outs = []
    for h in range(heads):                                   # static unroll over heads
        q = qkv[:, h * dim_head:(h + 1) * dim_head].astype(compute_dtype)
        k = qkv[:, inner + h * dim_head:inner + (h + 1) * dim_head].astype(compute_dtype)
        v = qkv[:, 2 * inner + h * dim_head:2 * inner + (h + 1) * dim_head].astype(compute_dtype)
        # contraction over the last dim of both == q @ k^T (MXU transposed-RHS path)
        s = lax.dot_general(q, k, (((1,), (1,)), ((), ())),
                            preferred_element_type=jnp.float32) * scale
        s = jnp.where(key_mask, s, -1e30)                    # padded keys -> no mass
        s = s - jnp.max(s, axis=-1, keepdims=True)
        p = jnp.exp(s)
        p = p * pl.reciprocal(jnp.sum(p, axis=-1, keepdims=True), approx=True)
        head_outs.append(jnp.dot(p.astype(compute_dtype), v,
                                 preferred_element_type=jnp.float32))
    oh = jnp.concatenate(head_outs, axis=-1).astype(compute_dtype)        # (Np, inner)
    xa = jnp.dot(oh, wo_ref[...], preferred_element_type=jnp.float32)
    xa = xa + bo_ref[...].astype(jnp.float32) + xf                        # residual 1

    # ---- PreNorm + FeedForward (Linear -> exact erf-GELU -> Linear) + residual ----
    hn = prenorm(xa, fg_ref, fb_ref).astype(compute_dtype)
    h1 = jnp.dot(hn, w1_ref[...], preferred_element_type=jnp.float32)
    h1 = h1 + b1_ref[...].astype(jnp.float32)
    h1 = 0.5 * h1 * (1.0 + lax.erf(h1 * 0.7071067811865476))              # nn.GELU
    y = jnp.dot(h1.astype(compute_dtype), w2_ref[...],
                preferred_element_type=jnp.float32)
    y = y + b2_ref[...].astype(jnp.float32)
    o_ref[...] = (y + xa).astype(o_ref.dtype)                             # residual 2


def transformer_layer(x, lw, *, scale, n_valid, d_valid, heads, dim_head, compute_dtype):
    bsz, np_, dim_p = x.shape
    inner = heads * dim_head
    mlp = lw["w1"].shape[1]
    w_itemsize = jnp.dtype(compute_dtype).itemsize
    resident = ((dim_p * 3 * inner + inner * dim_p + 2 * dim_p * mlp) * w_itemsize
                + (8 * dim_p + mlp) * 4)
    tile = np_ * dim_p * x.dtype.itemsize
    # f32 intermediates (qkv, GELU hidden, per-head scores, xf/xn/xa/out copies)
    scratch = (np_ * 3 * inner + np_ * mlp + heads * np_ * np_ + 4 * np_ * dim_p) * 4
    flops = bsz * (2 * np_ * dim_p * 3 * inner + 4 * np_ * np_ * inner
                   + 2 * np_ * inner * dim_p + 4 * np_ * dim_p * mlp)
    cost = pl.CostEstimate(
        flops=int(flops),
        transcendentals=int(bsz * (heads * np_ * np_ + np_ * mlp)),
        bytes_accessed=int(2 * bsz * np_ * dim_p * x.dtype.itemsize + resident),
    )
    kernel = functools.partial(
        _layer_kernel, scale=scale, n_valid=n_valid, d_valid=d_valid,
        heads=heads, dim_head=dim_head, compute_dtype=compute_dtype)
    return pl.pallas_call(
        kernel,
        out_shape=jax.ShapeDtypeStruct((bsz, np_, dim_p), x.dtype),
        grid_spec=pltpu.PrefetchScalarGridSpec(
            num_scalar_prefetch=0,
            grid=(bsz,),
            in_specs=[
                pl.BlockSpec((None, np_, dim_p), lambda b: (b, 0, 0)),   # x (one batch)
                _const_spec((1, dim_p)),            # attn LN gamma
                _const_spec((1, dim_p)),            # attn LN beta
                _const_spec((dim_p, 3 * inner)),    # fused W_qkv
                _const_spec((inner, dim_p)),        # fused W_out
                _const_spec((1, dim_p)),            # b_out
                _const_spec((1, dim_p)),            # ffn LN gamma
                _const_spec((1, dim_p)),            # ffn LN beta
                _const_spec((dim_p, mlp)),          # W1
                _const_spec((1, mlp)),              # b1
                _const_spec((mlp, dim_p)),          # W2
                _const_spec((1, dim_p)),            # b2
            ],
            out_specs=pl.BlockSpec((None, np_, dim_p), lambda b: (b, 0, 0)),
        ),
        compiler_params=_compiler_params(resident, tile, scratch),
        cost_estimate=cost,
    )(x, lw["ag"], lw["ab"], lw["wqkv"], lw["wo"], lw["bo"],
      lw["fg"], lw["fb"], lw["w1"], lw["b1"], lw["w2"], lw["b2"])


def _pack_layer(layer, dim, dim_p, compute_dtype):
    """Pack per-head weights into fused, lane-padded operands (wrapper-side)."""
    heads, _, dh = layer["wq"].shape
    inner = heads * dh

    def pad_rows(w):   # (dim, X) -> (dim_p, X), zero rows
        return jnp.pad(w, ((0, dim_p - dim), (0, 0)))

    def pad_cols(w):   # (X, dim) -> (X, dim_p), zero cols
        return jnp.pad(w, ((0, 0), (0, dim_p - dim)))

    def pad_vec(v):    # (dim,) -> (1, dim_p), zero lanes
        return jnp.pad(v, (0, dim_p - dim)).reshape(1, dim_p)

    wq2 = jnp.transpose(layer["wq"], (1, 0, 2)).reshape(dim, inner)
    wk2 = jnp.transpose(layer["wk"], (1, 0, 2)).reshape(dim, inner)
    wv2 = jnp.transpose(layer["wv"], (1, 0, 2)).reshape(dim, inner)
    wqkv = pad_rows(jnp.concatenate([wq2, wk2, wv2], axis=1)).astype(compute_dtype)
    wo = pad_cols(layer["wo"].reshape(inner, dim)).astype(compute_dtype)
    return dict(
        ag=pad_vec(layer["attn_g"]), ab=pad_vec(layer["attn_b"]),
        wqkv=wqkv, wo=wo, bo=pad_vec(layer["bo"]),
        fg=pad_vec(layer["ffn_g"]), fb=pad_vec(layer["ffn_b"]),
        w1=pad_rows(layer["w1"]).astype(compute_dtype),
        b1=layer["b1"].reshape(1, -1),
        w2=pad_cols(layer["w2"]).astype(compute_dtype),
        b2=pad_vec(layer["b2"]),
    )


# ----------------------------------------------------------------------------
# Classifier head: LN -> ReLU -> Linear(dim,10) -> ReLU -> Linear(10,classes),
# with hidden/class dims lane-padded to 128 (zero weights), >= 2 row tiles.
# ----------------------------------------------------------------------------
def _head_kernel(x_ref, g_ref, be_ref, w1_ref, b1_ref, w2_ref, b2_ref, o_ref,
                 *, d_valid, compute_dtype):
    xf = x_ref[...].astype(jnp.float32)
    dim_p = xf.shape[-1]
    lane_mask = lax.broadcasted_iota(jnp.int32, (1, dim_p), 1) < d_valid
    inv_d = 1.0 / d_valid
    mu = jnp.sum(xf, axis=-1, keepdims=True) * inv_d
    diff = jnp.where(lane_mask, xf - mu, 0.0)
    var = jnp.sum(diff * diff, axis=-1, keepdims=True) * inv_d
    xn = (diff * lax.rsqrt(var + 1e-5) * g_ref[...].astype(jnp.float32)
          + be_ref[...].astype(jnp.float32))
    h = jnp.maximum(xn, 0.0).astype(compute_dtype)
    h = jnp.dot(h, w1_ref[...], preferred_element_type=jnp.float32)
    h = jnp.maximum(h + b1_ref[...].astype(jnp.float32), 0.0).astype(compute_dtype)
    y = jnp.dot(h, w2_ref[...], preferred_element_type=jnp.float32)
    y = y + b2_ref[...].astype(jnp.float32)
    o_ref[...] = y.astype(o_ref.dtype)


def head_block(x, gamma, beta, w1, b1, w2, b2, *, d_valid, compute_dtype):
    b_rows, dim_p = x.shape
    hid_p, out_p = w1.shape[1], w2.shape[1]
    tm, mp, nt = _row_tiling(b_rows)
    xp = jnp.pad(x, ((0, mp - b_rows), (0, 0))) if mp != b_rows else x
    w_bytes = (dim_p * hid_p + hid_p * out_p) * jnp.dtype(compute_dtype).itemsize
    out = pl.pallas_call(
        functools.partial(_head_kernel, d_valid=d_valid, compute_dtype=compute_dtype),
        out_shape=jax.ShapeDtypeStruct((mp, out_p), x.dtype),
        grid_spec=pltpu.PrefetchScalarGridSpec(
            num_scalar_prefetch=0,
            grid=(nt,),
            in_specs=[
                pl.BlockSpec((tm, dim_p), lambda i: (i, 0)),
                _const_spec((1, dim_p)),
                _const_spec((1, dim_p)),
                _const_spec((dim_p, hid_p)),
                _const_spec((1, hid_p)),
                _const_spec((hid_p, out_p)),
                _const_spec((1, out_p)),
            ],
            out_specs=pl.BlockSpec((tm, out_p), lambda i: (i, 0)),
        ),
        compiler_params=_compiler_params(w_bytes, tm * max(dim_p, hid_p, out_p) * 4),
        cost_estimate=pl.CostEstimate(
            flops=int(2 * mp * (dim_p * hid_p + hid_p * out_p)),
            transcendentals=0,
            bytes_accessed=int((mp * dim_p + mp * out_p) * 4 + w_bytes),
        ),
    )(xp, gamma, beta, w1, b1, w2, b2)
    return out[:b_rows]


# ----------------------------------------------------------------------------
# Full ViT forward (layout plumbing in the wrapper, heavy math in Pallas).
# ----------------------------------------------------------------------------
def _patchify(img, patch_size):
    # Rearrange('b c (h p1) (w p2) -> b (h w) (p1 p2 c)')
    B, C, H, W = img.shape
    p = patch_size
    x = img.reshape(B, C, H // p, p, W // p, p)
    x = x.transpose((0, 2, 4, 3, 5, 1))
    return x.reshape(B, (H // p) * (W // p), p * p * C)


def vit_forward(img, params, *, cfg, compute_dtype=jnp.bfloat16):
    dim, heads, dh = cfg["dim"], cfg["heads"], cfg["dim_head"]
    dim_p = _round_up(dim, 128)                      # lane-dense embedding dim
    x = _patchify(img, cfg["patch_size"])
    B, n_patches, patch_dim = x.shape

    # Patch embedding (Pallas matmul), output already lane-padded to dim_p.
    w_pe = jnp.pad(params["w_pe"], ((0, 0), (0, dim_p - dim))).astype(compute_dtype)
    b_pe = jnp.pad(params["b_pe"], (0, dim_p - dim))
    x = linear_pallas(x.reshape(B * n_patches, patch_dim), w_pe, b_pe,
                      compute_dtype=compute_dtype).reshape(B, n_patches, dim_p)

    cls = jnp.pad(params["cls_token"], ((0, 0), (0, 0), (0, dim_p - dim))).astype(x.dtype)
    pos = jnp.pad(params["pos_emb"], ((0, 0), (0, 0), (0, dim_p - dim))).astype(x.dtype)
    x = jnp.concatenate([jnp.broadcast_to(cls, (B, 1, dim_p)), x], axis=1) + pos
    n = n_patches + 1
    # emb_dropout p=0.0 -> identity.

    # Pad the token axis so in-kernel shapes are sublane-aligned; padded keys are
    # masked inside the attention kernel, padded rows are never pooled.
    n_pad = _round_up(n, 8)
    if n_pad != n:
        x = jnp.pad(x, ((0, 0), (0, n_pad - n), (0, 0)))

    for layer in params["layers"]:
        lw = _pack_layer(layer, dim, dim_p, compute_dtype)
        x = transformer_layer(x, lw, scale=cfg["scale"], n_valid=n, d_valid=dim,
                              heads=heads, dim_head=dh, compute_dtype=compute_dtype)

    x = x[:, 0]                                      # 'cls' pooling, (B, dim_p)

    hid = params["wh1"].shape[1]
    ncls = params["wh2"].shape[1]
    hid_p, cls_p = _round_up(hid, 128), _round_up(ncls, 128)
    wh1 = jnp.pad(params["wh1"], ((0, dim_p - dim), (0, hid_p - hid))).astype(compute_dtype)
    bh1 = jnp.pad(params["bh1"], (0, hid_p - hid)).reshape(1, hid_p)
    wh2 = jnp.pad(params["wh2"], ((0, hid_p - hid), (0, cls_p - ncls))).astype(compute_dtype)
    bh2 = jnp.pad(params["bh2"], (0, cls_p - ncls)).reshape(1, cls_p)
    hg = jnp.pad(params["head_g"], (0, dim_p - dim)).reshape(1, dim_p)
    hb = jnp.pad(params["head_b"], (0, dim_p - dim)).reshape(1, dim_p)
    out = head_block(x, hg, hb, wh1, bh1, wh2, bh2,
                     d_valid=dim, compute_dtype=compute_dtype)
    return out[:, :ncls]


# ----------------------------------------------------------------------------
# Pure-JAX reference for verification.
# ----------------------------------------------------------------------------
def _layer_norm_ref(x, g, b, eps=1e-5):
    mu = jnp.mean(x, axis=-1, keepdims=True)
    var = jnp.mean(jnp.square(x - mu), axis=-1, keepdims=True)
    return (x - mu) * lax.rsqrt(var + eps) * g + b


def _ref_vit(img, params, cfg):
    dim = cfg["dim"]
    x = _patchify(img, cfg["patch_size"])
    B = x.shape[0]
    x = x @ params["w_pe"] + params["b_pe"]
    cls = jnp.broadcast_to(params["cls_token"], (B, 1, dim))
    x = jnp.concatenate([cls, x], axis=1) + params["pos_emb"]
    for layer in params["layers"]:
        xn = _layer_norm_ref(x, layer["attn_g"], layer["attn_b"])
        q = jnp.einsum("bnd,hdk->bhnk", xn, layer["wq"])
        k = jnp.einsum("bnd,hdk->bhnk", xn, layer["wk"])
        v = jnp.einsum("bnd,hdk->bhnk", xn, layer["wv"])
        dots = jnp.einsum("bhnk,bhmk->bhnm", q, k) * cfg["scale"]
        attn = jax.nn.softmax(dots, axis=-1)
        out = jnp.einsum("bhnm,bhmk->bhnk", attn, v)
        x = x + jnp.einsum("bhnk,hkd->bnd", out, layer["wo"]) + layer["bo"]
        hn = _layer_norm_ref(x, layer["ffn_g"], layer["ffn_b"])
        h = hn @ layer["w1"] + layer["b1"]
        h = 0.5 * h * (1.0 + lax.erf(h * 0.7071067811865476))
        x = x + (h @ layer["w2"] + layer["b2"])
    x = x[:, 0]
    xn = _layer_norm_ref(x, params["head_g"], params["head_b"])
    h = jnp.maximum(xn, 0.0) @ params["wh1"] + params["bh1"]
    return jnp.maximum(h, 0.0) @ params["wh2"] + params["bh2"]


if __name__ == "__main__":
    cfg = dict(image_size=16, patch_size=4, channels=3, dim=32, depth=2,
               heads=4, dim_head=8, mlp_dim=64, num_classes=10)
    cfg["scale"] = cfg["dim_head"] ** -0.5
    dim, heads, dh, mlp = cfg["dim"], cfg["heads"], cfg["dim_head"], cfg["mlp_dim"]
    n_patches = (cfg["image_size"] // cfg["patch_size"]) ** 2
    patch_dim = cfg["channels"] * cfg["patch_size"] ** 2

    key = jax.random.PRNGKey(0)
    keys = iter(jax.random.split(key, 64))

    def uni(shape, scale):
        return jax.random.uniform(next(keys), shape, jnp.float32, -1.0, 1.0) * scale

    params = {
        "w_pe": uni((patch_dim, dim), patch_dim ** -0.5),
        "b_pe": uni((dim,), patch_dim ** -0.5),
        "cls_token": jax.random.normal(next(keys), (1, 1, dim), jnp.float32) * 0.02,
        "pos_emb": jax.random.normal(next(keys), (1, n_patches + 1, dim), jnp.float32) * 0.02,
        "head_g": 1.0 + uni((dim,), 0.1),
        "head_b": uni((dim,), 0.1),
        "wh1": uni((dim, 10), dim ** -0.5),
        "bh1": uni((10,), dim ** -0.5),
        "wh2": uni((10, cfg["num_classes"]), 10 ** -0.5),
        "bh2": uni((cfg["num_classes"],), 10 ** -0.5),
        "layers": [],
    }
    for _ in range(cfg["depth"]):
        params["layers"].append({
            "attn_g": 1.0 + uni((dim,), 0.1),
            "attn_b": uni((dim,), 0.1),
            "wq": uni((heads, dim, dh), dim ** -0.5),
            "wk": uni((heads, dim, dh), dim ** -0.5),
            "wv": uni((heads, dim, dh), dim ** -0.5),
            "wo": uni((heads, dh, dim), (heads * dh) ** -0.5),
            "bo": uni((dim,), (heads * dh) ** -0.5),
            "ffn_g": 1.0 + uni((dim,), 0.1),
            "ffn_b": uni((dim,), 0.1),
            "w1": uni((dim, mlp), dim ** -0.5),
            "b1": uni((mlp,), dim ** -0.5),
            "w2": uni((mlp, dim), mlp ** -0.5),
            "b2": uni((dim,), mlp ** -0.5),
        })

    img = jax.random.normal(next(keys),
                            (2, cfg["channels"], cfg["image_size"], cfg["image_size"]),
                            jnp.float32)

    _buffered_supported()      # warm the capability probe outside of jit tracing

    ref = _ref_vit(img, params, cfg)

    # f32 MXU operands: only op reordering + the approx softmax reciprocal differ.
    fwd_f32 = jax.jit(functools.partial(vit_forward, cfg=cfg, compute_dtype=jnp.float32))
    out_f32 = jax.block_until_ready(fwd_f32(img, params))
    assert out_f32.shape == (2, cfg["num_classes"])
    assert jnp.allclose(out_f32, ref, atol=1e-2, rtol=1e-2), (
        f"f32 max abs diff {jnp.max(jnp.abs(out_f32 - ref))}")

    # bf16 MXU operands (perf default): f32 accumulation / LN / softmax / GELU.
    fwd_bf16 = jax.jit(functools.partial(vit_forward, cfg=cfg, compute_dtype=jnp.bfloat16))
    out_bf16 = jax.block_until_ready(fwd_bf16(img, params))
    assert out_bf16.shape == (2, cfg["num_classes"])
    assert jnp.allclose(out_bf16, ref, atol=1e-1, rtol=1e-1), (
        f"bf16 max abs diff {jnp.max(jnp.abs(out_bf16 - ref))}")

    print("KERNEL_OK")
</pallas_src>

<mosaic_0001>
module attributes {stable_mosaic.version = 11 : i64} {
  func.func @k(%arg0: i32, %arg1: memref<8x128xf32, #tpu.memory_space<vmem>>, %arg2: memref<8x128xf32, #tpu.memory_space<vmem>>) attributes {dimension_semantics = [#tpu.dimension_semantics<arbitrary>], iteration_bounds = array<i64: 2>, scalar_prefetch = 0 : i64, scratch_operands = 0 : i64, tpu.core_type = #tpu.core_type<tc>, window_params = [{pipeline_mode = #tpu.pipeline_mode<synchronous>, transform_indices = @transform_0, window_bounds = array<i64: 8, 128>}, {pipeline_mode = #tpu.pipeline_mode<synchronous>, transform_indices = @transform_1, window_bounds = array<i64: 8, 128>}]} {
    %c0 = arith.constant 0 : index
    %c0_0 = arith.constant 0 : index
    %0 = vector.load %arg1[%c0, %c0_0] : memref<8x128xf32, #tpu.memory_space<vmem>>, vector<8x128xf32>
    %cst = arith.constant 2.000000e+00 : f32
    %1 = vector.broadcast %cst : f32 to vector<8x128xf32>
    %2 = arith.mulf %0, %1 : vector<8x128xf32>
    %c0_1 = arith.constant 0 : index
    %c0_2 = arith.constant 0 : index
    %3 = vector.load %arg2[%c0_1, %c0_2] : memref<8x128xf32, #tpu.memory_space<vmem>>, vector<8x128xf32>
    tpu.vector_store %arg2[%c0_1, %c0_2], %2 {strides = array<i32>} : memref<8x128xf32, #tpu.memory_space<vmem>>, vector<8x128xf32>,
    return
  }
  func.func @transform_0(%arg0: i32) -> (i32, i32) {
    %c0_i32 = arith.constant 0 : i32
    %c0_i32_0 = arith.constant 0 : i32
    %c0_i32_1 = arith.constant 0 : i32
    return %c0_i32, %c0_i32_0 : i32, i32
  }
  func.func @transform_1(%arg0: i32) -> (i32, i32) {
    %c0_i32 = arith.constant 0 : i32
    %c0_i32_0 = arith.constant 0 : i32
    %c0_i32_1 = arith.constant 0 : i32
    return %c0_i32, %c0_i32_0 : i32, i32
  }
}

module attributes {stable_mosaic.version = 11 : i64} {
  func.func @_linear_kernel(%arg0: i32, %arg1: memref<16x48xf32, #tpu.memory_space<vmem>>, %arg2: memref<48x128xf32, #tpu.memory_space<vmem>>, %arg3: memref<1x128xf32, #tpu.memory_space<vmem>>, %arg4: memref<16x128xf32, #tpu.memory_space<vmem>>) attributes {dimension_semantics = [#tpu.dimension_semantics<parallel>], iteration_bounds = array<i64: 2>, scalar_prefetch = 0 : i64, scratch_operands = 0 : i64, tpu.core_type = #tpu.core_type<tc>, window_params = [{transform_indices = @transform_0, window_bounds = array<i64: 16, 48>}, {pipeline_mode = #tpu.pipeline_mode<synchronous>, transform_indices = @transform_1, window_bounds = array<i64: 48, 128>}, {pipeline_mode = #tpu.pipeline_mode<synchronous>, transform_indices = @transform_2, window_bounds = array<i64: 1, 128>}, {transform_indices = @transform_3, window_bounds = array<i64: 16, 128>}]} {
    %c0 = arith.constant 0 : index
    %c0_0 = arith.constant 0 : index
    %0 = vector.load %arg1[%c0, %c0_0] : memref<16x48xf32, #tpu.memory_space<vmem>>, vector<16x48xf32>
    %c0_1 = arith.constant 0 : index
    %c0_2 = arith.constant 0 : index
    %1 = vector.load %arg2[%c0_1, %c0_2] : memref<48x128xf32, #tpu.memory_space<vmem>>, vector<48x128xf32>
    %cst = arith.constant dense<0.000000e+00> : vector<16x128xf32>
    %2 = tpu.matmul %0, %1, %cst {dimension_numbers = #tpu.dot_dimension_numbers<[1], [0], [0], [1], [0, 0, 1, 1], [], []>} : vector<16x48xf32>, vector<48x128xf32>, vector<16x128xf32> -> vector<16x128xf32>
    %c0_3 = arith.constant 0 : index
    %c0_4 = arith.constant 0 : index
    %3 = vector.load %arg3[%c0_3, %c0_4] : memref<1x128xf32, #tpu.memory_space<vmem>>, vector<1x128xf32>
    %4 = vector.broadcast %3 : vector<1x128xf32> to vector<16x128xf32>
    %5 = arith.addf %2, %4 : vector<16x128xf32>
    %c0_5 = arith.constant 0 : index
    %c0_6 = arith.constant 0 : index
    %6 = vector.load %arg4[%c0_5, %c0_6] : memref<16x128xf32, #tpu.memory_space<vmem>>, vector<16x128xf32>
    tpu.vector_store %arg4[%c0_5, %c0_6], %5 {strides = array<i32>} : memref<16x128xf32, #tpu.memory_space<vmem>>, vector<16x128xf32>,
    return
  }
  func.func @transform_0(%arg0: i32) -> (i32, i32) {
    %c0_i32 = arith.constant 0 : i32
    %c0_i32_0 = arith.constant 0 : i32
    return %arg0, %c0_i32 : i32, i32
  }
  func.func @transform_1(%arg0: i32) -> (i32, i32) {
    %c0_i32 = arith.constant 0 : i32
    %c0_i32_0 = arith.constant 0 : i32
    %c0_i32_1 = arith.constant 0 : i32
    return %c0_i32, %c0_i32_0 : i32, i32
  }
  func.func @transform_2(%arg0: i32) -> (i32, i32) {
    %c0_i32 = arith.constant 0 : i32
    %c0_i32_0 = arith.constant 0 : i32
    %c0_i32_1 = arith.constant 0 : i32
    return %c0_i32, %c0_i32_0 : i32, i32
  }
  func.func @transform_3(%arg0: i32) -> (i32, i32) {
    %c0_i32 = arith.constant 0 : i32
    %c0_i32_0 = arith.constant 0 : i32
    return %arg0, %c0_i32 : i32, i32
  }
}

module attributes {stable_mosaic.version = 11 : i64} {
  func.func @_head_kernel(%arg0: i32, %arg1: memref<8x128xf32, #tpu.memory_space<vmem>>, %arg2: memref<1x128xf32, #tpu.memory_space<vmem>>, %arg3: memref<1x128xf32, #tpu.memory_space<vmem>>, %arg4: memref<128x128xf32, #tpu.memory_space<vmem>>, %arg5: memref<1x128xf32, #tpu.memory_space<vmem>>, %arg6: memref<128x128xf32, #tpu.memory_space<vmem>>, %arg7: memref<1x128xf32, #tpu.memory_space<vmem>>, %arg8: memref<8x128xf32, #tpu.memory_space<vmem>>) attributes {dimension_semantics = [#tpu.dimension_semantics<parallel>], iteration_bounds = array<i64: 2>, scalar_prefetch = 0 : i64, scratch_operands = 0 : i64, tpu.core_type = #tpu.core_type<tc>, window_params = [{transform_indices = @transform_0, window_bounds = array<i64: 8, 128>}, {pipeline_mode = #tpu.pipeline_mode<synchronous>, transform_indices = @transform_1, window_bounds = array<i64: 1, 128>}, {pipeline_mode = #tpu.pipeline_mode<synchronous>, transform_indices = @transform_2, window_bounds = array<i64: 1, 128>}, {pipeline_mode = #tpu.pipeline_mode<synchronous>, transform_indices = @transform_3, window_bounds = array<i64: 128, 128>}, {pipeline_mode = #tpu.pipeline_mode<synchronous>, transform_indices = @transform_4, window_bounds = array<i64: 1, 128>}, {pipeline_mode = #tpu.pipeline_mode<synchronous>, transform_indices = @transform_5, window_bounds = array<i64: 128, 128>}, {pipeline_mode = #tpu.pipeline_mode<synchronous>, transform_indices = @transform_6, window_bounds = array<i64: 1, 128>}, {transform_indices = @transform_7, window_bounds = array<i64: 8, 128>}]} {
    %c0 = arith.constant 0 : index
    %c0_0 = arith.constant 0 : index
    %0 = vector.load %arg1[%c0, %c0_0] : memref<8x128xf32, #tpu.memory_space<vmem>>, vector<8x128xf32>
    %1 = tpu.iota {dimensions = array<i32: 1>} : vector<1x128xi32>
    %c32_i32 = arith.constant 32 : i32
    %2 = vector.broadcast %c32_i32 : i32 to vector<1x128xi32>
    %3 = arith.cmpi slt, %1, %2 : vector<1x128xi32>
    %cst = arith.constant dense<0.000000e+00> : vector<8xf32>
    %4 = vector.multi_reduction <add>, %0, %cst [1] : vector<8x128xf32> to vector<8xf32>
    %5 = vector.shape_cast %4 : vector<8xf32> to vector<8x1xf32>
    %cst_1 = arith.constant 3.125000e-02 : f32
    %6 = vector.broadcast %cst_1 : f32 to vector<8x1xf32>
    %7 = arith.mulf %5, %6 : vector<8x1xf32>
    %8 = vector.broadcast %7 : vector<8x1xf32> to vector<8x128xf32>
    %9 = arith.subf %0, %8 : vector<8x128xf32>
    %cst_2 = arith.constant 0.000000e+00 : f32
    %10 = vector.shape_cast %3 : vector<1x128xi1> to vector<1x128xi1>
    %11 = vector.broadcast %10 : vector<1x128xi1> to vector<8x128xi1>
    %12 = vector.broadcast %cst_2 : f32 to vector<8x128xf32>
    %13 = arith.select %11, %9, %12 : vector<8x128xi1>, vector<8x128xf32>
    %14 = arith.mulf %13, %13 : vector<8x128xf32>
    %cst_3 = arith.constant dense<0.000000e+00> : vector<8xf32>
    %15 = vector.multi_reduction <add>, %14, %cst_3 [1] : vector<8x128xf32> to vector<8xf32>
    %16 = vector.shape_cast %15 : vector<8xf32> to vector<8x1xf32>
    %cst_4 = arith.constant 3.125000e-02 : f32
    %17 = vector.broadcast %cst_4 : f32 to vector<8x1xf32>
    %18 = arith.mulf %16, %17 : vector<8x1xf32>
    %cst_5 = arith.constant 9.99999974E-6 : f32
    %19 = vector.broadcast %cst_5 : f32 to vector<8x1xf32>
    %20 = arith.addf %18, %19 : vector<8x1xf32>
    %21 = math.rsqrt %20 : vector<8x1xf32>
    %22 = vector.broadcast %21 : vector<8x1xf32> to vector<8x128xf32>
    %23 = arith.mulf %13, %22 : vector<8x128xf32>
    %c0_6 = arith.constant 0 : index
    %c0_7 = arith.constant 0 : index
    %24 = vector.load %arg2[%c0_6, %c0_7] : memref<1x128xf32, #tpu.memory_space<vmem>>, vector<1x128xf32>
    %25 = vector.broadcast %24 : vector<1x128xf32> to vector<8x128xf32>
    %26 = arith.mulf %23, %25 : vector<8x128xf32>
    %c0_8 = arith.constant 0 : index
    %c0_9 = arith.constant 0 : index
    %27 = vector.load %arg3[%c0_8, %c0_9] : memref<1x128xf32, #tpu.memory_space<vmem>>, vector<1x128xf32>
    %28 = vector.broadcast %27 : vector<1x128xf32> to vector<8x128xf32>
    %29 = arith.addf %26, %28 : vector<8x128xf32>
    %cst_10 = arith.constant 0.000000e+00 : f32
    %30 = vector.broadcast %cst_10 : f32 to vector<8x128xf32>
    %31 = arith.maximumf %29, %30 : vector<8x128xf32>
    %c0_11 = arith.constant 0 : index
    %c0_12 = arith.constant 0 : index
    %32 = vector.load %arg4[%c0_11, %c0_12] : memref<128x128xf32, #tpu.memory_space<vmem>>, vector<128x128xf32>
    %cst_13 = arith.constant dense<0.000000e+00> : vector<8x128xf32>
    %33 = tpu.matmul %31, %32, %cst_13 {dimension_numbers = #tpu.dot_dimension_numbers<[1], [0], [0], [1], [0, 0, 1, 1], [], []>} : vector<8x128xf32>, vector<128x128xf32>, vector<8x128xf32> -> vector<8x128xf32>
    %c0_14 = arith.constant 0 : index
    %c0_15 = arith.constant 0 : index
    %34 = vector.load %arg5[%c0_14, %c0_15] : memref<1x128xf32, #tpu.memory_space<vmem>>, vector<1x128xf32>
    %35 = vector.broadcast %34 : vector<1x128xf32> to vector<8x128xf32>
    %36 = arith.addf %33, %35 : vector<8x128xf32>
    %cst_16 = arith.constant 0.000000e+00 : f32
    %37 = vector.broadcast %cst_16 : f32 to vector<8x128xf32>
    %38 = arith.maximumf %36, %37 : vector<8x128xf32>
    %c0_17 = arith.constant 0 : index
    %c0_18 = arith.constant 0 : index
    %39 = vector.load %arg6[%c0_17, %c0_18] : memref<128x128xf32, #tpu.memory_space<vmem>>, vector<128x128xf32>
    %cst_19 = arith.constant dense<0.000000e+00> : vector<8x128xf32>
    %40 = tpu.matmul %38, %39, %cst_19 {dimension_numbers = #tpu.dot_dimension_numbers<[1], [0], [0], [1], [0, 0, 1, 1], [], []>} : vector<8x128xf32>, vector<128x128xf32>, vector<8x128xf32> -> vector<8x128xf32>
    %c0_20 = arith.constant 0 : index
    %c0_21 = arith.constant 0 : index
    %41 = vector.load %arg7[%c0_20, %c0_21] : memref<1x128xf32, #tpu.memory_space<vmem>>, vector<1x128xf32>
    %42 = vector.broadcast %41 : vector<1x128xf32> to vector<8x128xf32>
    %43 = arith.addf %40, %42 : vector<8x128xf32>
    %c0_22 = arith.constant 0 : index
    %c0_23 = arith.constant 0 : index
    %44 = vector.load %arg8[%c0_22, %c0_23] : memref<8x128xf32, #tpu.memory_space<vmem>>, vector<8x128xf32>
    tpu.vector_store %arg8[%c0_22, %c0_23], %43 {strides = array<i32>} : memref<8x128xf32, #tpu.memory_space<vmem>>, vector<8x128xf32>,
    return
  }
  func.func @transform_0(%arg0: i32) -> (i32, i32) {
    %c0_i32 = arith.constant 0 : i32
    %c0_i32_0 = arith.constant 0 : i32
    return %arg0, %c0_i32 : i32, i32
  }
  func.func @transform_1(%arg0: i32) -> (i32, i32) {
    %c0_i32 = arith.constant 0 : i32
    %c0_i32_0 = arith.constant 0 : i32
    %c0_i32_1 = arith.constant 0 : i32
    return %c0_i32, %c0_i32_0 : i32, i32
  }
  func.func @transform_2(%arg0: i32) -> (i32, i32) {
    %c0_i32 = arith.constant 0 : i32
    %c0_i32_0 = arith.constant 0 : i32
    %c0_i32_1 = arith.constant 0 : i32
    return %c0_i32, %c0_i32_0 : i32, i32
  }
  func.func @transform_3(%arg0: i32) -> (i32, i32) {
    %c0_i32 = arith.constant 0 : i32
    %c0_i32_0 = arith.constant 0 : i32
    %c0_i32_1 = arith.constant 0 : i32
    return %c0_i32, %c0_i32_0 : i32, i32
  }
  func.func @transform_4(%arg0: i32) -> (i32, i32) {
    %c0_i32 = arith.constant 0 : i32
    %c0_i32_0 = arith.constant 0 : i32
    %c0_i32_1 = arith.constant 0 : i32
    return %c0_i32, %c0_i32_0 : i32, i32
  }
  func.func @transform_5(%arg0: i32) -> (i32, i32) {
    %c0_i32 = arith.constant 0 : i32
    %c0_i32_0 = arith.constant 0 : i32
    %c0_i32_1 = arith.constant 0 : i32
    return %c0_i32, %c0_i32_0 : i32, i32
  }
  func.func @transform_6(%arg0: i32) -> (i32, i32) {
    %c0_i32 = arith.constant 0 : i32
    %c0_i32_0 = arith.constant 0 : i32
    %c0_i32_1 = arith.constant 0 : i32
    return %c0_i32, %c0_i32_0 : i32, i32
  }
  func.func @transform_7(%arg0: i32) -> (i32, i32) {
    %c0_i32 = arith.constant 0 : i32
    %c0_i32_0 = arith.constant 0 : i32
    return %arg0, %c0_i32 : i32, i32
  }
}

module attributes {stable_mosaic.version = 11 : i64} {
  func.func @_layer_kernel(%arg0: i32, %arg1: memref<1x24x128xf32, #tpu.memory_space<vmem>>, %arg2: memref<1x128xf32, #tpu.memory_space<vmem>>, %arg3: memref<1x128xf32, #tpu.memory_space<vmem>>, %arg4: memref<128x96xf32, #tpu.memory_space<vmem>>, %arg5: memref<32x128xf32, #tpu.memory_space<vmem>>, %arg6: memref<1x128xf32, #tpu.memory_space<vmem>>, %arg7: memref<1x128xf32, #tpu.memory_space<vmem>>, %arg8: memref<1x128xf32, #tpu.memory_space<vmem>>, %arg9: memref<128x64xf32, #tpu.memory_space<vmem>>, %arg10: memref<1x64xf32, #tpu.memory_space<vmem>>, %arg11: memref<64x128xf32, #tpu.memory_space<vmem>>, %arg12: memref<1x128xf32, #tpu.memory_space<vmem>>, %arg13: memref<1x24x128xf32, #tpu.memory_space<vmem>>) attributes {dimension_semantics = [#tpu.dimension_semantics<parallel>], iteration_bounds = array<i64: 2>, scalar_prefetch = 0 : i64, scratch_operands = 0 : i64, tpu.core_type = #tpu.core_type<tc>, window_params = [{transform_indices = @transform_0, window_bounds = array<i64: 1, 24, 128>}, {pipeline_mode = #tpu.pipeline_mode<synchronous>, transform_indices = @transform_1, window_bounds = array<i64: 1, 128>}, {pipeline_mode = #tpu.pipeline_mode<synchronous>, transform_indices = @transform_2, window_bounds = array<i64: 1, 128>}, {pipeline_mode = #tpu.pipeline_mode<synchronous>, transform_indices = @transform_3, window_bounds = array<i64: 128, 96>}, {pipeline_mode = #tpu.pipeline_mode<synchronous>, transform_indices = @transform_4, window_bounds = array<i64: 32, 128>}, {pipeline_mode = #tpu.pipeline_mode<synchronous>, transform_indices = @transform_5, window_bounds = array<i64: 1, 128>}, {pipeline_mode = #tpu.pipeline_mode<synchronous>, transform_indices = @transform_6, window_bounds = array<i64: 1, 128>}, {pipeline_mode = #tpu.pipeline_mode<synchronous>, transform_indices = @transform_7, window_bounds = array<i64: 1, 128>}, {pipeline_mode = #tpu.pipeline_mode<synchronous>, transform_indices = @transform_8, window_bounds = array<i64: 128, 64>}, {pipeline_mode = #tpu.pipeline_mode<synchronous>, transform_indices = @transform_9, window_bounds = array<i64: 1, 64>}, {pipeline_mode = #tpu.pipeline_mode<synchronous>, transform_indices = @transform_10, window_bounds = array<i64: 64, 128>}, {pipeline_mode = #tpu.pipeline_mode<synchronous>, transform_indices = @transform_11, window_bounds = array<i64: 1, 128>}, {transform_indices = @transform_12, window_bounds = array<i64: 1, 24, 128>}]} {
    %c0 = arith.constant 0 : index
    %c0_0 = arith.constant 0 : index
    %c0_1 = arith.constant 0 : index
    %0 = vector.load %arg1[%c0, %c0_0, %c0_1] : memref<1x24x128xf32, #tpu.memory_space<vmem>>, vector<1x24x128xf32>
    %1 = vector.shape_cast %0 : vector<1x24x128xf32> to vector<24x128xf32>
    %2 = tpu.iota {dimensions = array<i32: 1>} : vector<1x128xi32>
    %c32_i32 = arith.constant 32 : i32
    %3 = vector.broadcast %c32_i32 : i32 to vector<1x128xi32>
    %4 = arith.cmpi slt, %2, %3 : vector<1x128xi32>
    %5 = tpu.iota {dimensions = array<i32: 0>} : vector<24x1xi32>
    %c17_i32 = arith.constant 17 : i32
    %6 = vector.broadcast %c17_i32 : i32 to vector<24x1xi32>
    %7 = arith.cmpi slt, %5, %6 : vector<24x1xi32>
    %cst = arith.constant dense<0.000000e+00> : vector<24xf32>
    %8 = vector.multi_reduction <add>, %1, %cst [1] : vector<24x128xf32> to vector<24xf32>
    %9 = vector.shape_cast %8 : vector<24xf32> to vector<24x1xf32>
    %cst_2 = arith.constant 3.125000e-02 : f32
    %10 = vector.broadcast %cst_2 : f32 to vector<24x1xf32>
    %11 = arith.mulf %9, %10 : vector<24x1xf32>
    %12 = vector.broadcast %11 : vector<24x1xf32> to vector<24x128xf32>
    %13 = arith.subf %1, %12 : vector<24x128xf32>
    %cst_3 = arith.constant 0.000000e+00 : f32
    %14 = vector.shape_cast %4 : vector<1x128xi1> to vector<1x128xi1>
    %15 = vector.broadcast %14 : vector<1x128xi1> to vector<24x128xi1>
    %16 = vector.broadcast %cst_3 : f32 to vector<24x128xf32>
    %17 = arith.select %15, %13, %16 : vector<24x128xi1>, vector<24x128xf32>
    %18 = arith.mulf %17, %17 : vector<24x128xf32>
    %cst_4 = arith.constant dense<0.000000e+00> : vector<24xf32>
    %19 = vector.multi_reduction <add>, %18, %cst_4 [1] : vector<24x128xf32> to vector<24xf32>
    %20 = vector.shape_cast %19 : vector<24xf32> to vector<24x1xf32>
    %cst_5 = arith.constant 3.125000e-02 : f32
    %21 = vector.broadcast %cst_5 : f32 to vector<24x1xf32>
    %22 = arith.mulf %20, %21 : vector<24x1xf32>
    %cst_6 = arith.constant 9.99999974E-6 : f32
    %23 = vector.broadcast %cst_6 : f32 to vector<24x1xf32>
    %24 = arith.addf %22, %23 : vector<24x1xf32>
    %25 = math.rsqrt %24 : vector<24x1xf32>
    %26 = vector.broadcast %25 : vector<24x1xf32> to vector<24x128xf32>
    %27 = arith.mulf %17, %26 : vector<24x128xf32>
    %c0_7 = arith.constant 0 : index
    %c0_8 = arith.constant 0 : index
    %28 = vector.load %arg2[%c0_7, %c0_8] : memref<1x128xf32, #tpu.memory_space<vmem>>, vector<1x128xf32>
    %29 = vector.broadcast %28 : vector<1x128xf32> to vector<24x128xf32>
    %30 = arith.mulf %27, %29 : vector<24x128xf32>
    %c0_9 = arith.constant 0 : index
    %c0_10 = arith.constant 0 : index
    %31 = vector.load %arg3[%c0_9, %c0_10] : memref<1x128xf32, #tpu.memory_space<vmem>>, vector<1x128xf32>
    %32 = vector.broadcast %31 : vector<1x128xf32> to vector<24x128xf32>
    %33 = arith.addf %30, %32 : vector<24x128xf32>
    %cst_11 = arith.constant 0.000000e+00 : f32
    %34 = vector.shape_cast %7 : vector<24x1xi1> to vector<24x1xi1>
    %35 = vector.broadcast %34 : vector<24x1xi1> to vector<24x128xi1>
    %36 = vector.broadcast %cst_11 : f32 to vector<24x128xf32>
    %37 = arith.select %35, %33, %36 : vector<24x128xi1>, vector<24x128xf32>
    %c0_12 = arith.constant 0 : index
    %c0_13 = arith.constant 0 : index
    %38 = vector.load %arg4[%c0_12, %c0_13] : memref<128x96xf32, #tpu.memory_space<vmem>>, vector<128x96xf32>
    %cst_14 = arith.constant dense<0.000000e+00> : vector<24x96xf32>
    %39 = tpu.matmul %37, %38, %cst_14 {dimension_numbers = #tpu.dot_dimension_numbers<[1], [0], [0], [1], [0, 0, 1, 1], [], []>} : vector<24x128xf32>, vector<128x96xf32>, vector<24x96xf32> -> vector<24x96xf32>
    %40 = tpu.iota {dimensions = array<i32: 1>} : vector<24x24xi32>
    %c17_i32_15 = arith.constant 17 : i32
    %41 = vector.broadcast %c17_i32_15 : i32 to vector<24x24xi32>
    %42 = arith.cmpi slt, %40, %41 : vector<24x24xi32>
    %43 = vector.extract_strided_slice %39 {offsets = [0, 0], sizes = [24, 8], strides = [1, 1]} : vector<24x96xf32> to vector<24x8xf32>
    %44 = vector.extract_strided_slice %39 {offsets = [0, 32], sizes = [24, 8], strides = [1, 1]} : vector<24x96xf32> to vector<24x8xf32>
    %45 = vector.extract_strided_slice %39 {offsets = [0, 64], sizes = [24, 8], strides = [1, 1]} : vector<24x96xf32> to vector<24x8xf32>
    %cst_16 = arith.constant dense<0.000000e+00> : vector<24x24xf32>
    %46 = tpu.matmul %43, %44, %cst_16 {dimension_numbers = #tpu.dot_dimension_numbers<[1], [1], [0], [0], [0, 0, 1, 0], [], []>} : vector<24x8xf32>, vector<24x8xf32>, vector<24x24xf32> -> vector<24x24xf32>
    %cst_17 = arith.constant 0.353553385 : f32
    %47 = vector.broadcast %cst_17 : f32 to vector<24x24xf32>
    %48 = arith.mulf %46, %47 : vector<24x24xf32>
    %cst_18 = arith.constant -1.000000e+30 : f32
    %49 = vector.broadcast %cst_18 : f32 to vector<24x24xf32>
    %50 = arith.select %42, %48, %49 : vector<24x24xi1>, vector<24x24xf32>
    %cst_19 = arith.constant dense<0xFF800000> : vector<24xf32>
    %51 = vector.multi_reduction <maximumf>, %50, %cst_19 [1] : vector<24x24xf32> to vector<24xf32>
    %52 = vector.shape_cast %51 : vector<24xf32> to vector<24x1xf32>
    %53 = vector.broadcast %52 : vector<24x1xf32> to vector<24x24xf32>
    %54 = arith.subf %50, %53 : vector<24x24xf32>
    %55 = math.exp %54 : vector<24x24xf32>
    %cst_20 = arith.constant dense<0.000000e+00> : vector<24xf32>
    %56 = vector.multi_reduction <add>, %55, %cst_20 [1] : vector<24x24xf32> to vector<24xf32>
    %57 = vector.shape_cast %56 : vector<24xf32> to vector<24x1xf32>
    %58 = tpu.reciprocal %57 {approx = true} : vector<24x1xf32> -> vector<24x1xf32>
    %59 = vector.broadcast %58 : vector<24x1xf32> to vector<24x24xf32>
    %60 = arith.mulf %55, %59 : vector<24x24xf32>
    %cst_21 = arith.constant dense<0.000000e+00> : vector<24x8xf32>
    %61 = tpu.matmul %60, %45, %cst_21 {dimension_numbers = #tpu.dot_dimension_numbers<[1], [0], [0], [1], [0, 0, 1, 1], [], []>} : vector<24x24xf32>, vector<24x8xf32>, vector<24x8xf32> -> vector<24x8xf32>
    %62 = vector.extract_strided_slice %39 {offsets = [0, 8], sizes = [24, 8], strides = [1, 1]} : vector<24x96xf32> to vector<24x8xf32>
    %63 = vector.extract_strided_slice %39 {offsets = [0, 40], sizes = [24, 8], strides = [1, 1]} : vector<24x96xf32> to vector<24x8xf32>
    %64 = vector.extract_strided_slice %39 {offsets = [0, 72], sizes = [24, 8], strides = [1, 1]} : vector<24x96xf32> to vector<24x8xf32>
    %cst_22 = arith.constant dense<0.000000e+00> : vector<24x24xf32>
    %65 = tpu.matmul %62, %63, %cst_22 {dimension_numbers = #tpu.dot_dimension_numbers<[1], [1], [0], [0], [0, 0, 1, 0], [], []>} : vector<24x8xf32>, vector<24x8xf32>, vector<24x24xf32> -> vector<24x24xf32>
    %cst_23 = arith.constant 0.353553385 : f32
    %66 = vector.broadcast %cst_23 : f32 to vector<24x24xf32>
    %67 = arith.mulf %65, %66 : vector<24x24xf32>
    %cst_24 = arith.constant -1.000000e+30 : f32
    %68 = vector.broadcast %cst_24 : f32 to vector<24x24xf32>
    %69 = arith.select %42, %67, %68 : vector<24x24xi1>, vector<24x24xf32>
    %cst_25 = arith.constant dense<0xFF800000> : vector<24xf32>
    %70 = vector.multi_reduction <maximumf>, %69, %cst_25 [1] : vector<24x24xf32> to vector<24xf32>
    %71 = vector.shape_cast %70 : vector<24xf32> to vector<24x1xf32>
    %72 = vector.broadcast %71 : vector<24x1xf32> to vector<24x24xf32>
    %73 = arith.subf %69, %72 : vector<24x24xf32>
    %74 = math.exp %73 : vector<24x24xf32>
    %cst_26 = arith.constant dense<0.000000e+00> : vector<24xf32>
    %75 = vector.multi_reduction <add>, %74, %cst_26 [1] : vector<24x24xf32> to vector<24xf32>
    %76 = vector.shape_cast %75 : vector<24xf32> to vector<24x1xf32>
    %77 = tpu.reciprocal %76 {approx = true} : vector<24x1xf32> -> vector<24x1xf32>
    %78 = vector.broadcast %77 : vector<24x1xf32> to vector<24x24xf32>
    %79 = arith.mulf %74, %78 : vector<24x24xf32>
    %cst_27 = arith.constant dense<0.000000e+00> : vector<24x8xf32>
    %80 = tpu.matmul %79, %64, %cst_27 {dimension_numbers = #tpu.dot_dimension_numbers<[1], [0], [0], [1], [0, 0, 1, 1], [], []>} : vector<24x24xf32>, vector<24x8xf32>, vector<24x8xf32> -> vector<24x8xf32>
    %81 = vector.extract_strided_slice %39 {offsets = [0, 16], sizes = [24, 8], strides = [1, 1]} : vector<24x96xf32> to vector<24x8xf32>
    %82 = vector.extract_strided_slice %39 {offsets = [0, 48], sizes = [24, 8], strides = [1, 1]} : vector<24x96xf32> to vector<24x8xf32>
    %83 = vector.extract_strided_slice %39 {offsets = [0, 80], sizes = [24, 8], strides = [1, 1]} : vector<24x96xf32> to vector<24x8xf32>
    %cst_28 = arith.constant dense<0.000000e+00> : vector<24x24xf32>
    %84 = tpu.matmul %81, %82, %cst_28 {dimension_numbers = #tpu.dot_dimension_numbers<[1], [1], [0], [0], [0, 0, 1, 0], [], []>} : vector<24x8xf32>, vector<24x8xf32>, vector<24x24xf32> -> vector<24x24xf32>
    %cst_29 = arith.constant 0.353553385 : f32
    %85 = vector.broadcast %cst_29 : f32 to vector<24x24xf32>
    %86 = arith.mulf %84, %85 : vector<24x24xf32>
    %cst_30 = arith.constant -1.000000e+30 : f32
    %87 = vector.broadcast %cst_30 : f32 to vector<24x24xf32>
    %88 = arith.select %42, %86, %87 : vector<24x24xi1>, vector<24x24xf32>
    %cst_31 = arith.constant dense<0xFF800000> : vector<24xf32>
    %89 = vector.multi_reduction <maximumf>, %88, %cst_31 [1] : vector<24x24xf32> to vector<24xf32>
    %90 = vector.shape_cast %89 : vector<24xf32> to vector<24x1xf32>
    %91 = vector.broadcast %90 : vector<24x1xf32> to vector<24x24xf32>
    %92 = arith.subf %88, %91 : vector<24x24xf32>
    %93 = math.exp %92 : vector<24x24xf32>
    %cst_32 = arith.constant dense<0.000000e+00> : vector<24xf32>
    %94 = vector.multi_reduction <add>, %93, %cst_32 [1] : vector<24x24xf32> to vector<24xf32>
    %95 = vector.shape_cast %94 : vector<24xf32> to vector<24x1xf32>
    %96 = tpu.reciprocal %95 {approx = true} : vector<24x1xf32> -> vector<24x1xf32>
    %97 = vector.broadcast %96 : vector<24x1xf32> to vector<24x24xf32>
    %98 = arith.mulf %93, %97 : vector<24x24xf32>
    %cst_33 = arith.constant dense<0.000000e+00> : vector<24x8xf32>
    %99 = tpu.matmul %98, %83, %cst_33 {dimension_numbers = #tpu.dot_dimension_numbers<[1], [0], [0], [1], [0, 0, 1, 1], [], []>} : vector<24x24xf32>, vector<24x8xf32>, vector<24x8xf32> -> vector<24x8xf32>
    %100 = vector.extract_strided_slice %39 {offsets = [0, 24], sizes = [24, 8], strides = [1, 1]} : vector<24x96xf32> to vector<24x8xf32>
    %101 = vector.extract_strided_slice %39 {offsets = [0, 56], sizes = [24, 8], strides = [1, 1]} : vector<24x96xf32> to vector<24x8xf32>
    %102 = vector.extract_strided_slice %39 {offsets = [0, 88], sizes = [24, 8], strides = [1, 1]} : vector<24x96xf32> to vector<24x8xf32>
    %cst_34 = arith.constant dense<0.000000e+00> : vector<24x24xf32>
    %103 = tpu.matmul %100, %101, %cst_34 {dimension_numbers = #tpu.dot_dimension_numbers<[1], [1], [0], [0], [0, 0, 1, 0], [], []>} : vector<24x8xf32>, vector<24x8xf32>, vector<24x24xf32> -> vector<24x24xf32>
    %cst_35 = arith.constant 0.353553385 : f32
    %104 = vector.broadcast %cst_35 : f32 to vector<24x24xf32>
    %105 = arith.mulf %103, %104 : vector<24x24xf32>
    %cst_36 = arith.constant -1.000000e+30 : f32
    %106 = vector.broadcast %cst_36 : f32 to vector<24x24xf32>
    %107 = arith.select %42, %105, %106 : vector<24x24xi1>, vector<24x24xf32>
    %cst_37 = arith.constant dense<0xFF800000> : vector<24xf32>
    %108 = vector.multi_reduction <maximumf>, %107, %cst_37 [1] : vector<24x24xf32> to vector<24xf32>
    %109 = vector.shape_cast %108 : vector<24xf32> to vector<24x1xf32>
    %110 = vector.broadcast %109 : vector<24x1xf32> to vector<24x24xf32>
    %111 = arith.subf %107, %110 : vector<24x24xf32>
    %112 = math.exp %111 : vector<24x24xf32>
    %cst_38 = arith.constant dense<0.000000e+00> : vector<24xf32>
    %113 = vector.multi_reduction <add>, %112, %cst_38 [1] : vector<24x24xf32> to vector<24xf32>
    %114 = vector.shape_cast %113 : vector<24xf32> to vector<24x1xf32>
    %115 = tpu.reciprocal %114 {approx = true} : vector<24x1xf32> -> vector<24x1xf32>
    %116 = vector.broadcast %115 : vector<24x1xf32> to vector<24x24xf32>
    %117 = arith.mulf %112, %116 : vector<24x24xf32>
    %cst_39 = arith.constant dense<0.000000e+00> : vector<24x8xf32>
    %118 = tpu.matmul %117, %102, %cst_39 {dimension_numbers = #tpu.dot_dimension_numbers<[1], [0], [0], [1], [0, 0, 1, 1], [], []>} : vector<24x24xf32>, vector<24x8xf32>, vector<24x8xf32> -> vector<24x8xf32>
    %119 = tpu.concatenate %61, %80, %99, %118 in 1 : vector<24x8xf32>, vector<24x8xf32>, vector<24x8xf32>, vector<24x8xf32> -> vector<24x32xf32>
    %c0_40 = arith.constant 0 : index
    %c0_41 = arith.constant 0 : index
    %120 = vector.load %arg5[%c0_40, %c0_41] : memref<32x128xf32, #tpu.memory_space<vmem>>, vector<32x128xf32>
    %cst_42 = arith.constant dense<0.000000e+00> : vector<24x128xf32>
    %121 = tpu.matmul %119, %120, %cst_42 {dimension_numbers = #tpu.dot_dimension_numbers<[1], [0], [0], [1], [0, 0, 1, 1], [], []>} : vector<24x32xf32>, vector<32x128xf32>, vector<24x128xf32> -> vector<24x128xf32>
    %c0_43 = arith.constant 0 : index
    %c0_44 = arith.constant 0 : index
    %122 = vector.load %arg6[%c0_43, %c0_44] : memref<1x128xf32, #tpu.memory_space<vmem>>, vector<1x128xf32>
    %123 = vector.broadcast %122 : vector<1x128xf32> to vector<24x128xf32>
    %124 = arith.addf %121, %123 : vector<24x128xf32>
    %125 = arith.addf %124, %1 : vector<24x128xf32>
    %cst_45 = arith.constant dense<0.000000e+00> : vector<24xf32>
    %126 = vector.multi_reduction <add>, %125, %cst_45 [1] : vector<24x128xf32> to vector<24xf32>
    %127 = vector.shape_cast %126 : vector<24xf32> to vector<24x1xf32>
    %cst_46 = arith.constant 3.125000e-02 : f32
    %128 = vector.broadcast %cst_46 : f32 to vector<24x1xf32>
    %129 = arith.mulf %127, %128 : vector<24x1xf32>
    %130 = vector.broadcast %129 : vector<24x1xf32> to vector<24x128xf32>
    %131 = arith.subf %125, %130 : vector<24x128xf32>
    %cst_47 = arith.constant 0.000000e+00 : f32
    %132 = vector.shape_cast %4 : vector<1x128xi1> to vector<1x128xi1>
    %133 = vector.broadcast %132 : vector<1x128xi1> to vector<24x128xi1>
    %134 = vector.broadcast %cst_47 : f32 to vector<24x128xf32>
    %135 = arith.select %133, %131, %134 : vector<24x128xi1>, vector<24x128xf32>
    %136 = arith.mulf %135, %135 : vector<24x128xf32>
    %cst_48 = arith.constant dense<0.000000e+00> : vector<24xf32>
    %137 = vector.multi_reduction <add>, %136, %cst_48 [1] : vector<24x128xf32> to vector<24xf32>
    %138 = vector.shape_cast %137 : vector<24xf32> to vector<24x1xf32>
    %cst_49 = arith.constant 3.125000e-02 : f32
    %139 = vector.broadcast %cst_49 : f32 to vector<24x1xf32>
    %140 = arith.mulf %138, %139 : vector<24x1xf32>
    %cst_50 = arith.constant 9.99999974E-6 : f32
    %141 = vector.broadcast %cst_50 : f32 to vector<24x1xf32>
    %142 = arith.addf %140, %141 : vector<24x1xf32>
    %143 = math.rsqrt %142 : vector<24x1xf32>
    %144 = vector.broadcast %143 : vector<24x1xf32> to vector<24x128xf32>
    %145 = arith.mulf %135, %144 : vector<24x128xf32>
    %c0_51 = arith.constant 0 : index
    %c0_52 = arith.constant 0 : index
    %146 = vector.load %arg7[%c0_51, %c0_52] : memref<1x128xf32, #tpu.memory_space<vmem>>, vector<1x128xf32>
    %147 = vector.broadcast %146 : vector<1x128xf32> to vector<24x128xf32>
    %148 = arith.mulf %145, %147 : vector<24x128xf32>
    %c0_53 = arith.constant 0 : index
    %c0_54 = arith.constant 0 : index
    %149 = vector.load %arg8[%c0_53, %c0_54] : memref<1x128xf32, #tpu.memory_space<vmem>>, vector<1x128xf32>
    %150 = vector.broadcast %149 : vector<1x128xf32> to vector<24x128xf32>
    %151 = arith.addf %148, %150 : vector<24x128xf32>
    %c0_55 = arith.constant 0 : index
    %c0_56 = arith.constant 0 : index
    %152 = vector.load %arg9[%c0_55, %c0_56] : memref<128x64xf32, #tpu.memory_space<vmem>>, vector<128x64xf32>
    %cst_57 = arith.constant dense<0.000000e+00> : vector<24x64xf32>
    %153 = tpu.matmul %151, %152, %cst_57 {dimension_numbers = #tpu.dot_dimension_numbers<[1], [0], [0], [1], [0, 0, 1, 1], [], []>} : vector<24x128xf32>, vector<128x64xf32>, vector<24x64xf32> -> vector<24x64xf32>
    %c0_58 = arith.constant 0 : index
    %c0_59 = arith.constant 0 : index
    %154 = vector.load %arg10[%c0_58, %c0_59] : memref<1x64xf32, #tpu.memory_space<vmem>>, vector<1x64xf32>
    %155 = vector.broadcast %154 : vector<1x64xf32> to vector<24x64xf32>
    %156 = arith.addf %153, %155 : vector<24x64xf32>
    %cst_60 = arith.constant 5.000000e-01 : f32
    %157 = vector.broadcast %cst_60 : f32 to vector<24x64xf32>
    %158 = arith.mulf %157, %156 : vector<24x64xf32>
    %cst_61 = arith.constant 0.707106769 : f32
    %159 = vector.broadcast %cst_61 : f32 to vector<24x64xf32>
    %160 = arith.mulf %156, %159 : vector<24x64xf32>
    %161 = math.erf %160 : vector<24x64xf32>
    %cst_62 = arith.constant 1.000000e+00 : f32
    %162 = vector.broadcast %cst_62 : f32 to vector<24x64xf32>
    %163 = arith.addf %162, %161 : vector<24x64xf32>
    %164 = arith.mulf %158, %163 : vector<24x64xf32>
    %c0_63 = arith.constant 0 : index
    %c0_64 = arith.constant 0 : index
    %165 = vector.load %arg11[%c0_63, %c0_64] : memref<64x128xf32, #tpu.memory_space<vmem>>, vector<64x128xf32>
    %cst_65 = arith.constant dense<0.000000e+00> : vector<24x128xf32>
    %166 = tpu.matmul %164, %165, %cst_65 {dimension_numbers = #tpu.dot_dimension_numbers<[1], [0], [0], [1], [0, 0, 1, 1], [], []>} : vector<24x64xf32>, vector<64x128xf32>, vector<24x128xf32> -> vector<24x128xf32>
    %c0_66 = arith.constant 0 : index
    %c0_67 = arith.constant 0 : index
    %167 = vector.load %arg12[%c0_66, %c0_67] : memref<1x128xf32, #tpu.memory_space<vmem>>, vector<1x128xf32>
    %168 = vector.broadcast %167 : vector<1x128xf32> to vector<24x128xf32>
    %169 = arith.addf %166, %168 : vector<24x128xf32>
    %170 = arith.addf %169, %125 : vector<24x128xf32>
    %c0_68 = arith.constant 0 : index
    %c0_69 = arith.constant 0 : index
    %c0_70 = arith.constant 0 : index
    %171 = vector.load %arg13[%c0_68, %c0_69, %c0_70] : memref<1x24x128xf32, #tpu.memory_space<vmem>>, vector<1x24x128xf32>
    %172 = vector.shape_cast %171 : vector<1x24x128xf32> to vector<24x128xf32>
    %173 = vector.shape_cast %170 : vector<24x128xf32> to vector<1x24x128xf32>
    tpu.vector_store %arg13[%c0_68, %c0_69, %c0_70], %173 {strides = array<i32>} : memref<1x24x128xf32, #tpu.memory_space<vmem>>, vector<1x24x128xf32>,
    return
  }
  func.func @transform_0(%arg0: i32) -> (i32, i32, i32) {
    %c0_i32 = arith.constant 0 : i32
    %c0_i32_0 = arith.constant 0 : i32
    %c0_i32_1 = arith.constant 0 : i32
    return %arg0, %c0_i32, %c0_i32_0 : i32, i32, i32
  }
  func.func @transform_1(%arg0: i32) -> (i32, i32) {
    %c0_i32 = arith.constant 0 : i32
    %c0_i32_0 = arith.constant 0 : i32
    %c0_i32_1 = arith.constant 0 : i32
    return %c0_i32, %c0_i32_0 : i32, i32
  }
  func.func @transform_2(%arg0: i32) -> (i32, i32) {
    %c0_i32 = arith.constant 0 : i32
    %c0_i32_0 = arith.constant 0 : i32
    %c0_i32_1 = arith.constant 0 : i32
    return %c0_i32, %c0_i32_0 : i32, i32
  }
  func.func @transform_3(%arg0: i32) -> (i32, i32) {
    %c0_i32 = arith.constant 0 : i32
    %c0_i32_0 = arith.constant 0 : i32
    %c0_i32_1 = arith.constant 0 : i32
    return %c0_i32, %c0_i32_0 : i32, i32
  }
  func.func @transform_4(%arg0: i32) -> (i32, i32) {
    %c0_i32 = arith.constant 0 : i32
    %c0_i32_0 = arith.constant 0 : i32
    %c0_i32_1 = arith.constant 0 : i32
    return %c0_i32, %c0_i32_0 : i32, i32
  }
  func.func @transform_5(%arg0: i32) -> (i32, i32) {
    %c0_i32 = arith.constant 0 : i32
    %c0_i32_0 = arith.constant 0 : i32
    %c0_i32_1 = arith.constant 0 : i32
    return %c0_i32, %c0_i32_0 : i32, i32
  }
  func.func @transform_6(%arg0: i32) -> (i32, i32) {
    %c0_i32 = arith.constant 0 : i32
    %c0_i32_0 = arith.constant 0 : i32
    %c0_i32_1 = arith.constant 0 : i32
    return %c0_i32, %c0_i32_0 : i32, i32
  }
  func.func @transform_7(%arg0: i32) -> (i32, i32) {
    %c0_i32 = arith.constant 0 : i32
    %c0_i32_0 = arith.constant 0 : i32
    %c0_i32_1 = arith.constant 0 : i32
    return %c0_i32, %c0_i32_0 : i32, i32
  }
  func.func @transform_8(%arg0: i32) -> (i32, i32) {
    %c0_i32 = arith.constant 0 : i32
    %c0_i32_0 = arith.constant 0 : i32
    %c0_i32_1 = arith.constant 0 : i32
    return %c0_i32, %c0_i32_0 : i32, i32
  }
  func.func @transform_9(%arg0: i32) -> (i32, i32) {
    %c0_i32 = arith.constant 0 : i32
    %c0_i32_0 = arith.constant 0 : i32
    %c0_i32_1 = arith.constant 0 : i32
    return %c0_i32, %c0_i32_0 : i32, i32
  }
  func.func @transform_10(%arg0: i32) -> (i32, i32) {
    %c0_i32 = arith.constant 0 : i32
    %c0_i32_0 = arith.constant 0 : i32
    %c0_i32_1 = arith.constant 0 : i32
    return %c0_i32, %c0_i32_0 : i32, i32
  }
  func.func @transform_11(%arg0: i32) -> (i32, i32) {
    %c0_i32 = arith.constant 0 : i32
    %c0_i32_0 = arith.constant 0 : i32
    %c0_i32_1 = arith.constant 0 : i32
    return %c0_i32, %c0_i32_0 : i32, i32
  }
  func.func @transform_12(%arg0: i32) -> (i32, i32, i32) {
    %c0_i32 = arith.constant 0 : i32
    %c0_i32_0 = arith.constant 0 : i32
    %c0_i32_1 = arith.constant 0 : i32
    return %arg0, %c0_i32, %c0_i32_0 : i32, i32, i32
  }
}

</mosaic_0001>

<llo_original>
// kernel: tpu_custom_call.1
$region0: #{tpu_custom_call.1}
  #allocation0 [shape = 'u32[]', space=smem, size = 0x4, offset = 0x4, fixed_abs, tag = 'smem constant byte address 0x4 - core index']
  #allocation1 [shape = 'u32[144,128]{1,0:T(1,128)}', space=vmem, size = 0x12000, scoped, tag = 'internal scratch']
  %s0 = inlined_call_operand.hbm [shape: f32[8,128], index: 0, kind: input, shape index: {}]
  %s1 = inlined_call_operand.hbm [shape: f32[8,128], index: 1, kind: output, shape index: {}]
  %s2 = sld [smem:[#allocation0]]
  $region41: #{tpu_custom_call.1} parent=0
    _
  %s4 = ssub.s32 1, %s2
  %s5 = scalar_select 0, %s4, %s2
  $region1: #{tpu_custom_call.1} parent=0
    #allocation2 [shape = 'u8[4096]{0}', space=vmem, size = 0x1000, scoped, tag = 'input window, operand 0, single buffered']
    #allocation3 [shape = 's32[2]{0}', space=sflag, size = 0x8, scoped, tag = 'scoped memory for tpu_custom_call.1']
    #allocation4 [shape = 's32[2]{0}', space=sflag, size = 0x8, scoped, tag = 'scoped memory for tpu_custom_call.1']
    #allocation5 [shape = 'u8[4096]{0}', space=vmem, size = 0x1000, scoped, tag = 'output window, operand 0, single buffered']
    %6 = vsyncpa [#allocation3], 0
    %7 = vsyncpa [#allocation4], 0
    loop: start=0, step=1, limit=4
    $region2: #{tpu_custom_call.1} parent=1 // loop_pre_header
      _
    $region3: #{tpu_custom_call.1} parent=1 // loop_header
      %s9 = sphi 0, %s13
      %p10 = scmp.ge.s32.totalorder %s9, 4
      %s17 = sphi 0, %s17
      %s19 = sphi 0, %s17
      %s20 = sphi 0, %s19
      %s34 = sphi 0, %s20
      %s38 = sphi 0, %s38
      %s40 = sphi 0, %s38
      %s41 = sphi 0, %s40
      %s55 = sphi 0, %s41
    $region4: #{tpu_custom_call.1} parent=1 // loop_header_branch
      %12 = sbr.rel (%p10) target = $region8
    $region5: #{tpu_custom_call.1} parent=1 // loop_body
      %s14 = ssub.s32 %s9, 1
      %s15 = ssub.s32 %s9, 2
      %s16 = sadd.s32 %s9, 1
      %s18 = sadd.s32 %s17, 1
      %p21 = scmp.eq.s32.totalorder %s9, 1
      %p22 = scmp.ne.s32.totalorder %s17, %s19
      %p23 = scmp.eq.s32.totalorder %s9, 0
      %p24 = por %p22, %p23
      %p25 = scmp.ne.s32.totalorder %s17, %s19
      %p26 = scmp.eq.s32.totalorder %s14, 1
      %p27 = por %p25, %p26
      %p28 = scmp.ne.s32.totalorder %s19, %s20
      %p29 = scmp.eq.s32.totalorder %s14, 0
      %p30 = por %p28, %p29
      %p31 = scmp.ne.s32.totalorder %s19, %s20
      %p32 = scmp.eq.s32.totalorder %s15, 1
      %p33 = por %p31, %p32
      %p35 = scmp.ne.s32.totalorder %s20, %s34
      %p36 = scmp.eq.s32.totalorder %s15, 0
      %p37 = por %p35, %p36
      %s39 = sadd.s32 %s38, 1
      %p42 = scmp.eq.s32.totalorder %s9, 1
      %p43 = scmp.ne.s32.totalorder %s38, %s40
      %p44 = scmp.eq.s32.totalorder %s9, 0
      %p45 = por %p43, %p44
      %p46 = scmp.ne.s32.totalorder %s38, %s40
      %p47 = scmp.eq.s32.totalorder %s14, 1
      %p48 = por %p46, %p47
      %p49 = scmp.ne.s32.totalorder %s40, %s41
      %p50 = scmp.eq.s32.totalorder %s14, 0
      %p51 = por %p49, %p50
      %p52 = scmp.ne.s32.totalorder %s40, %s41
      %p53 = scmp.eq.s32.totalorder %s15, 1
      %p54 = por %p52, %p53
      %p56 = scmp.ne.s32.totalorder %s41, %s55
      %p57 = scmp.eq.s32.totalorder %s15, 0
      %p58 = por %p56, %p57
      %p59 = scmp.le.s32.totalorder 1, %s9
      %p60 = scmp.lt.s32.totalorder %s9, 3
      %p61 = pnand %p59, %p60
      %p62 = pneg %p61
      // Predicated region
      $region9: #{tpu_custom_call.1} parent=5 // pred_check
        _
      $region10: #{tpu_custom_call.1} parent=5 // pred_check_branch
        %64 = sbr.rel (%p61) target = $region12
      $region11: #{tpu_custom_call.1} parent=5 // pred_region
        %s65 = ssub.s32 %s9, 1
        // Predicated region
        $region13: #{tpu_custom_call.1} parent=11 // pred_check
          %p66 = pneg %p30
        $region14: #{tpu_custom_call.1} parent=11 // pred_check_branch
          %68 = sbr.rel (%p66) target = $region16
        $region15: #{tpu_custom_call.1} parent=11 // pred_region
          %s70 = ssub.s32 128, 128
          %71 = vsyncadd [#allocation3], %s70
          %s73 = sshll.u32 [#allocation2], 4
          %s74 = int_to_ptr.vmem [resolvable:$true] %s73
          %76 = dma.hbm_to_vmem [thread:$0]  %s0, 128, %s74, [#allocation3]
        $region16: #{tpu_custom_call.1} parent=11 // pred_fallthru
          _
      $region12: #{tpu_custom_call.1} parent=5 // pred_fallthru
        _
      %p77 = scmp.lt.s32.totalorder %s9, 2
      // Predicated region
      $region17: #{tpu_custom_call.1} parent=5 // pred_check
        %p78 = pneg %p77
      $region18: #{tpu_custom_call.1} parent=5 // pred_check_branch
        %80 = sbr.rel (%p78) target = $region20
      $region19: #{tpu_custom_call.1} parent=5 // pred_region
        _
      $region20: #{tpu_custom_call.1} parent=5 // pred_fallthru
        _
      %p81 = scmp.le.s32.totalorder 1, %s9
      %p82 = scmp.lt.s32.totalorder %s9, 3
      %p83 = pnand %p81, %p82
      %p84 = pneg %p83
      // Predicated region
      $region21: #{tpu_custom_call.1} parent=5 // pred_check
        _
      $region22: #{tpu_custom_call.1} parent=5 // pred_check_branch
        %86 = sbr.rel (%p83) target = $region24
      $region23: #{tpu_custom_call.1} parent=5 // pred_region
        %s87 = ssub.s32 %s9, 1
        // Predicated region
        $region25: #{tpu_custom_call.1} parent=23 // pred_check
          %p88 = pneg %p30
        $region26: #{tpu_custom_call.1} parent=23 // pred_check_branch
          %90 = sbr.rel (%p88) target = $region28
        $region27: #{tpu_custom_call.1} parent=23 // pred_region
          %91 = dma.done [#allocation3], 128
        $region28: #{tpu_custom_call.1} parent=23 // pred_fallthru
          _
        %p92 = pneg %p30
        %p93 = pneg %p27
        %p94 = pneg %p51
        %p95 = pneg %p48
        %v96 = vld [vmem:[#allocation2] sm:$0xff]
        %v97 = vmul.f32 %v96, 2.0
        %98 = vst [vmem:[#allocation5] sm:$0xff] %v97
        // Predicated region
        $region29: #{tpu_custom_call.1} parent=23 // pred_check
          %p99 = pneg %p48
        $region30: #{tpu_custom_call.1} parent=23 // pred_check_branch
          %101 = sbr.rel (%p99) target = $region32
        $region31: #{tpu_custom_call.1} parent=23 // pred_region
          %s103 = ssub.s32 128, 128
          %104 = vsyncadd [#allocation4], %s103
          %s106 = sshll.u32 [#allocation5], 4
          %s107 = int_to_ptr.vmem [resolvable:$true] %s106
          %109 = dma.vmem_to_hbm [thread:$0]  %s107, 128, %s1, [#allocation4]
        $region32: #{tpu_custom_call.1} parent=23 // pred_fallthru
          _
        // Predicated region
        $region33: #{tpu_custom_call.1} parent=23 // pred_check
          %p110 = pneg %p48
        $region34: #{tpu_custom_call.1} parent=23 // pred_check_branch
          %112 = sbr.rel (%p110) target = $region36
        $region35: #{tpu_custom_call.1} parent=23 // pred_region
          %113 = dma.done [#allocation4], 128
        $region36: #{tpu_custom_call.1} parent=23 // pred_fallthru
          _
      $region24: #{tpu_custom_call.1} parent=5 // pred_fallthru
        _
      %p114 = scmp.le.s32.totalorder 2, %s9
      // Predicated region
      $region37: #{tpu_custom_call.1} parent=5 // pred_check
        %p115 = pneg %p114
      $region38: #{tpu_custom_call.1} parent=5 // pred_check_branch
        %117 = sbr.rel (%p115) target = $region40
      $region39: #{tpu_custom_call.1} parent=5 // pred_region
        %s118 = ssub.s32 %s9, 2
      $region40: #{tpu_custom_call.1} parent=5 // pred_fallthru
        _
    $region6: #{tpu_custom_call.1} parent=1 // loop_footer
      %s13 = sadd.s32 1, %s9
    $region7: #{tpu_custom_call.1} parent=1 // loop_footer_branch
      %8 = sbr.rel target = $region3
    $region8: #{tpu_custom_call.1} parent=1 // loop_exit
      _
    %119 = vsyncpa [#allocation3], 1
    %s120 = scalar_lea.sflag [#allocation3], 1
    %121 = vsyncpa %s120, 1
    %122 = vsyncpa [#allocation4], 1
    %s123 = scalar_lea.sflag [#allocation4], 1
    %124 = vsyncpa %s123, 1

// kernel: vit_forward.4
$region0: #{vit_forward.4}
  #allocation0 [shape = 'u32[]', space=smem, size = 0x4, offset = 0x4, fixed_abs, tag = 'smem constant byte address 0x4 - core index']
  #allocation1 [shape = 'u32[144,128]{1,0:T(1,128)}', space=vmem, size = 0x12000, scoped, tag = 'internal scratch']
  %s0 = inlined_call_operand.vmem [shape: f32[32,48], index: 0, kind: input, shape index: {}]
  %s1 = inlined_call_operand.vmem [shape: f32[48,128], index: 1, kind: input, shape index: {}]
  %s2 = inlined_call_operand.vmem [shape: f32[1,128], index: 2, kind: input, shape index: {}]
  %s3 = inlined_call_operand.vmem [shape: f32[32,128], index: 3, kind: output, shape index: {}]
  %s4 = sld [smem:[#allocation0]]
  $region45: #{vit_forward.4} parent=0
    _
  %s6 = ssub.s32 1, %s4
  %s7 = scalar_select 0, %s6, %s4
  loop: start=0, step=1, limit=4
  $region2: #{vit_forward.4} parent=0 // loop_pre_header
    _
  $region3: #{vit_forward.4} parent=0 // loop_header
    %s9 = sphi 0, %s13
    %p10 = scmp.ge.s32.totalorder %s9, 4
    %s19 = sphi 0, %s21
    %s22 = sphi 0, %s19
    %s23 = sphi 0, %s22
    %s39 = sphi 0, %s23
    %s43 = sphi 0, %s43
    %s45 = sphi 0, %s43
    %s46 = sphi 0, %s45
    %s60 = sphi 0, %s46
    %s64 = sphi 0, %s64
    %s66 = sphi 0, %s64
    %s67 = sphi 0, %s66
    %s81 = sphi 0, %s67
    %s87 = sphi 0, %s89
    %s90 = sphi 0, %s87
    %s91 = sphi 0, %s90
    %s107 = sphi 0, %s91
  $region4: #{vit_forward.4} parent=0 // loop_header_branch
    %12 = sbr.rel (%p10) target = $region8
  $region5: #{vit_forward.4} parent=0 // loop_body
    %s14 = ssub.s32 %s9, 1
    %s15 = ssub.s32 %s9, 2
    %s16 = sadd.s32 %s9, 1
    %s17 = ssub.s32 %s9, %s16
    %p18 = scmp.eq.s32.totalorder %s17, 0
    %s20 = sadd.s32 %s19, 1
    %s21 = scalar_select %p18, %s19, %s20
    %p24 = pneg %p18
    %p25 = scmp.eq.s32.totalorder %s9, 1
    %p26 = por %p24, %p25
    %p27 = scmp.ne.s32.totalorder %s19, %s22
    %p28 = scmp.eq.s32.totalorder %s9, 0
    %p29 = por %p27, %p28
    %p30 = scmp.ne.s32.totalorder %s19, %s22
    %p31 = scmp.eq.s32.totalorder %s14, 1
    %p32 = por %p30, %p31
    %p33 = scmp.ne.s32.totalorder %s22, %s23
    %p34 = scmp.eq.s32.totalorder %s14, 0
    %p35 = por %p33, %p34
    %p36 = scmp.ne.s32.totalorder %s22, %s23
    %p37 = scmp.eq.s32.totalorder %s15, 1
    %p38 = por %p36, %p37
    %p40 = scmp.ne.s32.totalorder %s23, %s39
    %p41 = scmp.eq.s32.totalorder %s15, 0
    %p42 = por %p40, %p41
    %s44 = sadd.s32 %s43, 1
    %p47 = scmp.eq.s32.totalorder %s9, 1
    %p48 = scmp.ne.s32.totalorder %s43, %s45
    %p49 = scmp.eq.s32.totalorder %s9, 0
    %p50 = por %p48, %p49
    %p51 = scmp.ne.s32.totalorder %s43, %s45
    %p52 = scmp.eq.s32.totalorder %s14, 1
    %p53 = por %p51, %p52
    %p54 = scmp.ne.s32.totalorder %s45, %s46
    %p55 = scmp.eq.s32.totalorder %s14, 0
    %p56 = por %p54, %p55
    %p57 = scmp.ne.s32.totalorder %s45, %s46
    %p58 = scmp.eq.s32.totalorder %s15, 1
    %p59 = por %p57, %p58
    %p61 = scmp.ne.s32.totalorder %s46, %s60
    %p62 = scmp.eq.s32.totalorder %s15, 0
    %p63 = por %p61, %p62
    %s65 = sadd.s32 %s64, 1
    %p68 = scmp.eq.s32.totalorder %s9, 1
    %p69 = scmp.ne.s32.totalorder %s64, %s66
    %p70 = scmp.eq.s32.totalorder %s9, 0
    %p71 = por %p69, %p70
    %p72 = scmp.ne.s32.totalorder %s64, %s66
    %p73 = scmp.eq.s32.totalorder %s14, 1
    %p74 = por %p72, %p73
    %p75 = scmp.ne.s32.totalorder %s66, %s67
    %p76 = scmp.eq.s32.totalorder %s14, 0
    %p77 = por %p75, %p76
    %p78 = scmp.ne.s32.totalorder %s66, %s67
    %p79 = scmp.eq.s32.totalorder %s15, 1
    %p80 = por %p78, %p79
    %p82 = scmp.ne.s32.totalorder %s67, %s81
    %p83 = scmp.eq.s32.totalorder %s15, 0
    %p84 = por %p82, %p83
    %s85 = ssub.s32 %s9, %s16
    %p86 = scmp.eq.s32.totalorder %s85, 0
    %s88 = sadd.s32 %s87, 1
    %s89 = scalar_select %p86, %s87, %s88
    %p92 = pneg %p86
    %p93 = scmp.eq.s32.totalorder %s9, 1
    %p94 = por %p92, %p93
    %p95 = scmp.ne.s32.totalorder %s87, %s90
    %p96 = scmp.eq.s32.totalorder %s9, 0
    %p97 = por %p95, %p96
    %p98 = scmp.ne.s32.totalorder %s87, %s90
    %p99 = scmp.eq.s32.totalorder %s14, 1
    %p100 = por %p98, %p99
    %p101 = scmp.ne.s32.totalorder %s90, %s91
    %p102 = scmp.eq.s32.totalorder %s14, 0
    %p103 = por %p101, %p102
    %p104 = scmp.ne.s32.totalorder %s90, %s91
    %p105 = scmp.eq.s32.totalorder %s15, 1
    %p106 = por %p104, %p105
    %p108 = scmp.ne.s32.totalorder %s91, %s107
    %p109 = scmp.eq.s32.totalorder %s15, 0
    %p110 = por %p108, %p109
    %p111 = scmp.le.s32.totalorder 1, %s9
    %p112 = scmp.lt.s32.totalorder %s9, 3
    %p113 = pnand %p111, %p112
    %p114 = pneg %p113
    // Predicated region
    $region9: #{vit_forward.4} parent=5 // pred_check
      _
    $region10: #{vit_forward.4} parent=5 // pred_check_branch
      %116 = sbr.rel (%p113) target = $region12
    $region11: #{vit_forward.4} parent=5 // pred_region
      %s117 = ssub.s32 %s9, 1
      // Predicated region
      $region13: #{vit_forward.4} parent=11 // pred_check
        %p118 = pneg %p56
      $region14: #{vit_forward.4} parent=11 // pred_check_branch
        %120 = sbr.rel (%p118) target = $region16
      $region15: #{vit_forward.4} parent=11 // pred_region
        _
      $region16: #{vit_forward.4} parent=11 // pred_fallthru
        _
      // Predicated region
      $region17: #{vit_forward.4} parent=11 // pred_check
        %p121 = pneg %p77
      $region18: #{vit_forward.4} parent=11 // pred_check_branch
        %123 = sbr.rel (%p121) target = $region20
      $region19: #{vit_forward.4} parent=11 // pred_region
        _
      $region20: #{vit_forward.4} parent=11 // pred_fallthru
        _
    $region12: #{vit_forward.4} parent=5 // pred_fallthru
      _
    %p124 = scmp.lt.s32.totalorder %s9, 2
    // Predicated region
    $region21: #{vit_forward.4} parent=5 // pred_check
      %p125 = pneg %p124
    $region22: #{vit_forward.4} parent=5 // pred_check_branch
      %127 = sbr.rel (%p125) target = $region24
    $region23: #{vit_forward.4} parent=5 // pred_region
      // Predicated region
      $region25: #{vit_forward.4} parent=23 // pred_check
        %p128 = pneg %p29
      $region26: #{vit_forward.4} parent=23 // pred_check_branch
        %130 = sbr.rel (%p128) target = $region28
      $region27: #{vit_forward.4} parent=23 // pred_region
        %s131 = smul.u32 2, %s9
        %p132 = scmp.lt.s32.totalorder %s131, 3
        %s133 = scalar_select %p132, %s131, 3
        %s134 = smul.addr %s133, 8
        %s135 = scalar_lea.vmem %s0, %s134
        %s136 = smul.u32 2, %s9
      $region28: #{vit_forward.4} parent=23 // pred_fallthru
        _
    $region24: #{vit_forward.4} parent=5 // pred_fallthru
      _
    %p137 = scmp.le.s32.totalorder 1, %s9
    %p138 = scmp.lt.s32.totalorder %s9, 3
    %p139 = pnand %p137, %p138
    %p140 = pneg %p139
    // Predicated region
    $region29: #{vit_forward.4} parent=5 // pred_check
      _
    $region30: #{vit_forward.4} parent=5 // pred_check_branch
      %142 = sbr.rel (%p139) target = $region32
    $region31: #{vit_forward.4} parent=5 // pred_region
      %s143 = ssub.s32 %s9, 1
      %s144 = smul.u32 2, %s14
      %p145 = scmp.lt.s32.totalorder %s144, 3
      %s146 = scalar_select %p145, %s144, 3
      %s147 = smul.addr %s146, 8
      %s148 = scalar_lea.vmem %s0, %s147
      %p149 = pneg %p35
      %p150 = pneg %p32
      %p151 = pneg %p56
      %p152 = pneg %p53
      %p153 = pneg %p77
      %p154 = pneg %p74
      %p155 = pneg %p103
      %p156 = pneg %p100
      %s157 = smul.u32 2, %s14
      %p158 = scmp.lt.s32.totalorder %s157, 3
      %s159 = scalar_select %p158, %s157, 3
      %s160 = smul.addr %s159, 8
      %s161 = scalar_lea.vmem %s3, %s160
      %s162 = smul.u32 2, %s14
      %p163 = scmp.lt.s32.totalorder %s162, 3
      %s164 = scalar_select %p163, %s162, 3
      %s165 = smul.addr %s164, 8
      %s166 = scalar_lea.vmem %s0, %s165
      %s167 = smul.u32 2, %s14
      %s168 = smul.u32 2, %s14
      %p169 = scmp.lt.s32.totalorder %s168, 3
      %s170 = scalar_select %p169, %s168, 3
      %s171 = smul.addr %s170, 8
      %s172 = scalar_lea.vmem %s3, %s171
      %s173 = smul.u32 2, %s14
      %v174 = vld [vmem:[%s166] sm:$0xff]
      %v175 = vld [vmem:[%s166 + $0x8] sm:$0xff]
      %v176 = vld [vmem:[%s1] sm:$0xff]
      %v177 = vld [vmem:[%s1 + $0x8] sm:$0xff]
      %v178 = vld [vmem:[%s1 + $0x10] sm:$0xff]
      %v179 = vld [vmem:[%s1 + $0x18] sm:$0xff]
      %v180 = vld [vmem:[%s1 + $0x20] sm:$0xff]
      %v181 = vld [vmem:[%s1 + $0x28] sm:$0xff]
      %v182 = vld [vmem:[%s2] sm:$0x1]
      %v184 = vlaneseq
      %v185 = vshrl.u32 %v184, 7
      %v186 = vsub.s32 0, %v185
      %v187 = vrot.slane %v182, %v186
      %vm189 = vcmask 392192
      %v191 = vsel %vm189, %v174, 0
      %v194 = vsel %vm189, %v175, 0
      %196 = vmatprep.subr.mxu0 0.0
      %197 = vmatpush1.msra.mxu0 %v176
      %198 = vmatprep.subr.mxu0 0.0
      %199 = vmatpush1.msra.mxu0 %v177
      %200 = vmatprep.subr.mxu0 0.0
      %201 = vmatpush1.msra.mxu0 %v178
      %202 = vmatprep.subr.mxu0 0.0
      %203 = vmatpush1.msra.mxu0 %v179
      %204 = vmatprep.subr.mxu0 0.0
      %205 = vmatpush1.msra.mxu0 %v180
      %206 = vmatprep.subr.mxu0 0.0
      %207 = vmatpush1.msra.mxu0 %v181
      %208 = vmatprep.subr.mxu0 0.0
      %209 = vmatpush1.msra.mxu0 0.0
      %210 = vmatprep.subr.mxu0 0.0
      %211 = vmatpush1.msra.mxu0 0.0
      %212 = vmatprep.subr.mxu0 0.0
      %213 = vmatpush1.msra.mxu0 0.0
      %214 = vmatprep.subr.mxu0 0.0
      %215 = vmatpush1.msra.mxu0 0.0
      %216 = vmatprep.subr.mxu0 0.0
      %217 = vmatpush1.msra.mxu0 0.0
      %218 = vmatprep.subr.mxu0 0.0
      %219 = vmatpush1.msra.mxu0 0.0
      %220 = vmatprep.subr.mxu0 0.0
      %221 = vmatpush1.msra.mxu0 0.0
      %222 = vmatprep.subr.mxu0 0.0
      %223 = vmatpush1.msra.mxu0 0.0
      %224 = vmatprep.subr.mxu0 0.0
      %225 = vmatpush1.msra.mxu0 0.0
      %226 = vmatprep.subr.mxu0 0.0
      %227 = vmatpush1.msra.mxu0 0.0
      %228 = vmatprep.subr.mxu0 0.0
      %229 = vmatpush1.msra.mxu0 0.0
      %230 = vmatprep.subr.mxu0 0.0
      %231 = vmatpush1.msra.mxu0 0.0
      %232 = vmatprep.subr.mxu0 0.0
      %233 = vmatpush1.msra.mxu0 0.0
      %234 = vmatprep.subr.mxu0 0.0
      %235 = vmatpush1.msra.mxu0 0.0
      %236 = vmatprep.subr.mxu0 0.0
      %237 = vmatpush1.msra.mxu0 0.0
      %238 = vmatprep.subr.mxu0 0.0
      %239 = vmatpush1.msra.mxu0 0.0
      %240 = vmatprep.subr.mxu0 0.0
      %241 = vmatpush1.msra.mxu0 0.0
      %242 = vmatprep.subr.mxu0 0.0
      %243 = vmatpush1.msra.mxu0 0.0
      %244 = vmatprep.subr.mxu0 0.0
      %245 = vmatpush1.msra.mxu0 0.0
      %246 = vmatprep.subr.mxu0 0.0
      %247 = vmatpush1.msra.mxu0 0.0
      %248 = vmatprep.subr.mxu0 0.0
      %249 = vmatpush1.msra.mxu0 0.0
      %250 = vmatprep.subr.mxu0 0.0
      %251 = vmatpush1.msra.mxu0 0.0
      %252 = vmatprep.subr.mxu0 0.0
      %253 = vmatpush1.msra.mxu0 0.0
      %254 = vmatprep.subr.mxu0 0.0
      %255 = vmatpush1.msra.mxu0 0.0
      %256 = vmatprep.subr.mxu0 0.0
      %257 = vmatpush1.msra.mxu0 0.0
      %258 = vmatprep.subr.mxu0 0.0
      %259 = vmatpush1.msra.mxu0 0.0
      %260 = vmatprep.mubr.f32.mxu0 0.0
      %261 = vmatmul.mubr.f32.gmra.mrb[0].mxu0 %v191
      %v262 = vpop.f32.mrb[0].mxu0
      %v263 = vadd.f32 %v187, %v262
      %v264 = vpop.f32.mrb[0].mxu0
      %265 = vmatprep.mubr.f32.mxu0 0.0
      %266 = vmatmul.mubr.f32.gmra.mrb[0].mxu0 %v194
      %v267 = vpop.f32.mrb[0].mxu0
      %v268 = vadd.f32 %v187, %v267
      %v269 = vpop.f32.mrb[0].mxu0
      %270 = vdwg.mxu0
      %271 = vst [vmem:[%s172] sm:$0xff] %v263
      %272 = vst [vmem:[%s172 + $0x8] sm:$0xff] %v268
      %s273 = smul.u32 2, %s14
      %p274 = scmp.lt.s32.totalorder %s273, 3
      %s275 = scalar_select %p274, %s273, 3
      %s276 = smul.addr %s275, 8
      %s277 = scalar_lea.vmem %s3, %s276
      // Predicated region
      $region33: #{vit_forward.4} parent=31 // pred_check
        %p278 = pneg %p100
      $region34: #{vit_forward.4} parent=31 // pred_check_branch
        %280 = sbr.rel (%p278) target = $region36
      $region35: #{vit_forward.4} parent=31 // pred_region
        %s281 = smul.u32 2, %s14
      $region36: #{vit_forward.4} parent=31 // pred_fallthru
        _
    $region32: #{vit_forward.4} parent=5 // pred_fallthru
      _
    %p282 = scmp.le.s32.totalorder 2, %s9
    // Predicated region
    $region37: #{vit_forward.4} parent=5 // pred_check
      %p283 = pneg %p282
    $region38: #{vit_forward.4} parent=5 // pred_check_branch
      %285 = sbr.rel (%p283) target = $region40
    $region39: #{vit_forward.4} parent=5 // pred_region
      %s286 = ssub.s32 %s9, 2
      // Predicated region
      $region41: #{vit_forward.4} parent=39 // pred_check
        %p287 = pneg %p106
      $region42: #{vit_forward.4} parent=39 // pred_check_branch
        %289 = sbr.rel (%p287) target = $region44
      $region43: #{vit_forward.4} parent=39 // pred_region
        %s290 = smul.u32 2, %s15
        %p291 = scmp.lt.s32.totalorder %s290, 3
        %s292 = scalar_select %p291, %s290, 3
        %s293 = smul.addr %s292, 8
        %s294 = scalar_lea.vmem %s3, %s293
      $region44: #{vit_forward.4} parent=39 // pred_fallthru
        _
    $region40: #{vit_forward.4} parent=5 // pred_fallthru
      _
  $region6: #{vit_forward.4} parent=0 // loop_footer
    %s13 = sadd.s32 1, %s9
  $region7: #{vit_forward.4} parent=0 // loop_footer_branch
    %8 = sbr.rel target = $region3
  $region8: #{vit_forward.4} parent=0 // loop_exit
    _

// kernel: vit_forward.7
$region0: #{vit_forward.7}
  #allocation0 [shape = 'u32[]', space=smem, size = 0x4, offset = 0x4, fixed_abs, tag = 'smem constant byte address 0x4 - core index']
  #allocation1 [shape = 'u32[144,128]{1,0:T(1,128)}', space=vmem, size = 0x12000, scoped, tag = 'internal scratch']
  %s0 = inlined_call_operand.vmem [shape: f32[16,128], index: 0, kind: input, shape index: {}]
  %s1 = inlined_call_operand.vmem [shape: f32[1,128], index: 1, kind: input, shape index: {}]
  %s2 = inlined_call_operand.vmem [shape: f32[1,128], index: 2, kind: input, shape index: {}]
  %s3 = inlined_call_operand.vmem [shape: f32[128,128], index: 3, kind: input, shape index: {}]
  %s4 = inlined_call_operand.vmem [shape: f32[1,128], index: 4, kind: input, shape index: {}]
  %s5 = inlined_call_operand.vmem [shape: f32[128,128], index: 5, kind: input, shape index: {}]
  %s6 = inlined_call_operand.vmem [shape: f32[1,128], index: 6, kind: input, shape index: {}]
  %s7 = inlined_call_operand.vmem [shape: f32[16,128], index: 7, kind: output, shape index: {}]
  %s8 = sld [smem:[#allocation0]]
  $region61: #{vit_forward.7} parent=0
    _
  %s10 = ssub.s32 1, %s8
  %s11 = scalar_select 0, %s10, %s8
  loop: start=0, step=1, limit=4
  $region2: #{vit_forward.7} parent=0 // loop_pre_header
    _
  $region3: #{vit_forward.7} parent=0 // loop_header
    %s13 = sphi 0, %s17
    %p14 = scmp.ge.s32.totalorder %s13, 4
    %s23 = sphi 0, %s25
    %s26 = sphi 0, %s23
    %s27 = sphi 0, %s26
    %s43 = sphi 0, %s27
    %s47 = sphi 0, %s47
    %s49 = sphi 0, %s47
    %s50 = sphi 0, %s49
    %s64 = sphi 0, %s50
    %s68 = sphi 0, %s68
    %s70 = sphi 0, %s68
    %s71 = sphi 0, %s70
    %s85 = sphi 0, %s71
    %s89 = sphi 0, %s89
    %s91 = sphi 0, %s89
    %s92 = sphi 0, %s91
    %s106 = sphi 0, %s92
    %s110 = sphi 0, %s110
    %s112 = sphi 0, %s110
    %s113 = sphi 0, %s112
    %s127 = sphi 0, %s113
    %s131 = sphi 0, %s131
    %s133 = sphi 0, %s131
    %s134 = sphi 0, %s133
    %s148 = sphi 0, %s134
    %s152 = sphi 0, %s152
    %s154 = sphi 0, %s152
    %s155 = sphi 0, %s154
    %s169 = sphi 0, %s155
    %s175 = sphi 0, %s177
    %s178 = sphi 0, %s175
    %s179 = sphi 0, %s178
    %s195 = sphi 0, %s179
  $region4: #{vit_forward.7} parent=0 // loop_header_branch
    %16 = sbr.rel (%p14) target = $region8
  $region5: #{vit_forward.7} parent=0 // loop_body
    %s18 = ssub.s32 %s13, 1
    %s19 = ssub.s32 %s13, 2
    %s20 = sadd.s32 %s13, 1
    %s21 = ssub.s32 %s13, %s20
    %p22 = scmp.eq.s32.totalorder %s21, 0
    %s24 = sadd.s32 %s23, 1
    %s25 = scalar_select %p22, %s23, %s24
    %p28 = pneg %p22
    %p29 = scmp.eq.s32.totalorder %s13, 1
    %p30 = por %p28, %p29
    %p31 = scmp.ne.s32.totalorder %s23, %s26
    %p32 = scmp.eq.s32.totalorder %s13, 0
    %p33 = por %p31, %p32
    %p34 = scmp.ne.s32.totalorder %s23, %s26
    %p35 = scmp.eq.s32.totalorder %s18, 1
    %p36 = por %p34, %p35
    %p37 = scmp.ne.s32.totalorder %s26, %s27
    %p38 = scmp.eq.s32.totalorder %s18, 0
    %p39 = por %p37, %p38
    %p40 = scmp.ne.s32.totalorder %s26, %s27
    %p41 = scmp.eq.s32.totalorder %s19, 1
    %p42 = por %p40, %p41
    %p44 = scmp.ne.s32.totalorder %s27, %s43
    %p45 = scmp.eq.s32.totalorder %s19, 0
    %p46 = por %p44, %p45
    %s48 = sadd.s32 %s47, 1
    %p51 = scmp.eq.s32.totalorder %s13, 1
    %p52 = scmp.ne.s32.totalorder %s47, %s49
    %p53 = scmp.eq.s32.totalorder %s13, 0
    %p54 = por %p52, %p53
    %p55 = scmp.ne.s32.totalorder %s47, %s49
    %p56 = scmp.eq.s32.totalorder %s18, 1
    %p57 = por %p55, %p56
    %p58 = scmp.ne.s32.totalorder %s49, %s50
    %p59 = scmp.eq.s32.totalorder %s18, 0
    %p60 = por %p58, %p59
    %p61 = scmp.ne.s32.totalorder %s49, %s50
    %p62 = scmp.eq.s32.totalorder %s19, 1
    %p63 = por %p61, %p62
    %p65 = scmp.ne.s32.totalorder %s50, %s64
    %p66 = scmp.eq.s32.totalorder %s19, 0
    %p67 = por %p65, %p66
    %s69 = sadd.s32 %s68, 1
    %p72 = scmp.eq.s32.totalorder %s13, 1
    %p73 = scmp.ne.s32.totalorder %s68, %s70
    %p74 = scmp.eq.s32.totalorder %s13, 0
    %p75 = por %p73, %p74
    %p76 = scmp.ne.s32.totalorder %s68, %s70
    %p77 = scmp.eq.s32.totalorder %s18, 1
    %p78 = por %p76, %p77
    %p79 = scmp.ne.s32.totalorder %s70, %s71
    %p80 = scmp.eq.s32.totalorder %s18, 0
    %p81 = por %p79, %p80
    %p82 = scmp.ne.s32.totalorder %s70, %s71
    %p83 = scmp.eq.s32.totalorder %s19, 1
    %p84 = por %p82, %p83
    %p86 = scmp.ne.s32.totalorder %s71, %s85
    %p87 = scmp.eq.s32.totalorder %s19, 0
    %p88 = por %p86, %p87
    %s90 = sadd.s32 %s89, 1
    %p93 = scmp.eq.s32.totalorder %s13, 1
    %p94 = scmp.ne.s32.totalorder %s89, %s91
    %p95 = scmp.eq.s32.totalorder %s13, 0
    %p96 = por %p94, %p95
    %p97 = scmp.ne.s32.totalorder %s89, %s91
    %p98 = scmp.eq.s32.totalorder %s18, 1
    %p99 = por %p97, %p98
    %p100 = scmp.ne.s32.totalorder %s91, %s92
    %p101 = scmp.eq.s32.totalorder %s18, 0
    %p102 = por %p100, %p101
    %p103 = scmp.ne.s32.totalorder %s91, %s92
    %p104 = scmp.eq.s32.totalorder %s19, 1
    %p105 = por %p103, %p104
    %p107 = scmp.ne.s32.totalorder %s92, %s106
    %p108 = scmp.eq.s32.totalorder %s19, 0
    %p109 = por %p107, %p108
    %s111 = sadd.s32 %s110, 1
    %p114 = scmp.eq.s32.totalorder %s13, 1
    %p115 = scmp.ne.s32.totalorder %s110, %s112
    %p116 = scmp.eq.s32.totalorder %s13, 0
    %p117 = por %p115, %p116
    %p118 = scmp.ne.s32.totalorder %s110, %s112
    %p119 = scmp.eq.s32.totalorder %s18, 1
    %p120 = por %p118, %p119
    %p121 = scmp.ne.s32.totalorder %s112, %s113
    %p122 = scmp.eq.s32.totalorder %s18, 0
    %p123 = por %p121, %p122
    %p124 = scmp.ne.s32.totalorder %s112, %s113
    %p125 = scmp.eq.s32.totalorder %s19, 1
    %p126 = por %p124, %p125
    %p128 = scmp.ne.s32.totalorder %s113, %s127
    %p129 = scmp.eq.s32.totalorder %s19, 0
    %p130 = por %p128, %p129
    %s132 = sadd.s32 %s131, 1
    %p135 = scmp.eq.s32.totalorder %s13, 1
    %p136 = scmp.ne.s32.totalorder %s131, %s133
    %p137 = scmp.eq.s32.totalorder %s13, 0
    %p138 = por %p136, %p137
    %p139 = scmp.ne.s32.totalorder %s131, %s133
    %p140 = scmp.eq.s32.totalorder %s18, 1
    %p141 = por %p139, %p140
    %p142 = scmp.ne.s32.totalorder %s133, %s134
    %p143 = scmp.eq.s32.totalorder %s18, 0
    %p144 = por %p142, %p143
    %p145 = scmp.ne.s32.totalorder %s133, %s134
    %p146 = scmp.eq.s32.totalorder %s19, 1
    %p147 = por %p145, %p146
    %p149 = scmp.ne.s32.totalorder %s134, %s148
    %p150 = scmp.eq.s32.totalorder %s19, 0
    %p151 = por %p149, %p150
    %s153 = sadd.s32 %s152, 1
    %p156 = scmp.eq.s32.totalorder %s13, 1
    %p157 = scmp.ne.s32.totalorder %s152, %s154
    %p158 = scmp.eq.s32.totalorder %s13, 0
    %p159 = por %p157, %p158
    %p160 = scmp.ne.s32.totalorder %s152, %s154
    %p161 = scmp.eq.s32.totalorder %s18, 1
    %p162 = por %p160, %p161
    %p163 = scmp.ne.s32.totalorder %s154, %s155
    %p164 = scmp.eq.s32.totalorder %s18, 0
    %p165 = por %p163, %p164
    %p166 = scmp.ne.s32.totalorder %s154, %s155
    %p167 = scmp.eq.s32.totalorder %s19, 1
    %p168 = por %p166, %p167
    %p170 = scmp.ne.s32.totalorder %s155, %s169
    %p171 = scmp.eq.s32.totalorder %s19, 0
    %p172 = por %p170, %p171
    %s173 = ssub.s32 %s13, %s20
    %p174 = scmp.eq.s32.totalorder %s173, 0
    %s176 = sadd.s32 %s175, 1
    %s177 = scalar_select %p174, %s175, %s176
    %p180 = pneg %p174
    %p181 = scmp.eq.s32.totalorder %s13, 1
    %p182 = por %p180, %p181
    %p183 = scmp.ne.s32.totalorder %s175, %s178
    %p184 = scmp.eq.s32.totalorder %s13, 0
    %p185 = por %p183, %p184
    %p186 = scmp.ne.s32.totalorder %s175, %s178
    %p187 = scmp.eq.s32.totalorder %s18, 1
    %p188 = por %p186, %p187
    %p189 = scmp.ne.s32.totalorder %s178, %s179
    %p190 = scmp.eq.s32.totalorder %s18, 0
    %p191 = por %p189, %p190
    %p192 = scmp.ne.s32.totalorder %s178, %s179
    %p193 = scmp.eq.s32.totalorder %s19, 1
    %p194 = por %p192, %p193
    %p196 = scmp.ne.s32.totalorder %s179, %s195
    %p197 = scmp.eq.s32.totalorder %s19, 0
    %p198 = por %p196, %p197
    %p199 = scmp.le.s32.totalorder 1, %s13
    %p200 = scmp.lt.s32.totalorder %s13, 3
    %p201 = pnand %p199, %p200
    %p202 = pneg %p201
    // Predicated region
    $region9: #{vit_forward.7} parent=5 // pred_check
      _
    $region10: #{vit_forward.7} parent=5 // pred_check_branch
      %204 = sbr.rel (%p201) target = $region12
    $region11: #{vit_forward.7} parent=5 // pred_region
      %s205 = ssub.s32 %s13, 1
      // Predicated region
      $region13: #{vit_forward.7} parent=11 // pred_check
        %p206 = pneg %p60
      $region14: #{vit_forward.7} parent=11 // pred_check_branch
        %208 = sbr.rel (%p206) target = $region16
      $region15: #{vit_forward.7} parent=11 // pred_region
        _
      $region16: #{vit_forward.7} parent=11 // pred_fallthru
        _
      // Predicated region
      $region17: #{vit_forward.7} parent=11 // pred_check
        %p209 = pneg %p81
      $region18: #{vit_forward.7} parent=11 // pred_check_branch
        %211 = sbr.rel (%p209) target = $region20
      $region19: #{vit_forward.7} parent=11 // pred_region
        _
      $region20: #{vit_forward.7} parent=11 // pred_fallthru
        _
      // Predicated region
      $region21: #{vit_forward.7} parent=11 // pred_check
        %p212 = pneg %p102
      $region22: #{vit_forward.7} parent=11 // pred_check_branch
        %214 = sbr.rel (%p212) target = $region24
      $region23: #{vit_forward.7} parent=11 // pred_region
        _
      $region24: #{vit_forward.7} parent=11 // pred_fallthru
        _
      // Predicated region
      $region25: #{vit_forward.7} parent=11 // pred_check
        %p215 = pneg %p123
      $region26: #{vit_forward.7} parent=11 // pred_check_branch
        %217 = sbr.rel (%p215) target = $region28
      $region27: #{vit_forward.7} parent=11 // pred_region
        _
      $region28: #{vit_forward.7} parent=11 // pred_fallthru
        _
      // Predicated region
      $region29: #{vit_forward.7} parent=11 // pred_check
        %p218 = pneg %p144
      $region30: #{vit_forward.7} parent=11 // pred_check_branch
        %220 = sbr.rel (%p218) target = $region32
      $region31: #{vit_forward.7} parent=11 // pred_region
        _
      $region32: #{vit_forward.7} parent=11 // pred_fallthru
        _
      // Predicated region
      $region33: #{vit_forward.7} parent=11 // pred_check
        %p221 = pneg %p165
      $region34: #{vit_forward.7} parent=11 // pred_check_branch
        %223 = sbr.rel (%p221) target = $region36
      $region35: #{vit_forward.7} parent=11 // pred_region
        _
      $region36: #{vit_forward.7} parent=11 // pred_fallthru
        _
    $region12: #{vit_forward.7} parent=5 // pred_fallthru
      _
    %p224 = scmp.lt.s32.totalorder %s13, 2
    // Predicated region
    $region37: #{vit_forward.7} parent=5 // pred_check
      %p225 = pneg %p224
    $region38: #{vit_forward.7} parent=5 // pred_check_branch
      %227 = sbr.rel (%p225) target = $region40
    $region39: #{vit_forward.7} parent=5 // pred_region
      // Predicated region
      $region41: #{vit_forward.7} parent=39 // pred_check
        %p228 = pneg %p33
      $region42: #{vit_forward.7} parent=39 // pred_check_branch
        %230 = sbr.rel (%p228) target = $region44
      $region43: #{vit_forward.7} parent=39 // pred_region
        %p231 = scmp.lt.s32.totalorder %s13, 1
        %s232 = scalar_select %p231, %s13, 1
        %s233 = smul.addr %s232, 8
        %s234 = scalar_lea.vmem %s0, %s233
      $region44: #{vit_forward.7} parent=39 // pred_fallthru
        _
    $region40: #{vit_forward.7} parent=5 // pred_fallthru
      _
    %p235 = scmp.le.s32.totalorder 1, %s13
    %p236 = scmp.lt.s32.totalorder %s13, 3
    %p237 = pnand %p235, %p236
    %p238 = pneg %p237
    // Predicated region
    $region45: #{vit_forward.7} parent=5 // pred_check
      _
    $region46: #{vit_forward.7} parent=5 // pred_check_branch
      %240 = sbr.rel (%p237) target = $region48
    $region47: #{vit_forward.7} parent=5 // pred_region
      %s241 = ssub.s32 %s13, 1
      %p242 = scmp.lt.s32.totalorder %s18, 1
      %s243 = scalar_select %p242, %s18, 1
      %s244 = smul.addr %s243, 8
      %s245 = scalar_lea.vmem %s0, %s244
      %p246 = pneg %p39
      %p247 = pneg %p36
      %p248 = pneg %p60
      %p249 = pneg %p57
      %p250 = pneg %p81
      %p251 = pneg %p78
      %p252 = pneg %p102
      %p253 = pneg %p99
      %p254 = pneg %p123
      %p255 = pneg %p120
      %p256 = pneg %p144
      %p257 = pneg %p141
      %p258 = pneg %p165
      %p259 = pneg %p162
      %p260 = pneg %p191
      %p261 = pneg %p188
      %p262 = scmp.lt.s32.totalorder %s18, 1
      %s263 = scalar_select %p262, %s18, 1
      %s264 = smul.addr %s263, 8
      %s265 = scalar_lea.vmem %s7, %s264
      %p266 = scmp.lt.s32.totalorder %s18, 1
      %s267 = scalar_select %p266, %s18, 1
      %s268 = smul.addr %s267, 8
      %s269 = scalar_lea.vmem %s0, %s268
      %p270 = scmp.lt.s32.totalorder %s18, 1
      %s271 = scalar_select %p270, %s18, 1
      %s272 = smul.addr %s271, 8
      %s273 = scalar_lea.vmem %s7, %s272
      %v274 = vld [vmem:[%s269] sm:$0xff]
      %v275 = vlaneseq
      %v276 = vand.u32 %v275, 127
      %vm277 = vcmp.lt.s32.totalorder %v276, 32
      %278 = vadd.xlane.f32.xlu0 %v274
      %v279 = vpop.xlane.xlu0 %278
      %v280 = vmul.f32 %v279, 0.03125
      %v281 = vsub.f32 %v274, %v280
      %v282 = vsel %vm277, 1, 0
      %vm283 = vcmp.eq.s32.totalorder %v282, 1
      %v284 = vsel %vm283, %v281, 0.0
      %v285 = vmul.f32 %v284, %v284
      %286 = vadd.xlane.f32.xlu0 %v285
      %v287 = vpop.xlane.xlu0 %286
      %v288 = vmul.f32 %v287, 0.03125
      %v289 = vadd.f32 %v288, 1e-05
      %v290 = vrsqrt.pop %v289
      %v291 = vmul.f32 %v284, %v290
      %v292 = vld [vmem:[%s1] sm:$0x1]
      %v294 = vlaneseq
      %v295 = vshrl.u32 %v294, 7
      %v296 = vsub.s32 0, %v295
      %v297 = vrot.slane %v292, %v296
      %v299 = vmul.f32 %v291, %v297
      %v300 = vld [vmem:[%s2] sm:$0x1]
      %v302 = vlaneseq
      %v303 = vshrl.u32 %v302, 7
      %v304 = vsub.s32 0, %v303
      %v305 = vrot.slane %v300, %v304
      %v307 = vadd.f32 %v299, %v305
      %v308 = vmax.f32 %v307, 0.0
      %v309 = vld [vmem:[%s3] sm:$0xff]
      %v310 = vld [vmem:[%s3 + $0x8] sm:$0xff]
      %v311 = vld [vmem:[%s3 + $0x10] sm:$0xff]
      %v312 = vld [vmem:[%s3 + $0x18] sm:$0xff]
      %v313 = vld [vmem:[%s3 + $0x20] sm:$0xff]
      %v314 = vld [vmem:[%s3 + $0x28] sm:$0xff]
      %v315 = vld [vmem:[%s3 + $0x30] sm:$0xff]
      %v316 = vld [vmem:[%s3 + $0x38] sm:$0xff]
      %v317 = vld [vmem:[%s3 + $0x40] sm:$0xff]
      %v318 = vld [vmem:[%s3 + $0x48] sm:$0xff]
      %v319 = vld [vmem:[%s3 + $0x50] sm:$0xff]
      %v320 = vld [vmem:[%s3 + $0x58] sm:$0xff]
      %v321 = vld [vmem:[%s3 + $0x60] sm:$0xff]
      %v322 = vld [vmem:[%s3 + $0x68] sm:$0xff]
      %v323 = vld [vmem:[%s3 + $0x70] sm:$0xff]
      %v324 = vld [vmem:[%s3 + $0x78] sm:$0xff]
      %v325 = vld [vmem:[%s4] sm:$0x1]
      %v327 = vlaneseq
      %v328 = vshrl.u32 %v327, 7
      %v329 = vsub.s32 0, %v328
      %v330 = vrot.slane %v325, %v329
      %332 = vmatprep.subr.mxu0 0.0
      %333 = vmatpush1.msra.mxu0 %v309
      %334 = vmatprep.subr.mxu0 0.0
      %335 = vmatpush1.msra.mxu0 %v310
      %336 = vmatprep.subr.mxu0 0.0
      %337 = vmatpush1.msra.mxu0 %v311
      %338 = vmatprep.subr.mxu0 0.0
      %339 = vmatpush1.msra.mxu0 %v312
      %340 = vmatprep.subr.mxu0 0.0
      %341 = vmatpush1.msra.mxu0 %v313
      %342 = vmatprep.subr.mxu0 0.0
      %343 = vmatpush1.msra.mxu0 %v314
      %344 = vmatprep.subr.mxu0 0.0
      %345 = vmatpush1.msra.mxu0 %v315
      %346 = vmatprep.subr.mxu0 0.0
      %347 = vmatpush1.msra.mxu0 %v316
      %348 = vmatprep.subr.mxu0 0.0
      %349 = vmatpush1.msra.mxu0 %v317
      %350 = vmatprep.subr.mxu0 0.0
      %351 = vmatpush1.msra.mxu0 %v318
      %352 = vmatprep.subr.mxu0 0.0
      %353 = vmatpush1.msra.mxu0 %v319
      %354 = vmatprep.subr.mxu0 0.0
      %355 = vmatpush1.msra.mxu0 %v320
      %356 = vmatprep.subr.mxu0 0.0
      %357 = vmatpush1.msra.mxu0 %v321
      %358 = vmatprep.subr.mxu0 0.0
      %359 = vmatpush1.msra.mxu0 %v322
      %360 = vmatprep.subr.mxu0 0.0
      %361 = vmatpush1.msra.mxu0 %v323
      %362 = vmatprep.subr.mxu0 0.0
      %363 = vmatpush1.msra.mxu0 %v324
      %364 = vmatprep.subr.mxu0 0.0
      %365 = vmatpush1.msra.mxu0 0.0
      %366 = vmatprep.subr.mxu0 0.0
      %367 = vmatpush1.msra.mxu0 0.0
      %368 = vmatprep.subr.mxu0 0.0
      %369 = vmatpush1.msra.mxu0 0.0
      %370 = vmatprep.subr.mxu0 0.0
      %371 = vmatpush1.msra.mxu0 0.0
      %372 = vmatprep.subr.mxu0 0.0
      %373 = vmatpush1.msra.mxu0 0.0
      %374 = vmatprep.subr.mxu0 0.0
      %375 = vmatpush1.msra.mxu0 0.0
      %376 = vmatprep.subr.mxu0 0.0
      %377 = vmatpush1.msra.mxu0 0.0
      %378 = vmatprep.subr.mxu0 0.0
      %379 = vmatpush1.msra.mxu0 0.0
      %380 = vmatprep.subr.mxu0 0.0
      %381 = vmatpush1.msra.mxu0 0.0
      %382 = vmatprep.subr.mxu0 0.0
      %383 = vmatpush1.msra.mxu0 0.0
      %384 = vmatprep.subr.mxu0 0.0
      %385 = vmatpush1.msra.mxu0 0.0
      %386 = vmatprep.subr.mxu0 0.0
      %387 = vmatpush1.msra.mxu0 0.0
      %388 = vmatprep.subr.mxu0 0.0
      %389 = vmatpush1.msra.mxu0 0.0
      %390 = vmatprep.subr.mxu0 0.0
      %391 = vmatpush1.msra.mxu0 0.0
      %392 = vmatprep.subr.mxu0 0.0
      %393 = vmatpush1.msra.mxu0 0.0
      %394 = vmatprep.subr.mxu0 0.0
      %395 = vmatpush1.msra.mxu0 0.0
      %396 = vmatprep.mubr.f32.mxu0 0.0
      %397 = vmatmul.mubr.f32.gmra.mrb[0].mxu0 %v308
      %v398 = vpop.f32.mrb[0].mxu0
      %v399 = vadd.f32 %v330, %v398
      %v400 = vpop.f32.mrb[0].mxu0
      %401 = vdwg.mxu0
      %v402 = vmax.f32 %v399, 0.0
      %v403 = vld [vmem:[%s5] sm:$0xff]
      %v404 = vld [vmem:[%s5 + $0x8] sm:$0xff]
      %v405 = vld [vmem:[%s5 + $0x10] sm:$0xff]
      %v406 = vld [vmem:[%s5 + $0x18] sm:$0xff]
      %v407 = vld [vmem:[%s5 + $0x20] sm:$0xff]
      %v408 = vld [vmem:[%s5 + $0x28] sm:$0xff]
      %v409 = vld [vmem:[%s5 + $0x30] sm:$0xff]
      %v410 = vld [vmem:[%s5 + $0x38] sm:$0xff]
      %v411 = vld [vmem:[%s5 + $0x40] sm:$0xff]
      %v412 = vld [vmem:[%s5 + $0x48] sm:$0xff]
      %v413 = vld [vmem:[%s5 + $0x50] sm:$0xff]
      %v414 = vld [vmem:[%s5 + $0x58] sm:$0xff]
      %v415 = vld [vmem:[%s5 + $0x60] sm:$0xff]
      %v416 = vld [vmem:[%s5 + $0x68] sm:$0xff]
      %v417 = vld [vmem:[%s5 + $0x70] sm:$0xff]
      %v418 = vld [vmem:[%s5 + $0x78] sm:$0xff]
      %v419 = vld [vmem:[%s6] sm:$0x1]
      %v421 = vlaneseq
      %v422 = vshrl.u32 %v421, 7
      %v423 = vsub.s32 0, %v422
      %v424 = vrot.slane %v419, %v423
      %426 = vmatprep.subr.mxu0 0.0
      %427 = vmatpush1.msra.mxu0 %v403
      %428 = vmatprep.subr.mxu0 0.0
      %429 = vmatpush1.msra.mxu0 %v404
      %430 = vmatprep.subr.mxu0 0.0
      %431 = vmatpush1.msra.mxu0 %v405
      %432 = vmatprep.subr.mxu0 0.0
      %433 = vmatpush1.msra.mxu0 %v406
      %434 = vmatprep.subr.mxu0 0.0
      %435 = vmatpush1.msra.mxu0 %v407
      %436 = vmatprep.subr.mxu0 0.0
      %437 = vmatpush1.msra.mxu0 %v408
      %438 = vmatprep.subr.mxu0 0.0
      %439 = vmatpush1.msra.mxu0 %v409
      %440 = vmatprep.subr.mxu0 0.0
      %441 = vmatpush1.msra.mxu0 %v410
      %442 = vmatprep.subr.mxu0 0.0
      %443 = vmatpush1.msra.mxu0 %v411
      %444 = vmatprep.subr.mxu0 0.0
      %445 = vmatpush1.msra.mxu0 %v412
      %446 = vmatprep.subr.mxu0 0.0
      %447 = vmatpush1.msra.mxu0 %v413
      %448 = vmatprep.subr.mxu0 0.0
      %449 = vmatpush1.msra.mxu0 %v414
      %450 = vmatprep.subr.mxu0 0.0
      %451 = vmatpush1.msra.mxu0 %v415
      %452 = vmatprep.subr.mxu0 0.0
      %453 = vmatpush1.msra.mxu0 %v416
      %454 = vmatprep.subr.mxu0 0.0
      %455 = vmatpush1.msra.mxu0 %v417
      %456 = vmatprep.subr.mxu0 0.0
      %457 = vmatpush1.msra.mxu0 %v418
      %458 = vmatprep.subr.mxu0 0.0
      %459 = vmatpush1.msra.mxu0 0.0
      %460 = vmatprep.subr.mxu0 0.0
      %461 = vmatpush1.msra.mxu0 0.0
      %462 = vmatprep.subr.mxu0 0.0
      %463 = vmatpush1.msra.mxu0 0.0
      %464 = vmatprep.subr.mxu0 0.0
      %465 = vmatpush1.msra.mxu0 0.0
      %466 = vmatprep.subr.mxu0 0.0
      %467 = vmatpush1.msra.mxu0 0.0
      %468 = vmatprep.subr.mxu0 0.0
      %469 = vmatpush1.msra.mxu0 0.0
      %470 = vmatprep.subr.mxu0 0.0
      %471 = vmatpush1.msra.mxu0 0.0
      %472 = vmatprep.subr.mxu0 0.0
      %473 = vmatpush1.msra.mxu0 0.0
      %474 = vmatprep.subr.mxu0 0.0
      %475 = vmatpush1.msra.mxu0 0.0
      %476 = vmatprep.subr.mxu0 0.0
      %477 = vmatpush1.msra.mxu0 0.0
      %478 = vmatprep.subr.mxu0 0.0
      %479 = vmatpush1.msra.mxu0 0.0
      %480 = vmatprep.subr.mxu0 0.0
      %481 = vmatpush1.msra.mxu0 0.0
      %482 = vmatprep.subr.mxu0 0.0
      %483 = vmatpush1.msra.mxu0 0.0
      %484 = vmatprep.subr.mxu0 0.0
      %485 = vmatpush1.msra.mxu0 0.0
      %486 = vmatprep.subr.mxu0 0.0
      %487 = vmatpush1.msra.mxu0 0.0
      %488 = vmatprep.subr.mxu0 0.0
      %489 = vmatpush1.msra.mxu0 0.0
      %490 = vmatprep.mubr.f32.mxu0 0.0
      %491 = vmatmul.mubr.f32.gmra.mrb[0].mxu0 %v402
      %v492 = vpop.f32.mrb[0].mxu0
      %v493 = vadd.f32 %v424, %v492
      %v494 = vpop.f32.mrb[0].mxu0
      %495 = vdwg.mxu0
      %496 = vst [vmem:[%s273] sm:$0xff] %v493
      %p497 = scmp.lt.s32.totalorder %s18, 1
      %s498 = scalar_select %p497, %s18, 1
      %s499 = smul.addr %s498, 8
      %s500 = scalar_lea.vmem %s7, %s499
      // Predicated region
      $region49: #{vit_forward.7} parent=47 // pred_check
        %p501 = pneg %p188
      $region50: #{vit_forward.7} parent=47 // pred_check_branch
        %503 = sbr.rel (%p501) target = $region52
      $region51: #{vit_forward.7} parent=47 // pred_region
        _
      $region52: #{vit_forward.7} parent=47 // pred_fallthru
        _
    $region48: #{vit_forward.7} parent=5 // pred_fallthru
      _
    %p504 = scmp.le.s32.totalorder 2, %s13
    // Predicated region
    $region53: #{vit_forward.7} parent=5 // pred_check
      %p505 = pneg %p504
    $region54: #{vit_forward.7} parent=5 // pred_check_branch
      %507 = sbr.rel (%p505) target = $region56
    $region55: #{vit_forward.7} parent=5 // pred_region
      %s508 = ssub.s32 %s13, 2
      // Predicated region
      $region57: #{vit_forward.7} parent=55 // pred_check
        %p509 = pneg %p194
      $region58: #{vit_forward.7} parent=55 // pred_check_branch
        %511 = sbr.rel (%p509) target = $region60
      $region59: #{vit_forward.7} parent=55 // pred_region
        %p512 = scmp.lt.s32.totalorder %s19, 1
        %s513 = scalar_select %p512, %s19, 1
        %s514 = smul.addr %s513, 8
        %s515 = scalar_lea.vmem %s7, %s514
      $region60: #{vit_forward.7} parent=55 // pred_fallthru
        _
    $region56: #{vit_forward.7} parent=5 // pred_fallthru
      _
  $region6: #{vit_forward.7} parent=0 // loop_footer
    %s17 = sadd.s32 1, %s13
  $region7: #{vit_forward.7} parent=0 // loop_footer_branch
    %12 = sbr.rel target = $region3
  $region8: #{vit_forward.7} parent=0 // loop_exit
    _

// kernel: vit_forward.5
$region0: #{vit_forward.5}
  #allocation0 [shape = 'u32[]', space=smem, size = 0x4, offset = 0x4, fixed_abs, tag = 'smem constant byte address 0x4 - core index']
  #allocation1 [shape = 'u32[144,128]{1,0:T(1,128)}', space=vmem, size = 0x12000, scoped, tag = 'internal scratch']
  %s0 = inlined_call_operand.vmem [shape: f32[2,24,128], index: 0, kind: input, shape index: {}]
  %s1 = inlined_call_operand.vmem [shape: f32[1,128], index: 1, kind: input, shape index: {}]
  %s2 = inlined_call_operand.vmem [shape: f32[1,128], index: 2, kind: input, shape index: {}]
  %s3 = inlined_call_operand.vmem [shape: f32[128,96], index: 3, kind: input, shape index: {}]
  %s4 = inlined_call_operand.vmem [shape: f32[32,128], index: 4, kind: input, shape index: {}]
  %s5 = inlined_call_operand.vmem [shape: f32[1,128], index: 5, kind: input, shape index: {}]
  %s6 = inlined_call_operand.vmem [shape: f32[1,128], index: 6, kind: input, shape index: {}]
  %s7 = inlined_call_operand.vmem [shape: f32[1,128], index: 7, kind: input, shape index: {}]
  %s8 = inlined_call_operand.vmem [shape: f32[128,64], index: 8, kind: input, shape index: {}]
  %s9 = inlined_call_operand.vmem [shape: f32[1,64], index: 9, kind: input, shape index: {}]
  %s10 = inlined_call_operand.vmem [shape: f32[64,128], index: 10, kind: input, shape index: {}]
  %s11 = inlined_call_operand.vmem [shape: f32[1,128], index: 11, kind: input, shape index: {}]
  %s12 = inlined_call_operand.vmem [shape: f32[2,24,128], index: 12, kind: output, shape index: {}]
  %s13 = sld [smem:[#allocation0]]
  $region81: #{vit_forward.5} parent=0
    _
  %s15 = ssub.s32 1, %s13
  %s16 = scalar_select 0, %s15, %s13
  loop: start=0, step=1, limit=4
  $region2: #{vit_forward.5} parent=0 // loop_pre_header
    _
  $region3: #{vit_forward.5} parent=0 // loop_header
    %s18 = sphi 0, %s22
    %p19 = scmp.ge.s32.totalorder %s18, 4
    %s28 = sphi 0, %s30
    %s31 = sphi 0, %s28
    %s32 = sphi 0, %s31
    %s48 = sphi 0, %s32
    %s52 = sphi 0, %s52
    %s54 = sphi 0, %s52
    %s55 = sphi 0, %s54
    %s69 = sphi 0, %s55
    %s73 = sphi 0, %s73
    %s75 = sphi 0, %s73
    %s76 = sphi 0, %s75
    %s90 = sphi 0, %s76
    %s94 = sphi 0, %s94
    %s96 = sphi 0, %s94
    %s97 = sphi 0, %s96
    %s111 = sphi 0, %s97
    %s115 = sphi 0, %s115
    %s117 = sphi 0, %s115
    %s118 = sphi 0, %s117
    %s132 = sphi 0, %s118
    %s136 = sphi 0, %s136
    %s138 = sphi 0, %s136
    %s139 = sphi 0, %s138
    %s153 = sphi 0, %s139
    %s157 = sphi 0, %s157
    %s159 = sphi 0, %s157
    %s160 = sphi 0, %s159
    %s174 = sphi 0, %s160
    %s178 = sphi 0, %s178
    %s180 = sphi 0, %s178
    %s181 = sphi 0, %s180
    %s195 = sphi 0, %s181
    %s199 = sphi 0, %s199
    %s201 = sphi 0, %s199
    %s202 = sphi 0, %s201
    %s216 = sphi 0, %s202
    %s220 = sphi 0, %s220
    %s222 = sphi 0, %s220
    %s223 = sphi 0, %s222
    %s237 = sphi 0, %s223
    %s241 = sphi 0, %s241
    %s243 = sphi 0, %s241
    %s244 = sphi 0, %s243
    %s258 = sphi 0, %s244
    %s262 = sphi 0, %s262
    %s264 = sphi 0, %s262
    %s265 = sphi 0, %s264
    %s279 = sphi 0, %s265
    %s285 = sphi 0, %s287
    %s288 = sphi 0, %s285
    %s289 = sphi 0, %s288
    %s305 = sphi 0, %s289
  $region4: #{vit_forward.5} parent=0 // loop_header_branch
    %21 = sbr.rel (%p19) target = $region8
  $region5: #{vit_forward.5} parent=0 // loop_body
    %s23 = ssub.s32 %s18, 1
    %s24 = ssub.s32 %s18, 2
    %s25 = sadd.s32 %s18, 1
    %s26 = ssub.s32 %s18, %s25
    %p27 = scmp.eq.s32.totalorder %s26, 0
    %s29 = sadd.s32 %s28, 1
    %s30 = scalar_select %p27, %s28, %s29
    %p33 = pneg %p27
    %p34 = scmp.eq.s32.totalorder %s18, 1
    %p35 = por %p33, %p34
    %p36 = scmp.ne.s32.totalorder %s28, %s31
    %p37 = scmp.eq.s32.totalorder %s18, 0
    %p38 = por %p36, %p37
    %p39 = scmp.ne.s32.totalorder %s28, %s31
    %p40 = scmp.eq.s32.totalorder %s23, 1
    %p41 = por %p39, %p40
    %p42 = scmp.ne.s32.totalorder %s31, %s32
    %p43 = scmp.eq.s32.totalorder %s23, 0
    %p44 = por %p42, %p43
    %p45 = scmp.ne.s32.totalorder %s31, %s32
    %p46 = scmp.eq.s32.totalorder %s24, 1
    %p47 = por %p45, %p46
    %p49 = scmp.ne.s32.totalorder %s32, %s48
    %p50 = scmp.eq.s32.totalorder %s24, 0
    %p51 = por %p49, %p50
    %s53 = sadd.s32 %s52, 1
    %p56 = scmp.eq.s32.totalorder %s18, 1
    %p57 = scmp.ne.s32.totalorder %s52, %s54
    %p58 = scmp.eq.s32.totalorder %s18, 0
    %p59 = por %p57, %p58
    %p60 = scmp.ne.s32.totalorder %s52, %s54
    %p61 = scmp.eq.s32.totalorder %s23, 1
    %p62 = por %p60, %p61
    %p63 = scmp.ne.s32.totalorder %s54, %s55
    %p64 = scmp.eq.s32.totalorder %s23, 0
    %p65 = por %p63, %p64
    %p66 = scmp.ne.s32.totalorder %s54, %s55
    %p67 = scmp.eq.s32.totalorder %s24, 1
    %p68 = por %p66, %p67
    %p70 = scmp.ne.s32.totalorder %s55, %s69
    %p71 = scmp.eq.s32.totalorder %s24, 0
    %p72 = por %p70, %p71
    %s74 = sadd.s32 %s73, 1
    %p77 = scmp.eq.s32.totalorder %s18, 1
    %p78 = scmp.ne.s32.totalorder %s73, %s75
    %p79 = scmp.eq.s32.totalorder %s18, 0
    %p80 = por %p78, %p79
    %p81 = scmp.ne.s32.totalorder %s73, %s75
    %p82 = scmp.eq.s32.totalorder %s23, 1
    %p83 = por %p81, %p82
    %p84 = scmp.ne.s32.totalorder %s75, %s76
    %p85 = scmp.eq.s32.totalorder %s23, 0
    %p86 = por %p84, %p85
    %p87 = scmp.ne.s32.totalorder %s75, %s76
    %p88 = scmp.eq.s32.totalorder %s24, 1
    %p89 = por %p87, %p88
    %p91 = scmp.ne.s32.totalorder %s76, %s90
    %p92 = scmp.eq.s32.totalorder %s24, 0
    %p93 = por %p91, %p92
    %s95 = sadd.s32 %s94, 1
    %p98 = scmp.eq.s32.totalorder %s18, 1
    %p99 = scmp.ne.s32.totalorder %s94, %s96
    %p100 = scmp.eq.s32.totalorder %s18, 0
    %p101 = por %p99, %p100
    %p102 = scmp.ne.s32.totalorder %s94, %s96
    %p103 = scmp.eq.s32.totalorder %s23, 1
    %p104 = por %p102, %p103
    %p105 = scmp.ne.s32.totalorder %s96, %s97
    %p106 = scmp.eq.s32.totalorder %s23, 0
    %p107 = por %p105, %p106
    %p108 = scmp.ne.s32.totalorder %s96, %s97
    %p109 = scmp.eq.s32.totalorder %s24, 1
    %p110 = por %p108, %p109
    %p112 = scmp.ne.s32.totalorder %s97, %s111
    %p113 = scmp.eq.s32.totalorder %s24, 0
    %p114 = por %p112, %p113
    %s116 = sadd.s32 %s115, 1
    %p119 = scmp.eq.s32.totalorder %s18, 1
    %p120 = scmp.ne.s32.totalorder %s115, %s117
    %p121 = scmp.eq.s32.totalorder %s18, 0
    %p122 = por %p120, %p121
    %p123 = scmp.ne.s32.totalorder %s115, %s117
    %p124 = scmp.eq.s32.totalorder %s23, 1
    %p125 = por %p123, %p124
    %p126 = scmp.ne.s32.totalorder %s117, %s118
    %p127 = scmp.eq.s32.totalorder %s23, 0
    %p128 = por %p126, %p127
    %p129 = scmp.ne.s32.totalorder %s117, %s118
    %p130 = scmp.eq.s32.totalorder %s24, 1
    %p131 = por %p129, %p130
    %p133 = scmp.ne.s32.totalorder %s118, %s132
    %p134 = scmp.eq.s32.totalorder %s24, 0
    %p135 = por %p133, %p134
    %s137 = sadd.s32 %s136, 1
    %p140 = scmp.eq.s32.totalorder %s18, 1
    %p141 = scmp.ne.s32.totalorder %s136, %s138
    %p142 = scmp.eq.s32.totalorder %s18, 0
    %p143 = por %p141, %p142
    %p144 = scmp.ne.s32.totalorder %s136, %s138
    %p145 = scmp.eq.s32.totalorder %s23, 1
    %p146 = por %p144, %p145
    %p147 = scmp.ne.s32.totalorder %s138, %s139
    %p148 = scmp.eq.s32.totalorder %s23, 0
    %p149 = por %p147, %p148
    %p150 = scmp.ne.s32.totalorder %s138, %s139
    %p151 = scmp.eq.s32.totalorder %s24, 1
    %p152 = por %p150, %p151
    %p154 = scmp.ne.s32.totalorder %s139, %s153
    %p155 = scmp.eq.s32.totalorder %s24, 0
    %p156 = por %p154, %p155
    %s158 = sadd.s32 %s157, 1
    %p161 = scmp.eq.s32.totalorder %s18, 1
    %p162 = scmp.ne.s32.totalorder %s157, %s159
    %p163 = scmp.eq.s32.totalorder %s18, 0
    %p164 = por %p162, %p163
    %p165 = scmp.ne.s32.totalorder %s157, %s159
    %p166 = scmp.eq.s32.totalorder %s23, 1
    %p167 = por %p165, %p166
    %p168 = scmp.ne.s32.totalorder %s159, %s160
    %p169 = scmp.eq.s32.totalorder %s23, 0
    %p170 = por %p168, %p169
    %p171 = scmp.ne.s32.totalorder %s159, %s160
    %p172 = scmp.eq.s32.totalorder %s24, 1
    %p173 = por %p171, %p172
    %p175 = scmp.ne.s32.totalorder %s160, %s174
    %p176 = scmp.eq.s32.totalorder %s24, 0
    %p177 = por %p175, %p176
    %s179 = sadd.s32 %s178, 1
    %p182 = scmp.eq.s32.totalorder %s18, 1
    %p183 = scmp.ne.s32.totalorder %s178, %s180
    %p184 = scmp.eq.s32.totalorder %s18, 0
    %p185 = por %p183, %p184
    %p186 = scmp.ne.s32.totalorder %s178, %s180
    %p187 = scmp.eq.s32.totalorder %s23, 1
    %p188 = por %p186, %p187
    %p189 = scmp.ne.s32.totalorder %s180, %s181
    %p190 = scmp.eq.s32.totalorder %s23, 0
    %p191 = por %p189, %p190
    %p192 = scmp.ne.s32.totalorder %s180, %s181
    %p193 = scmp.eq.s32.totalorder %s24, 1
    %p194 = por %p192, %p193
    %p196 = scmp.ne.s32.totalorder %s181, %s195
    %p197 = scmp.eq.s32.totalorder %s24, 0
    %p198 = por %p196, %p197
    %s200 = sadd.s32 %s199, 1
    %p203 = scmp.eq.s32.totalorder %s18, 1
    %p204 = scmp.ne.s32.totalorder %s199, %s201
    %p205 = scmp.eq.s32.totalorder %s18, 0
    %p206 = por %p204, %p205
    %p207 = scmp.ne.s32.totalorder %s199, %s201
    %p208 = scmp.eq.s32.totalorder %s23, 1
    %p209 = por %p207, %p208
    %p210 = scmp.ne.s32.totalorder %s201, %s202
    %p211 = scmp.eq.s32.totalorder %s23, 0
    %p212 = por %p210, %p211
    %p213 = scmp.ne.s32.totalorder %s201, %s202
    %p214 = scmp.eq.s32.totalorder %s24, 1
    %p215 = por %p213, %p214
    %p217 = scmp.ne.s32.totalorder %s202, %s216
    %p218 = scmp.eq.s32.totalorder %s24, 0
    %p219 = por %p217, %p218
    %s221 = sadd.s32 %s220, 1
    %p224 = scmp.eq.s32.totalorder %s18, 1
    %p225 = scmp.ne.s32.totalorder %s220, %s222
    %p226 = scmp.eq.s32.totalorder %s18, 0
    %p227 = por %p225, %p226
    %p228 = scmp.ne.s32.totalorder %s220, %s222
    %p229 = scmp.eq.s32.totalorder %s23, 1
    %p230 = por %p228, %p229
    %p231 = scmp.ne.s32.totalorder %s222, %s223
    %p232 = scmp.eq.s32.totalorder %s23, 0
    %p233 = por %p231, %p232
    %p234 = scmp.ne.s32.totalorder %s222, %s223
    %p235 = scmp.eq.s32.totalorder %s24, 1
    %p236 = por %p234, %p235
    %p238 = scmp.ne.s32.totalorder %s223, %s237
    %p239 = scmp.eq.s32.totalorder %s24, 0
    %p240 = por %p238, %p239
    %s242 = sadd.s32 %s241, 1
    %p245 = scmp.eq.s32.totalorder %s18, 1
    %p246 = scmp.ne.s32.totalorder %s241, %s243
    %p247 = scmp.eq.s32.totalorder %s18, 0
    %p248 = por %p246, %p247
    %p249 = scmp.ne.s32.totalorder %s241, %s243
    %p250 = scmp.eq.s32.totalorder %s23, 1
    %p251 = por %p249, %p250
    %p252 = scmp.ne.s32.totalorder %s243, %s244
    %p253 = scmp.eq.s32.totalorder %s23, 0
    %p254 = por %p252, %p253
    %p255 = scmp.ne.s32.totalorder %s243, %s244
    %p256 = scmp.eq.s32.totalorder %s24, 1
    %p257 = por %p255, %p256
    %p259 = scmp.ne.s32.totalorder %s244, %s258
    %p260 = scmp.eq.s32.totalorder %s24, 0
    %p261 = por %p259, %p260
    %s263 = sadd.s32 %s262, 1
    %p266 = scmp.eq.s32.totalorder %s18, 1
    %p267 = scmp.ne.s32.totalorder %s262, %s264
    %p268 = scmp.eq.s32.totalorder %s18, 0
    %p269 = por %p267, %p268
    %p270 = scmp.ne.s32.totalorder %s262, %s264
    %p271 = scmp.eq.s32.totalorder %s23, 1
    %p272 = por %p270, %p271
    %p273 = scmp.ne.s32.totalorder %s264, %s265
    %p274 = scmp.eq.s32.totalorder %s23, 0
    %p275 = por %p273, %p274
    %p276 = scmp.ne.s32.totalorder %s264, %s265
    %p277 = scmp.eq.s32.totalorder %s24, 1
    %p278 = por %p276, %p277
    %p280 = scmp.ne.s32.totalorder %s265, %s279
    %p281 = scmp.eq.s32.totalorder %s24, 0
    %p282 = por %p280, %p281
    %s283 = ssub.s32 %s18, %s25
    %p284 = scmp.eq.s32.totalorder %s283, 0
    %s286 = sadd.s32 %s285, 1
    %s287 = scalar_select %p284, %s285, %s286
    %p290 = pneg %p284
    %p291 = scmp.eq.s32.totalorder %s18, 1
    %p292 = por %p290, %p291
    %p293 = scmp.ne.s32.totalorder %s285, %s288
    %p294 = scmp.eq.s32.totalorder %s18, 0
    %p295 = por %p293, %p294
    %p296 = scmp.ne.s32.totalorder %s285, %s288
    %p297 = scmp.eq.s32.totalorder %s23, 1
    %p298 = por %p296, %p297
    %p299 = scmp.ne.s32.totalorder %s288, %s289
    %p300 = scmp.eq.s32.totalorder %s23, 0
    %p301 = por %p299, %p300
    %p302 = scmp.ne.s32.totalorder %s288, %s289
    %p303 = scmp.eq.s32.totalorder %s24, 1
    %p304 = por %p302, %p303
    %p306 = scmp.ne.s32.totalorder %s289, %s305
    %p307 = scmp.eq.s32.totalorder %s24, 0
    %p308 = por %p306, %p307
    %p309 = scmp.le.s32.totalorder 1, %s18
    %p310 = scmp.lt.s32.totalorder %s18, 3
    %p311 = pnand %p309, %p310
    %p312 = pneg %p311
    // Predicated region
    $region9: #{vit_forward.5} parent=5 // pred_check
      _
    $region10: #{vit_forward.5} parent=5 // pred_check_branch
      %314 = sbr.rel (%p311) target = $region12
    $region11: #{vit_forward.5} parent=5 // pred_region
      %s315 = ssub.s32 %s18, 1
      // Predicated region
      $region13: #{vit_forward.5} parent=11 // pred_check
        %p316 = pneg %p65
      $region14: #{vit_forward.5} parent=11 // pred_check_branch
        %318 = sbr.rel (%p316) target = $region16
      $region15: #{vit_forward.5} parent=11 // pred_region
        _
      $region16: #{vit_forward.5} parent=11 // pred_fallthru
        _
      // Predicated region
      $region17: #{vit_forward.5} parent=11 // pred_check
        %p319 = pneg %p86
      $region18: #{vit_forward.5} parent=11 // pred_check_branch
        %321 = sbr.rel (%p319) target = $region20
      $region19: #{vit_forward.5} parent=11 // pred_region
        _
      $region20: #{vit_forward.5} parent=11 // pred_fallthru
        _
      // Predicated region
      $region21: #{vit_forward.5} parent=11 // pred_check
        %p322 = pneg %p107
      $region22: #{vit_forward.5} parent=11 // pred_check_branch
        %324 = sbr.rel (%p322) target = $region24
      $region23: #{vit_forward.5} parent=11 // pred_region
        _
      $region24: #{vit_forward.5} parent=11 // pred_fallthru
        _
      // Predicated region
      $region25: #{vit_forward.5} parent=11 // pred_check
        %p325 = pneg %p128
      $region26: #{vit_forward.5} parent=11 // pred_check_branch
        %327 = sbr.rel (%p325) target = $region28
      $region27: #{vit_forward.5} parent=11 // pred_region
        _
      $region28: #{vit_forward.5} parent=11 // pred_fallthru
        _
      // Predicated region
      $region29: #{vit_forward.5} parent=11 // pred_check
        %p328 = pneg %p149
      $region30: #{vit_forward.5} parent=11 // pred_check_branch
        %330 = sbr.rel (%p328) target = $region32
      $region31: #{vit_forward.5} parent=11 // pred_region
        _
      $region32: #{vit_forward.5} parent=11 // pred_fallthru
        _
      // Predicated region
      $region33: #{vit_forward.5} parent=11 // pred_check
        %p331 = pneg %p170
      $region34: #{vit_forward.5} parent=11 // pred_check_branch
        %333 = sbr.rel (%p331) target = $region36
      $region35: #{vit_forward.5} parent=11 // pred_region
        _
      $region36: #{vit_forward.5} parent=11 // pred_fallthru
        _
      // Predicated region
      $region37: #{vit_forward.5} parent=11 // pred_check
        %p334 = pneg %p191
      $region38: #{vit_forward.5} parent=11 // pred_check_branch
        %336 = sbr.rel (%p334) target = $region40
      $region39: #{vit_forward.5} parent=11 // pred_region
        _
      $region40: #{vit_forward.5} parent=11 // pred_fallthru
        _
      // Predicated region
      $region41: #{vit_forward.5} parent=11 // pred_check
        %p337 = pneg %p212
      $region42: #{vit_forward.5} parent=11 // pred_check_branch
        %339 = sbr.rel (%p337) target = $region44
      $region43: #{vit_forward.5} parent=11 // pred_region
        _
      $region44: #{vit_forward.5} parent=11 // pred_fallthru
        _
      // Predicated region
      $region45: #{vit_forward.5} parent=11 // pred_check
        %p340 = pneg %p233
      $region46: #{vit_forward.5} parent=11 // pred_check_branch
        %342 = sbr.rel (%p340) target = $region48
      $region47: #{vit_forward.5} parent=11 // pred_region
        _
      $region48: #{vit_forward.5} parent=11 // pred_fallthru
        _
      // Predicated region
      $region49: #{vit_forward.5} parent=11 // pred_check
        %p343 = pneg %p254
      $region50: #{vit_forward.5} parent=11 // pred_check_branch
        %345 = sbr.rel (%p343) target = $region52
      $region51: #{vit_forward.5} parent=11 // pred_region
        _
      $region52: #{vit_forward.5} parent=11 // pred_fallthru
        _
      // Predicated region
      $region53: #{vit_forward.5} parent=11 // pred_check
        %p346 = pneg %p275
      $region54: #{vit_forward.5} parent=11 // pred_check_branch
        %348 = sbr.rel (%p346) target = $region56
      $region55: #{vit_forward.5} parent=11 // pred_region
        _
      $region56: #{vit_forward.5} parent=11 // pred_fallthru
        _
    $region12: #{vit_forward.5} parent=5 // pred_fallthru
      _
    %p349 = scmp.lt.s32.totalorder %s18, 2
    // Predicated region
    $region57: #{vit_forward.5} parent=5 // pred_check
      %p350 = pneg %p349
    $region58: #{vit_forward.5} parent=5 // pred_check_branch
      %352 = sbr.rel (%p350) target = $region60
    $region59: #{vit_forward.5} parent=5 // pred_region
      // Predicated region
      $region61: #{vit_forward.5} parent=59 // pred_check
        %p353 = pneg %p38
      $region62: #{vit_forward.5} parent=59 // pred_check_branch
        %355 = sbr.rel (%p353) target = $region64
      $region63: #{vit_forward.5} parent=59 // pred_region
        %p356 = scmp.lt.s32.totalorder %s18, 1
        %s357 = scalar_select %p356, %s18, 1
        %s358 = smul.addr %s357, 3
        %s359 = smul.addr %s358, 8
        %s360 = scalar_lea.vmem %s0, %s359
      $region64: #{vit_forward.5} parent=59 // pred_fallthru
        _
    $region60: #{vit_forward.5} parent=5 // pred_fallthru
      _
    %p361 = scmp.le.s32.totalorder 1, %s18
    %p362 = scmp.lt.s32.totalorder %s18, 3
    %p363 = pnand %p361, %p362
    %p364 = pneg %p363
    // Predicated region
    $region65: #{vit_forward.5} parent=5 // pred_check
      _
    $region66: #{vit_forward.5} parent=5 // pred_check_branch
      %366 = sbr.rel (%p363) target = $region68
    $region67: #{vit_forward.5} parent=5 // pred_region
      %s367 = ssub.s32 %s18, 1
      %p368 = scmp.lt.s32.totalorder %s23, 1
      %s369 = scalar_select %p368, %s23, 1
      %s370 = smul.addr %s369, 3
      %s371 = smul.addr %s370, 8
      %s372 = scalar_lea.vmem %s0, %s371
      %p373 = pneg %p44
      %p374 = pneg %p41
      %p375 = pneg %p65
      %p376 = pneg %p62
      %p377 = pneg %p86
      %p378 = pneg %p83
      %p379 = pneg %p107
      %p380 = pneg %p104
      %p381 = pneg %p128
      %p382 = pneg %p125
      %p383 = pneg %p149
      %p384 = pneg %p146
      %p385 = pneg %p170
      %p386 = pneg %p167
      %p387 = pneg %p191
      %p388 = pneg %p188
      %p389 = pneg %p212
      %p390 = pneg %p209
      %p391 = pneg %p233
      %p392 = pneg %p230
      %p393 = pneg %p254
      %p394 = pneg %p251
      %p395 = pneg %p275
      %p396 = pneg %p272
      %p397 = pneg %p301
      %p398 = pneg %p298
      %p399 = scmp.lt.s32.totalorder %s23, 1
      %s400 = scalar_select %p399, %s23, 1
      %s401 = smul.addr %s400, 3
      %s402 = smul.addr %s401, 8
      %s403 = scalar_lea.vmem %s12, %s402
      %p404 = scmp.lt.s32.totalorder %s23, 1
      %s405 = scalar_select %p404, %s23, 1
      %s406 = smul.addr %s405, 3
      %s407 = smul.addr %s406, 8
      %s408 = scalar_lea.vmem %s0, %s407
      %p409 = scmp.lt.s32.totalorder %s23, 1
      %s410 = scalar_select %p409, %s23, 1
      %s411 = smul.addr %s410, 3
      %s412 = smul.addr %s411, 8
      %s413 = scalar_lea.vmem %s12, %s412
      %v414 = vld [vmem:[%s408] sm:$0xff]
      %v415 = vld [vmem:[%s408 + $0x8] sm:$0xff]
      %v416 = vld [vmem:[%s408 + $0x10] sm:$0xff]
      %v417 = vlaneseq
      %v418 = vand.u32 %v417, 127
      %vm419 = vcmp.lt.s32.totalorder %v418, 32
      %v420 = vlaneseq
      %v421 = vshrl.u32 %v420, 7
      %v422 = vadd.s32 %v421, 8
      %v423 = vadd.s32 %v421, 16
      %vm424 = vcmp.lt.s32.totalorder %v421, 17
      %vm425 = vcmp.lt.s32.totalorder %v422, 17
      %vm426 = vcmp.lt.s32.totalorder %v423, 17
      %427 = vadd.xlane.f32.xlu0 %v414
      %v428 = vpop.xlane.xlu0 %427
      %429 = vadd.xlane.f32.xlu0 %v415
      %v430 = vpop.xlane.xlu0 %429
      %431 = vadd.xlane.f32.xlu0 %v416
      %v432 = vpop.xlane.xlu0 %431
      %v433 = vmul.f32 %v428, 0.03125
      %v434 = vmul.f32 %v430, 0.03125
      %v435 = vmul.f32 %v432, 0.03125
      %v436 = vsub.f32 %v414, %v433
      %v437 = vsub.f32 %v415, %v434
      %v438 = vsub.f32 %v416, %v435
      %v439 = vsel %vm419, 1, 0
      %vm440 = vcmp.eq.s32.totalorder %v439, 1
      %v441 = vsel %vm440, %v436, 0.0
      %v442 = vsel %vm440, %v437, 0.0
      %v443 = vsel %vm440, %v438, 0.0
      %v444 = vmul.f32 %v441, %v441
      %v445 = vmul.f32 %v442, %v442
      %v446 = vmul.f32 %v443, %v443
      %447 = vadd.xlane.f32.xlu0 %v444
      %v448 = vpop.xlane.xlu0 %447
      %449 = vadd.xlane.f32.xlu0 %v445
      %v450 = vpop.xlane.xlu0 %449
      %451 = vadd.xlane.f32.xlu0 %v446
      %v452 = vpop.xlane.xlu0 %451
      %v453 = vmul.f32 %v448, 0.03125
      %v454 = vmul.f32 %v450, 0.03125
      %v455 = vmul.f32 %v452, 0.03125
      %v456 = vadd.f32 %v453, 1e-05
      %v457 = vadd.f32 %v454, 1e-05
      %v458 = vadd.f32 %v455, 1e-05
      %v459 = vrsqrt.pop %v456
      %v460 = vrsqrt.pop %v457
      %v461 = vrsqrt.pop %v458
      %v462 = vmul.f32 %v441, %v459
      %v463 = vmul.f32 %v442, %v460
      %v464 = vmul.f32 %v443, %v461
      %v465 = vld [vmem:[%s1] sm:$0x1]
      %v467 = vlaneseq
      %v468 = vshrl.u32 %v467, 7
      %v469 = vsub.s32 0, %v468
      %v470 = vrot.slane %v465, %v469
      %v472 = vmul.f32 %v462, %v470
      %v473 = vmul.f32 %v463, %v470
      %v474 = vmul.f32 %v464, %v470
      %v475 = vld [vmem:[%s2] sm:$0x1]
      %v477 = vlaneseq
      %v478 = vshrl.u32 %v477, 7
      %v479 = vsub.s32 0, %v478
      %v480 = vrot.slane %v475, %v479
      %v482 = vadd.f32 %v472, %v480
      %v483 = vadd.f32 %v473, %v480
      %v484 = vadd.f32 %v474, %v480
      %v485 = vsel %vm424, 1, 0
      %v486 = vsel %vm425, 1, 0
      %v487 = vsel %vm426, 1, 0
      %vm488 = vcmp.eq.s32.totalorder %v485, 1
      %vm489 = vcmp.eq.s32.totalorder %v486, 1
      %vm490 = vcmp.eq.s32.totalorder %v487, 1
      %v491 = vsel %vm488, %v482, 0.0
      %v492 = vsel %vm489, %v483, 0.0
      %v493 = vsel %vm490, %v484, 0.0
      %v494 = vld [vmem:[%s3] sm:$0xff]
      %v495 = vld [vmem:[%s3 + $0x8] sm:$0xff]
      %v496 = vld [vmem:[%s3 + $0x10] sm:$0xff]
      %v497 = vld [vmem:[%s3 + $0x18] sm:$0xff]
      %v498 = vld [vmem:[%s3 + $0x20] sm:$0xff]
      %v499 = vld [vmem:[%s3 + $0x28] sm:$0xff]
      %v500 = vld [vmem:[%s3 + $0x30] sm:$0xff]
      %v501 = vld [vmem:[%s3 + $0x38] sm:$0xff]
      %v502 = vld [vmem:[%s3 + $0x40] sm:$0xff]
      %v503 = vld [vmem:[%s3 + $0x48] sm:$0xff]
      %v504 = vld [vmem:[%s3 + $0x50] sm:$0xff]
      %v505 = vld [vmem:[%s3 + $0x58] sm:$0xff]
      %v506 = vld [vmem:[%s3 + $0x60] sm:$0xff]
      %v507 = vld [vmem:[%s3 + $0x68] sm:$0xff]
      %v508 = vld [vmem:[%s3 + $0x70] sm:$0xff]
      %v509 = vld [vmem:[%s3 + $0x78] sm:$0xff]
      %510 = vmatprep.subr.mxu0 0.0
      %511 = vmatpush1.msra.mxu0 %v494
      %512 = vmatprep.subr.mxu0 0.0
      %513 = vmatpush1.msra.mxu0 %v495
      %514 = vmatprep.subr.mxu0 0.0
      %515 = vmatpush1.msra.mxu0 %v496
      %516 = vmatprep.subr.mxu0 0.0
      %517 = vmatpush1.msra.mxu0 %v497
      %518 = vmatprep.subr.mxu0 0.0
      %519 = vmatpush1.msra.mxu0 %v498
      %520 = vmatprep.subr.mxu0 0.0
      %521 = vmatpush1.msra.mxu0 %v499
      %522 = vmatprep.subr.mxu0 0.0
      %523 = vmatpush1.msra.mxu0 %v500
      %524 = vmatprep.subr.mxu0 0.0
      %525 = vmatpush1.msra.mxu0 %v501
      %526 = vmatprep.subr.mxu0 0.0
      %527 = vmatpush1.msra.mxu0 %v502
      %528 = vmatprep.subr.mxu0 0.0
      %529 = vmatpush1.msra.mxu0 %v503
      %530 = vmatprep.subr.mxu0 0.0
      %531 = vmatpush1.msra.mxu0 %v504
      %532 = vmatprep.subr.mxu0 0.0
      %533 = vmatpush1.msra.mxu0 %v505
      %534 = vmatprep.subr.mxu0 0.0
      %535 = vmatpush1.msra.mxu0 %v506
      %536 = vmatprep.subr.mxu0 0.0
      %537 = vmatpush1.msra.mxu0 %v507
      %538 = vmatprep.subr.mxu0 0.0
      %539 = vmatpush1.msra.mxu0 %v508
      %540 = vmatprep.subr.mxu0 0.0
      %541 = vmatpush1.msra.mxu0 %v509
      %542 = vmatprep.subr.mxu0 0.0
      %543 = vmatpush1.msra.mxu0 0.0
      %544 = vmatprep.subr.mxu0 0.0
      %545 = vmatpush1.msra.mxu0 0.0
      %546 = vmatprep.subr.mxu0 0.0
      %547 = vmatpush1.msra.mxu0 0.0
      %548 = vmatprep.subr.mxu0 0.0
      %549 = vmatpush1.msra.mxu0 0.0
      %550 = vmatprep.subr.mxu0 0.0
      %551 = vmatpush1.msra.mxu0 0.0
      %552 = vmatprep.subr.mxu0 0.0
      %553 = vmatpush1.msra.mxu0 0.0
      %554 = vmatprep.subr.mxu0 0.0
      %555 = vmatpush1.msra.mxu0 0.0
      %556 = vmatprep.subr.mxu0 0.0
      %557 = vmatpush1.msra.mxu0 0.0
      %558 = vmatprep.subr.mxu0 0.0
      %559 = vmatpush1.msra.mxu0 0.0
      %560 = vmatprep.subr.mxu0 0.0
      %561 = vmatpush1.msra.mxu0 0.0
      %562 = vmatprep.subr.mxu0 0.0
      %563 = vmatpush1.msra.mxu0 0.0
      %564 = vmatprep.subr.mxu0 0.0
      %565 = vmatpush1.msra.mxu0 0.0
      %566 = vmatprep.subr.mxu0 0.0
      %567 = vmatpush1.msra.mxu0 0.0
      %568 = vmatprep.subr.mxu0 0.0
      %569 = vmatpush1.msra.mxu0 0.0
      %570 = vmatprep.subr.mxu0 0.0
      %571 = vmatpush1.msra.mxu0 0.0
      %572 = vmatprep.subr.mxu0 0.0
      %573 = vmatpush1.msra.mxu0 0.0
      %574 = vmatprep.mubr.f32.mxu0 0.0
      %575 = vmatmul.mubr.f32.gmra.mrb[0].mxu0 %v491
      %v576 = vpop.f32.mrb[0].mxu0
      %v577 = vadd.f32 0.0, %v576
      %v578 = vpop.f32.mrb[0].mxu0
      %579 = vmatprep.mubr.f32.mxu0 0.0
      %580 = vmatmul.mubr.f32.gmra.mrb[0].mxu0 %v492
      %v581 = vpop.f32.mrb[0].mxu0
      %v582 = vadd.f32 0.0, %v581
      %v583 = vpop.f32.mrb[0].mxu0
      %584 = vmatprep.mubr.f32.mxu0 0.0
      %585 = vmatmul.mubr.f32.gmra.mrb[0].mxu0 %v493
      %v586 = vpop.f32.mrb[0].mxu0
      %v587 = vadd.f32 0.0, %v586
      %v588 = vpop.f32.mrb[0].mxu0
      %589 = vdwg.mxu0
      %vm590 = vcmp.lt.s32.totalorder %v418, 17
      %594 = vrot.lane.b32.xlu0 %v577, 96
      %v595 = vpop.permute.xlu0 %594
      %596 = vrot.lane.b32.xlu0 %v582, 96
      %v597 = vpop.permute.xlu0 %596
      %598 = vrot.lane.b32.xlu0 %v587, 96
      %v599 = vpop.permute.xlu0 %598
      %vm600 = vcmask 64512
      %v601 = vsel %vm600, %v577, 0
      %v603 = vsel %vm600, %v582, 0
      %v605 = vsel %vm600, %v587, 0
      %v607 = vsel %vm600, %v595, 0
      %v609 = vsel %vm600, %v597, 0
      %v611 = vsel %vm600, %v599, 0
      %613 = vmatprep.subr.mxu0 0.0
      %614 = vmatpush1.xpose.msra.mxu0 %v607
      %615 = vmatprep.subr.mxu0 0.0
      %616 = vmatpush1.xpose.msra.mxu0 %v609
      %617 = vmatprep.subr.mxu0 0.0
      %618 = vmatpush1.xpose.msra.mxu0 %v611
      %619 = vmatprep.subr.mxu0 0.0
      %620 = vmatpush1.xpose.msra.mxu0 0.0
      %621 = vmatprep.subr.mxu0 0.0
      %622 = vmatpush1.xpose.msra.mxu0 0.0
      %623 = vmatprep.subr.mxu0 0.0
      %624 = vmatpush1.xpose.msra.mxu0 0.0
      %625 = vmatprep.subr.mxu0 0.0
      %626 = vmatpush1.xpose.msra.mxu0 0.0
      %627 = vmatprep.subr.mxu0 0.0
      %628 = vmatpush1.xpose.msra.mxu0 0.0
      %629 = vmatprep.subr.mxu0 0.0
      %630 = vmatpush1.xpose.msra.mxu0 0.0
      %631 = vmatprep.subr.mxu0 0.0
      %632 = vmatpush1.xpose.msra.mxu0 0.0
      %633 = vmatprep.subr.mxu0 0.0
      %634 = vmatpush1.xpose.msra.mxu0 0.0
      %635 = vmatprep.subr.mxu0 0.0
      %636 = vmatpush1.xpose.msra.mxu0 0.0
      %637 = vmatprep.subr.mxu0 0.0
      %638 = vmatpush1.xpose.msra.mxu0 0.0
      %639 = vmatprep.subr.mxu0 0.0
      %640 = vmatpush1.xpose.msra.mxu0 0.0
      %641 = vmatprep.subr.mxu0 0.0
      %642 = vmatpush1.xpose.msra.mxu0 0.0
      %643 = vmatprep.subr.mxu0 0.0
      %644 = vmatpush1.xpose.msra.mxu0 0.0
      %645 = vmatprep.subr.mxu0 0.0
      %646 = vmatpush1.xpose.msra.mxu0 0.0
      %647 = vmatprep.subr.mxu0 0.0
      %648 = vmatpush1.xpose.msra.mxu0 0.0
      %649 = vmatprep.subr.mxu0 0.0
      %650 = vmatpush1.xpose.msra.mxu0 0.0
      %651 = vmatprep.subr.mxu0 0.0
      %652 = vmatpush1.xpose.msra.mxu0 0.0
      %653 = vmatprep.subr.mxu0 0.0
      %654 = vmatpush1.xpose.msra.mxu0 0.0
      %655 = vmatprep.subr.mxu0 0.0
      %656 = vmatpush1.xpose.msra.mxu0 0.0
      %657 = vmatprep.subr.mxu0 0.0
      %658 = vmatpush1.xpose.msra.mxu0 0.0
      %659 = vmatprep.subr.mxu0 0.0
      %660 = vmatpush1.xpose.msra.mxu0 0.0
      %661 = vmatprep.subr.mxu0 0.0
      %662 = vmatpush1.xpose.msra.mxu0 0.0
      %663 = vmatprep.subr.mxu0 0.0
      %664 = vmatpush1.xpose.msra.mxu0 0.0
      %665 = vmatprep.subr.mxu0 0.0
      %666 = vmatpush1.xpose.msra.mxu0 0.0
      %667 = vmatprep.subr.mxu0 0.0
      %668 = vmatpush1.xpose.msra.mxu0 0.0
      %669 = vmatprep.subr.mxu0 0.0
      %670 = vmatpush1.xpose.msra.mxu0 0.0
      %671 = vmatprep.subr.mxu0 0.0
      %672 = vmatpush1.xpose.msra.mxu0 0.0
      %673 = vmatprep.subr.mxu0 0.0
      %674 = vmatpush1.xpose.msra.mxu0 0.0
      %675 = vmatprep.subr.mxu0 0.0
      %676 = vmatpush1.xpose.msra.mxu0 0.0
      %677 = vmatprep.mubr.f32.mxu0 0.0
      %678 = vmatmul.mubr.f32.gmra.mrb[0].mxu0 %v601
      %v679 = vpop.f32.mrb[0].mxu0
      %v680 = vadd.f32 0.0, %v679
      %v681 = vpop.f32.mrb[0].mxu0
      %682 = vmatprep.mubr.f32.mxu0 0.0
      %683 = vmatmul.mubr.f32.gmra.mrb[0].mxu0 %v603
      %v684 = vpop.f32.mrb[0].mxu0
      %v685 = vadd.f32 0.0, %v684
      %v686 = vpop.f32.mrb[0].mxu0
      %687 = vmatprep.mubr.f32.mxu0 0.0
      %688 = vmatmul.mubr.f32.gmra.mrb[0].mxu0 %v605
      %v689 = vpop.f32.mrb[0].mxu0
      %v690 = vadd.f32 0.0, %v689
      %v691 = vpop.f32.mrb[0].mxu0
      %692 = vdwg.mxu0
      %v693 = vmul.f32 %v680, 0.35355338
      %v694 = vmul.f32 %v685, 0.35355338
      %v695 = vmul.f32 %v690, 0.35355338
      %v696 = vsel %vm590, %v693, -1e+30
      %v697 = vsel %vm590, %v694, -1e+30
      %v698 = vsel %vm590, %v695, -1e+30
      %vm699 = vcmask 195584
      %v700 = vsel %vm699, %v696, -inf
      %701 = vmax.xlane.f32.xlu0 %v700
      %v702 = vpop.xlane.xlu0 %701
      %v703 = vsel %vm699, %v697, -inf
      %704 = vmax.xlane.f32.xlu0 %v703
      %v705 = vpop.xlane.xlu0 %704
      %v706 = vsel %vm699, %v698, -inf
      %707 = vmax.xlane.f32.xlu0 %v706
      %v708 = vpop.xlane.xlu0 %707
      %v709 = vsub.f32 %v696, %v702
      %v710 = vsub.f32 %v697, %v705
      %v711 = vsub.f32 %v698, %v708
      %v712 = vmul.f32 %v709, 1.442695
      %v713 = vpow.pop %v712
      %v714 = vmul.f32 %v710, 1.442695
      %v715 = vpow.pop %v714
      %v716 = vmul.f32 %v711, 1.442695
      %v717 = vpow.pop %v716
      %v718 = vsel %vm699, %v713, 0.0
      %719 = vadd.xlane.f32.xlu0 %v718
      %v720 = vpop.xlane.xlu0 %719
      %v721 = vsel %vm699, %v715, 0.0
      %722 = vadd.xlane.f32.xlu0 %v721
      %v723 = vpop.xlane.xlu0 %722
      %v724 = vsel %vm699, %v717, 0.0
      %725 = vadd.xlane.f32.xlu0 %v724
      %v726 = vpop.xlane.xlu0 %725
      %v727 = vrcp.pop %v720
      %v728 = vrcp.pop %v723
      %v729 = vrcp.pop %v726
      %v730 = vmul.f32 %v713, %v727
      %v731 = vmul.f32 %v715, %v728
      %v732 = vmul.f32 %v717, %v729
      %733 = vrot.lane.b32.xlu0 %v577, 64
      %v734 = vpop.permute.xlu0 %733
      %735 = vrot.lane.b32.xlu0 %v582, 64
      %v736 = vpop.permute.xlu0 %735
      %737 = vrot.lane.b32.xlu0 %v587, 64
      %v738 = vpop.permute.xlu0 %737
      %v743 = vsel %vm699, %v730, 0
      %v746 = vsel %vm699, %v731, 0
      %v749 = vsel %vm699, %v732, 0
      %751 = vmatprep.subr.mxu0 0.0
      %752 = vmatpush1.msra.mxu0 %v734
      %753 = vmatprep.subr.mxu0 0.0
      %754 = vmatpush1.msra.mxu0 %v736
      %755 = vmatprep.subr.mxu0 0.0
      %756 = vmatpush1.msra.mxu0 %v738
      %757 = vmatprep.subr.mxu0 0.0
      %758 = vmatpush1.msra.mxu0 0.0
      %759 = vmatprep.subr.mxu0 0.0
      %760 = vmatpush1.msra.mxu0 0.0
      %761 = vmatprep.subr.mxu0 0.0
      %762 = vmatpush1.msra.mxu0 0.0
      %763 = vmatprep.subr.mxu0 0.0
      %764 = vmatpush1.msra.mxu0 0.0
      %765 = vmatprep.subr.mxu0 0.0
      %766 = vmatpush1.msra.mxu0 0.0
      %767 = vmatprep.subr.mxu0 0.0
      %768 = vmatpush1.msra.mxu0 0.0
      %769 = vmatprep.subr.mxu0 0.0
      %770 = vmatpush1.msra.mxu0 0.0
      %771 = vmatprep.subr.mxu0 0.0
      %772 = vmatpush1.msra.mxu0 0.0
      %773 = vmatprep.subr.mxu0 0.0
      %774 = vmatpush1.msra.mxu0 0.0
      %775 = vmatprep.subr.mxu0 0.0
      %776 = vmatpush1.msra.mxu0 0.0
      %777 = vmatprep.subr.mxu0 0.0
      %778 = vmatpush1.msra.mxu0 0.0
      %779 = vmatprep.subr.mxu0 0.0
      %780 = vmatpush1.msra.mxu0 0.0
      %781 = vmatprep.subr.mxu0 0.0
      %782 = vmatpush1.msra.mxu0 0.0
      %783 = vmatprep.subr.mxu0 0.0
      %784 = vmatpush1.msra.mxu0 0.0
      %785 = vmatprep.subr.mxu0 0.0
      %786 = vmatpush1.msra.mxu0 0.0
      %787 = vmatprep.subr.mxu0 0.0
      %788 = vmatpush1.msra.mxu0 0.0
      %789 = vmatprep.subr.mxu0 0.0
      %790 = vmatpush1.msra.mxu0 0.0
      %791 = vmatprep.subr.mxu0 0.0
      %792 = vmatpush1.msra.mxu0 0.0
      %793 = vmatprep.subr.mxu0 0.0
      %794 = vmatpush1.msra.mxu0 0.0
      %795 = vmatprep.subr.mxu0 0.0
      %796 = vmatpush1.msra.mxu0 0.0
      %797 = vmatprep.subr.mxu0 0.0
      %798 = vmatpush1.msra.mxu0 0.0
      %799 = vmatprep.subr.mxu0 0.0
      %800 = vmatpush1.msra.mxu0 0.0
      %801 = vmatprep.subr.mxu0 0.0
      %802 = vmatpush1.msra.mxu0 0.0
      %803 = vmatprep.subr.mxu0 0.0
      %804 = vmatpush1.msra.mxu0 0.0
      %805 = vmatprep.subr.mxu0 0.0
      %806 = vmatpush1.msra.mxu0 0.0
      %807 = vmatprep.subr.mxu0 0.0
      %808 = vmatpush1.msra.mxu0 0.0
      %809 = vmatprep.subr.mxu0 0.0
      %810 = vmatpush1.msra.mxu0 0.0
      %811 = vmatprep.subr.mxu0 0.0
      %812 = vmatpush1.msra.mxu0 0.0
      %813 = vmatprep.subr.mxu0 0.0
      %814 = vmatpush1.msra.mxu0 0.0
      %815 = vmatprep.mubr.f32.mxu0 0.0
      %816 = vmatmul.mubr.f32.gmra.mrb[0].mxu0 %v743
      %v817 = vpop.f32.mrb[0].mxu0
      %v818 = vadd.f32 0.0, %v817
      %v819 = vpop.f32.mrb[0].mxu0
      %820 = vmatprep.mubr.f32.mxu0 0.0
      %821 = vmatmul.mubr.f32.gmra.mrb[0].mxu0 %v746
      %v822 = vpop.f32.mrb[0].mxu0
      %v823 = vadd.f32 0.0, %v822
      %v824 = vpop.f32.mrb[0].mxu0
      %825 = vmatprep.mubr.f32.mxu0 0.0
      %826 = vmatmul.mubr.f32.gmra.mrb[0].mxu0 %v749
      %v827 = vpop.f32.mrb[0].mxu0
      %v828 = vadd.f32 0.0, %v827
      %v829 = vpop.f32.mrb[0].mxu0
      %830 = vdwg.mxu0
      %831 = vrot.lane.b32.xlu0 %v577, 120
      %v832 = vpop.permute.xlu0 %831
      %833 = vrot.lane.b32.xlu0 %v582, 120
      %v834 = vpop.permute.xlu0 %833
      %835 = vrot.lane.b32.xlu0 %v587, 120
      %v836 = vpop.permute.xlu0 %835
      %837 = vrot.lane.b32.xlu0 %v577, 88
      %v838 = vpop.permute.xlu0 %837
      %839 = vrot.lane.b32.xlu0 %v582, 88
      %v840 = vpop.permute.xlu0 %839
      %841 = vrot.lane.b32.xlu0 %v587, 88
      %v842 = vpop.permute.xlu0 %841
      %v843 = vsel %vm600, %v832, 0
      %v845 = vsel %vm600, %v834, 0
      %v847 = vsel %vm600, %v836, 0
      %v849 = vsel %vm600, %v838, 0
      %v851 = vsel %vm600, %v840, 0
      %v853 = vsel %vm600, %v842, 0
      %855 = vmatprep.subr.mxu0 0.0
      %856 = vmatpush1.xpose.msra.mxu0 %v849
      %857 = vmatprep.subr.mxu0 0.0
      %858 = vmatpush1.xpose.msra.mxu0 %v851
      %859 = vmatprep.subr.mxu0 0.0
      %860 = vmatpush1.xpose.msra.mxu0 %v853
      %861 = vmatprep.subr.mxu0 0.0
      %862 = vmatpush1.xpose.msra.mxu0 0.0
      %863 = vmatprep.subr.mxu0 0.0
      %864 = vmatpush1.xpose.msra.mxu0 0.0
      %865 = vmatprep.subr.mxu0 0.0
      %866 = vmatpush1.xpose.msra.mxu0 0.0
      %867 = vmatprep.subr.mxu0 0.0
      %868 = vmatpush1.xpose.msra.mxu0 0.0
      %869 = vmatprep.subr.mxu0 0.0
      %870 = vmatpush1.xpose.msra.mxu0 0.0
      %871 = vmatprep.subr.mxu0 0.0
      %872 = vmatpush1.xpose.msra.mxu0 0.0
      %873 = vmatprep.subr.mxu0 0.0
      %874 = vmatpush1.xpose.msra.mxu0 0.0
      %875 = vmatprep.subr.mxu0 0.0
      %876 = vmatpush1.xpose.msra.mxu0 0.0
      %877 = vmatprep.subr.mxu0 0.0
      %878 = vmatpush1.xpose.msra.mxu0 0.0
      %879 = vmatprep.subr.mxu0 0.0
      %880 = vmatpush1.xpose.msra.mxu0 0.0
      %881 = vmatprep.subr.mxu0 0.0
      %882 = vmatpush1.xpose.msra.mxu0 0.0
      %883 = vmatprep.subr.mxu0 0.0
      %884 = vmatpush1.xpose.msra.mxu0 0.0
      %885 = vmatprep.subr.mxu0 0.0
      %886 = vmatpush1.xpose.msra.mxu0 0.0
      %887 = vmatprep.subr.mxu0 0.0
      %888 = vmatpush1.xpose.msra.mxu0 0.0
      %889 = vmatprep.subr.mxu0 0.0
      %890 = vmatpush1.xpose.msra.mxu0 0.0
      %891 = vmatprep.subr.mxu0 0.0
      %892 = vmatpush1.xpose.msra.mxu0 0.0
      %893 = vmatprep.subr.mxu0 0.0
      %894 = vmatpush1.xpose.msra.mxu0 0.0
      %895 = vmatprep.subr.mxu0 0.0
      %896 = vmatpush1.xpose.msra.mxu0 0.0
      %897 = vmatprep.subr.mxu0 0.0
      %898 = vmatpush1.xpose.msra.mxu0 0.0
      %899 = vmatprep.subr.mxu0 0.0
      %900 = vmatpush1.xpose.msra.mxu0 0.0
      %901 = vmatprep.subr.mxu0 0.0
      %902 = vmatpush1.xpose.msra.mxu0 0.0
      %903 = vmatprep.subr.mxu0 0.0
      %904 = vmatpush1.xpose.msra.mxu0 0.0
      %905 = vmatprep.subr.mxu0 0.0
      %906 = vmatpush1.xpose.msra.mxu0 0.0
      %907 = vmatprep.subr.mxu0 0.0
      %908 = vmatpush1.xpose.msra.mxu0 0.0
      %909 = vmatprep.subr.mxu0 0.0
      %910 = vmatpush1.xpose.msra.mxu0 0.0
      %911 = vmatprep.subr.mxu0 0.0
      %912 = vmatpush1.xpose.msra.mxu0 0.0
      %913 = vmatprep.subr.mxu0 0.0
      %914 = vmatpush1.xpose.msra.mxu0 0.0
      %915 = vmatprep.subr.mxu0 0.0
      %916 = vmatpush1.xpose.msra.mxu0 0.0
      %917 = vmatprep.subr.mxu0 0.0
      %918 = vmatpush1.xpose.msra.mxu0 0.0
      %919 = vmatprep.mubr.f32.mxu0 0.0
      %920 = vmatmul.mubr.f32.gmra.mrb[0].mxu0 %v843
      %v921 = vpop.f32.mrb[0].mxu0
      %v922 = vadd.f32 0.0, %v921
      %v923 = vpop.f32.mrb[0].mxu0
      %924 = vmatprep.mubr.f32.mxu0 0.0
      %925 = vmatmul.mubr.f32.gmra.mrb[0].mxu0 %v845
      %v926 = vpop.f32.mrb[0].mxu0
      %v927 = vadd.f32 0.0, %v926
      %v928 = vpop.f32.mrb[0].mxu0
      %929 = vmatprep.mubr.f32.mxu0 0.0
      %930 = vmatmul.mubr.f32.gmra.mrb[0].mxu0 %v847
      %v931 = vpop.f32.mrb[0].mxu0
      %v932 = vadd.f32 0.0, %v931
      %v933 = vpop.f32.mrb[0].mxu0
      %934 = vdwg.mxu0
      %v935 = vmul.f32 %v922, 0.35355338
      %v936 = vmul.f32 %v927, 0.35355338
      %v937 = vmul.f32 %v932, 0.35355338
      %v938 = vsel %vm590, %v935, -1e+30
      %v939 = vsel %vm590, %v936, -1e+30
      %v940 = vsel %vm590, %v937, -1e+30
      %v941 = vsel %vm699, %v938, -inf
      %942 = vmax.xlane.f32.xlu0 %v941
      %v943 = vpop.xlane.xlu0 %942
      %v944 = vsel %vm699, %v939, -inf
      %945 = vmax.xlane.f32.xlu0 %v944
      %v946 = vpop.xlane.xlu0 %945
      %v947 = vsel %vm699, %v940, -inf
      %948 = vmax.xlane.f32.xlu0 %v947
      %v949 = vpop.xlane.xlu0 %948
      %v950 = vsub.f32 %v938, %v943
      %v951 = vsub.f32 %v939, %v946
      %v952 = vsub.f32 %v940, %v949
      %v953 = vmul.f32 %v950, 1.442695
      %v954 = vpow.pop %v953
      %v955 = vmul.f32 %v951, 1.442695
      %v956 = vpow.pop %v955
      %v957 = vmul.f32 %v952, 1.442695
      %v958 = vpow.pop %v957
      %v959 = vsel %vm699, %v954, 0.0
      %960 = vadd.xlane.f32.xlu0 %v959
      %v961 = vpop.xlane.xlu0 %960
      %v962 = vsel %vm699, %v956, 0.0
      %963 = vadd.xlane.f32.xlu0 %v962
      %v964 = vpop.xlane.xlu0 %963
      %v965 = vsel %vm699, %v958, 0.0
      %966 = vadd.xlane.f32.xlu0 %v965
      %v967 = vpop.xlane.xlu0 %966
      %v968 = vrcp.pop %v961
      %v969 = vrcp.pop %v964
      %v970 = vrcp.pop %v967
      %v971 = vmul.f32 %v954, %v968
      %v972 = vmul.f32 %v956, %v969
      %v973 = vmul.f32 %v958, %v970
      %974 = vrot.lane.b32.xlu0 %v577, 56
      %v975 = vpop.permute.xlu0 %974
      %976 = vrot.lane.b32.xlu0 %v582, 56
      %v977 = vpop.permute.xlu0 %976
      %978 = vrot.lane.b32.xlu0 %v587, 56
      %v979 = vpop.permute.xlu0 %978
      %v984 = vsel %vm699, %v971, 0
      %v987 = vsel %vm699, %v972, 0
      %v990 = vsel %vm699, %v973, 0
      %992 = vmatprep.subr.mxu0 0.0
      %993 = vmatpush1.msra.mxu0 %v975
      %994 = vmatprep.subr.mxu0 0.0
      %995 = vmatpush1.msra.mxu0 %v977
      %996 = vmatprep.subr.mxu0 0.0
      %997 = vmatpush1.msra.mxu0 %v979
      %998 = vmatprep.subr.mxu0 0.0
      %999 = vmatpush1.msra.mxu0 0.0
      %1000 = vmatprep.subr.mxu0 0.0
      %1001 = vmatpush1.msra.mxu0 0.0
      %1002 = vmatprep.subr.mxu0 0.0
      %1003 = vmatpush1.msra.mxu0 0.0
      %1004 = vmatprep.subr.mxu0 0.0
      %1005 = vmatpush1.msra.mxu0 0.0
      %1006 = vmatprep.subr.mxu0 0.0
      %1007 = vmatpush1.msra.mxu0 0.0
      %1008 = vmatprep.subr.mxu0 0.0
      %1009 = vmatpush1.msra.mxu0 0.0
      %1010 = vmatprep.subr.mxu0 0.0
      %1011 = vmatpush1.msra.mxu0 0.0
      %1012 = vmatprep.subr.mxu0 0.0
      %1013 = vmatpush1.msra.mxu0 0.0
      %1014 = vmatprep.subr.mxu0 0.0
      %1015 = vmatpush1.msra.mxu0 0.0
      %1016 = vmatprep.subr.mxu0 0.0
      %1017 = vmatpush1.msra.mxu0 0.0
      %1018 = vmatprep.subr.mxu0 0.0
      %1019 = vmatpush1.msra.mxu0 0.0
      %1020 = vmatprep.subr.mxu0 0.0
      %1021 = vmatpush1.msra.mxu0 0.0
      %1022 = vmatprep.subr.mxu0 0.0
      %1023 = vmatpush1.msra.mxu0 0.0
      %1024 = vmatprep.subr.mxu0 0.0
      %1025 = vmatpush1.msra.mxu0 0.0
      %1026 = vmatprep.subr.mxu0 0.0
      %1027 = vmatpush1.msra.mxu0 0.0
      %1028 = vmatprep.subr.mxu0 0.0
      %1029 = vmatpush1.msra.mxu0 0.0
      %1030 = vmatprep.subr.mxu0 0.0
      %1031 = vmatpush1.msra.mxu0 0.0
      %1032 = vmatprep.subr.mxu0 0.0
      %1033 = vmatpush1.msra.mxu0 0.0
      %1034 = vmatprep.subr.mxu0 0.0
      %1035 = vmatpush1.msra.mxu0 0.0
      %1036 = vmatprep.subr.mxu0 0.0
      %1037 = vmatpush1.msra.mxu0 0.0
      %1038 = vmatprep.subr.mxu0 0.0
      %1039 = vmatpush1.msra.mxu0 0.0
      %1040 = vmatprep.subr.mxu0 0.0
      %1041 = vmatpush1.msra.mxu0 0.0
      %1042 = vmatprep.subr.mxu0 0.0
      %1043 = vmatpush1.msra.mxu0 0.0
      %1044 = vmatprep.subr.mxu0 0.0
      %1045 = vmatpush1.msra.mxu0 0.0
      %1046 = vmatprep.subr.mxu0 0.0
      %1047 = vmatpush1.msra.mxu0 0.0
      %1048 = vmatprep.subr.mxu0 0.0
      %1049 = vmatpush1.msra.mxu0 0.0
      %1050 = vmatprep.subr.mxu0 0.0
      %1051 = vmatpush1.msra.mxu0 0.0
      %1052 = vmatprep.subr.mxu0 0.0
      %1053 = vmatpush1.msra.mxu0 0.0
      %1054 = vmatprep.subr.mxu0 0.0
      %1055 = vmatpush1.msra.mxu0 0.0
      %1056 = vmatprep.mubr.f32.mxu0 0.0
      %1057 = vmatmul.mubr.f32.gmra.mrb[0].mxu0 %v984
      %v1058 = vpop.f32.mrb[0].mxu0
      %v1059 = vadd.f32 0.0, %v1058
      %v1060 = vpop.f32.mrb[0].mxu0
      %1061 = vmatprep.mubr.f32.mxu0 0.0
      %1062 = vmatmul.mubr.f32.gmra.mrb[0].mxu0 %v987
      %v1063 = vpop.f32.mrb[0].mxu0
      %v1064 = vadd.f32 0.0, %v1063
      %v1065 = vpop.f32.mrb[0].mxu0
      %1066 = vmatprep.mubr.f32.mxu0 0.0
      %1067 = vmatmul.mubr.f32.gmra.mrb[0].mxu0 %v990
      %v1068 = vpop.f32.mrb[0].mxu0
      %v1069 = vadd.f32 0.0, %v1068
      %v1070 = vpop.f32.mrb[0].mxu0
      %1071 = vdwg.mxu0
      %1072 = vrot.lane.b32.xlu0 %v577, 112
      %v1073 = vpop.permute.xlu0 %1072
      %1074 = vrot.lane.b32.xlu0 %v582, 112
      %v1075 = vpop.permute.xlu0 %1074
      %1076 = vrot.lane.b32.xlu0 %v587, 112
      %v1077 = vpop.permute.xlu0 %1076
      %1078 = vrot.lane.b32.xlu0 %v577, 80
      %v1079 = vpop.permute.xlu0 %1078
      %1080 = vrot.lane.b32.xlu0 %v582, 80
      %v1081 = vpop.permute.xlu0 %1080
      %1082 = vrot.lane.b32.xlu0 %v587, 80
      %v1083 = vpop.permute.xlu0 %1082
      %v1084 = vsel %vm600, %v1073, 0
      %v1086 = vsel %vm600, %v1075, 0
      %v1088 = vsel %vm600, %v1077, 0
      %v1090 = vsel %vm600, %v1079, 0
      %v1092 = vsel %vm600, %v1081, 0
      %v1094 = vsel %vm600, %v1083, 0
      %1096 = vmatprep.subr.mxu0 0.0
      %1097 = vmatpush1.xpose.msra.mxu0 %v1090
      %1098 = vmatprep.subr.mxu0 0.0
      %1099 = vmatpush1.xpose.msra.mxu0 %v1092
      %1100 = vmatprep.subr.mxu0 0.0
      %1101 = vmatpush1.xpose.msra.mxu0 %v1094
      %1102 = vmatprep.subr.mxu0 0.0
      %1103 = vmatpush1.xpose.msra.mxu0 0.0
      %1104 = vmatprep.subr.mxu0 0.0
      %1105 = vmatpush1.xpose.msra.mxu0 0.0
      %1106 = vmatprep.subr.mxu0 0.0
      %1107 = vmatpush1.xpose.msra.mxu0 0.0
      %1108 = vmatprep.subr.mxu0 0.0
      %1109 = vmatpush1.xpose.msra.mxu0 0.0
      %1110 = vmatprep.subr.mxu0 0.0
      %1111 = vmatpush1.xpose.msra.mxu0 0.0
      %1112 = vmatprep.subr.mxu0 0.0
      %1113 = vmatpush1.xpose.msra.mxu0 0.0
      %1114 = vmatprep.subr.mxu0 0.0
      %1115 = vmatpush1.xpose.msra.mxu0 0.0
      %1116 = vmatprep.subr.mxu0 0.0
      %1117 = vmatpush1.xpose.msra.mxu0 0.0
      %1118 = vmatprep.subr.mxu0 0.0
      %1119 = vmatpush1.xpose.msra.mxu0 0.0
      %1120 = vmatprep.subr.mxu0 0.0
      %1121 = vmatpush1.xpose.msra.mxu0 0.0
      %1122 = vmatprep.subr.mxu0 0.0
      %1123 = vmatpush1.xpose.msra.mxu0 0.0
      %1124 = vmatprep.subr.mxu0 0.0
      %1125 = vmatpush1.xpose.msra.mxu0 0.0
      %1126 = vmatprep.subr.mxu0 0.0
      %1127 = vmatpush1.xpose.msra.mxu0 0.0
      %1128 = vmatprep.subr.mxu0 0.0
      %1129 = vmatpush1.xpose.msra.mxu0 0.0
      %1130 = vmatprep.subr.mxu0 0.0
      %1131 = vmatpush1.xpose.msra.mxu0 0.0
      %1132 = vmatprep.subr.mxu0 0.0
      %1133 = vmatpush1.xpose.msra.mxu0 0.0
      %1134 = vmatprep.subr.mxu0 0.0
      %1135 = vmatpush1.xpose.msra.mxu0 0.0
      %1136 = vmatprep.subr.mxu0 0.0
      %1137 = vmatpush1.xpose.msra.mxu0 0.0
      %1138 = vmatprep.subr.mxu0 0.0
      %1139 = vmatpush1.xpose.msra.mxu0 0.0
      %1140 = vmatprep.subr.mxu0 0.0
      %1141 = vmatpush1.xpose.msra.mxu0 0.0
      %1142 = vmatprep.subr.mxu0 0.0
      %1143 = vmatpush1.xpose.msra.mxu0 0.0
      %1144 = vmatprep.subr.mxu0 0.0
      %1145 = vmatpush1.xpose.msra.mxu0 0.0
      %1146 = vmatprep.subr.mxu0 0.0
      %1147 = vmatpush1.xpose.msra.mxu0 0.0
      %1148 = vmatprep.subr.mxu0 0.0
      %1149 = vmatpush1.xpose.msra.mxu0 0.0
      %1150 = vmatprep.subr.mxu0 0.0
      %1151 = vmatpush1.xpose.msra.mxu0 0.0
      %1152 = vmatprep.subr.mxu0 0.0
      %1153 = vmatpush1.xpose.msra.mxu0 0.0
      %1154 = vmatprep.subr.mxu0 0.0
      %1155 = vmatpush1.xpose.msra.mxu0 0.0
      %1156 = vmatprep.subr.mxu0 0.0
      %1157 = vmatpush1.xpose.msra.mxu0 0.0
      %1158 = vmatprep.subr.mxu0 0.0
      %1159 = vmatpush1.xpose.msra.mxu0 0.0
      %1160 = vmatprep.mubr.f32.mxu0 0.0
      %1161 = vmatmul.mubr.f32.gmra.mrb[0].mxu0 %v1084
      %v1162 = vpop.f32.mrb[0].mxu0
      %v1163 = vadd.f32 0.0, %v1162
      %v1164 = vpop.f32.mrb[0].mxu0
      %1165 = vmatprep.mubr.f32.mxu0 0.0
      %1166 = vmatmul.mubr.f32.gmra.mrb[0].mxu0 %v1086
      %v1167 = vpop.f32.mrb[0].mxu0
      %v1168 = vadd.f32 0.0, %v1167
      %v1169 = vpop.f32.mrb[0].mxu0
      %1170 = vmatprep.mubr.f32.mxu0 0.0
      %1171 = vmatmul.mubr.f32.gmra.mrb[0].mxu0 %v1088
      %v1172 = vpop.f32.mrb[0].mxu0
      %v1173 = vadd.f32 0.0, %v1172
      %v1174 = vpop.f32.mrb[0].mxu0
      %1175 = vdwg.mxu0
      %v1176 = vmul.f32 %v1163, 0.35355338
      %v1177 = vmul.f32 %v1168, 0.35355338
      %v1178 = vmul.f32 %v1173, 0.35355338
      %v1179 = vsel %vm590, %v1176, -1e+30
      %v1180 = vsel %vm590, %v1177, -1e+30
      %v1181 = vsel %vm590, %v1178, -1e+30
      %v1182 = vsel %vm699, %v1179, -inf
      %1183 = vmax.xlane.f32.xlu0 %v1182
      %v1184 = vpop.xlane.xlu0 %1183
      %v1185 = vsel %vm699, %v1180, -inf
      %1186 = vmax.xlane.f32.xlu0 %v1185
      %v1187 = vpop.xlane.xlu0 %1186
      %v1188 = vsel %vm699, %v1181, -inf
      %1189 = vmax.xlane.f32.xlu0 %v1188
      %v1190 = vpop.xlane.xlu0 %1189
      %v1191 = vsub.f32 %v1179, %v1184
      %v1192 = vsub.f32 %v1180, %v1187
      %v1193 = vsub.f32 %v1181, %v1190
      %v1194 = vmul.f32 %v1191, 1.442695
      %v1195 = vpow.pop %v1194
      %v1196 = vmul.f32 %v1192, 1.442695
      %v1197 = vpow.pop %v1196
      %v1198 = vmul.f32 %v1193, 1.442695
      %v1199 = vpow.pop %v1198
      %v1200 = vsel %vm699, %v1195, 0.0
      %1201 = vadd.xlane.f32.xlu0 %v1200
      %v1202 = vpop.xlane.xlu0 %1201
      %v1203 = vsel %vm699, %v1197, 0.0
      %1204 = vadd.xlane.f32.xlu0 %v1203
      %v1205 = vpop.xlane.xlu0 %1204
      %v1206 = vsel %vm699, %v1199, 0.0
      %1207 = vadd.xlane.f32.xlu0 %v1206
      %v1208 = vpop.xlane.xlu0 %1207
      %v1209 = vrcp.pop %v1202
      %v1210 = vrcp.pop %v1205
      %v1211 = vrcp.pop %v1208
      %v1212 = vmul.f32 %v1195, %v1209
      %v1213 = vmul.f32 %v1197, %v1210
      %v1214 = vmul.f32 %v1199, %v1211
      %1215 = vrot.lane.b32.xlu0 %v577, 48
      %v1216 = vpop.permute.xlu0 %1215
      %1217 = vrot.lane.b32.xlu0 %v582, 48
      %v1218 = vpop.permute.xlu0 %1217
      %1219 = vrot.lane.b32.xlu0 %v587, 48
      %v1220 = vpop.permute.xlu0 %1219
      %v1225 = vsel %vm699, %v1212, 0
      %v1228 = vsel %vm699, %v1213, 0
      %v1231 = vsel %vm699, %v1214, 0
      %1233 = vmatprep.subr.mxu0 0.0
      %1234 = vmatpush1.msra.mxu0 %v1216
      %1235 = vmatprep.subr.mxu0 0.0
      %1236 = vmatpush1.msra.mxu0 %v1218
      %1237 = vmatprep.subr.mxu0 0.0
      %1238 = vmatpush1.msra.mxu0 %v1220
      %1239 = vmatprep.subr.mxu0 0.0
      %1240 = vmatpush1.msra.mxu0 0.0
      %1241 = vmatprep.subr.mxu0 0.0
      %1242 = vmatpush1.msra.mxu0 0.0
      %1243 = vmatprep.subr.mxu0 0.0
      %1244 = vmatpush1.msra.mxu0 0.0
      %1245 = vmatprep.subr.mxu0 0.0
      %1246 = vmatpush1.msra.mxu0 0.0
      %1247 = vmatprep.subr.mxu0 0.0
      %1248 = vmatpush1.msra.mxu0 0.0
      %1249 = vmatprep.subr.mxu0 0.0
      %1250 = vmatpush1.msra.mxu0 0.0
      %1251 = vmatprep.subr.mxu0 0.0
      %1252 = vmatpush1.msra.mxu0 0.0
      %1253 = vmatprep.subr.mxu0 0.0
      %1254 = vmatpush1.msra.mxu0 0.0
      %1255 = vmatprep.subr.mxu0 0.0
      %1256 = vmatpush1.msra.mxu0 0.0
      %1257 = vmatprep.subr.mxu0 0.0
      %1258 = vmatpush1.msra.mxu0 0.0
      %1259 = vmatprep.subr.mxu0 0.0
      %1260 = vmatpush1.msra.mxu0 0.0
      %1261 = vmatprep.subr.mxu0 0.0
      %1262 = vmatpush1.msra.mxu0 0.0
      %1263 = vmatprep.subr.mxu0 0.0
      %1264 = vmatpush1.msra.mxu0 0.0
      %1265 = vmatprep.subr.mxu0 0.0
      %1266 = vmatpush1.msra.mxu0 0.0
      %1267 = vmatprep.subr.mxu0 0.0
      %1268 = vmatpush1.msra.mxu0 0.0
      %1269 = vmatprep.subr.mxu0 0.0
      %1270 = vmatpush1.msra.mxu0 0.0
      %1271 = vmatprep.subr.mxu0 0.0
      %1272 = vmatpush1.msra.mxu0 0.0
      %1273 = vmatprep.subr.mxu0 0.0
      %1274 = vmatpush1.msra.mxu0 0.0
      %1275 = vmatprep.subr.mxu0 0.0
      %1276 = vmatpush1.msra.mxu0 0.0
      %1277 = vmatprep.subr.mxu0 0.0
      %1278 = vmatpush1.msra.mxu0 0.0
      %1279 = vmatprep.subr.mxu0 0.0
      %1280 = vmatpush1.msra.mxu0 0.0
      %1281 = vmatprep.subr.mxu0 0.0
      %1282 = vmatpush1.msra.mxu0 0.0
      %1283 = vmatprep.subr.mxu0 0.0
      %1284 = vmatpush1.msra.mxu0 0.0
      %1285 = vmatprep.subr.mxu0 0.0
      %1286 = vmatpush1.msra.mxu0 0.0
      %1287 = vmatprep.subr.mxu0 0.0
      %1288 = vmatpush1.msra.mxu0 0.0
      %1289 = vmatprep.subr.mxu0 0.0
      %1290 = vmatpush1.msra.mxu0 0.0
      %1291 = vmatprep.subr.mxu0 0.0
      %1292 = vmatpush1.msra.mxu0 0.0
      %1293 = vmatprep.subr.mxu0 0.0
      %1294 = vmatpush1.msra.mxu0 0.0
      %1295 = vmatprep.subr.mxu0 0.0
      %1296 = vmatpush1.msra.mxu0 0.0
      %1297 = vmatprep.mubr.f32.mxu0 0.0
      %1298 = vmatmul.mubr.f32.gmra.mrb[0].mxu0 %v1225
      %v1299 = vpop.f32.mrb[0].mxu0
      %v1300 = vadd.f32 0.0, %v1299
      %v1301 = vpop.f32.mrb[0].mxu0
      %1302 = vmatprep.mubr.f32.mxu0 0.0
      %1303 = vmatmul.mubr.f32.gmra.mrb[0].mxu0 %v1228
      %v1304 = vpop.f32.mrb[0].mxu0
      %v1305 = vadd.f32 0.0, %v1304
      %v1306 = vpop.f32.mrb[0].mxu0
      %1307 = vmatprep.mubr.f32.mxu0 0.0
      %1308 = vmatmul.mubr.f32.gmra.mrb[0].mxu0 %v1231
      %v1309 = vpop.f32.mrb[0].mxu0
      %v1310 = vadd.f32 0.0, %v1309
      %v1311 = vpop.f32.mrb[0].mxu0
      %1312 = vdwg.mxu0
      %1313 = vrot.lane.b32.xlu0 %v577, 104
      %v1314 = vpop.permute.xlu0 %1313
      %1315 = vrot.lane.b32.xlu0 %v582, 104
      %v1316 = vpop.permute.xlu0 %1315
      %1317 = vrot.lane.b32.xlu0 %v587, 104
      %v1318 = vpop.permute.xlu0 %1317
      %1319 = vrot.lane.b32.xlu0 %v577, 72
      %v1320 = vpop.permute.xlu0 %1319
      %1321 = vrot.lane.b32.xlu0 %v582, 72
      %v1322 = vpop.permute.xlu0 %1321
      %1323 = vrot.lane.b32.xlu0 %v587, 72
      %v1324 = vpop.permute.xlu0 %1323
      %v1325 = vsel %vm600, %v1314, 0
      %v1327 = vsel %vm600, %v1316, 0
      %v1329 = vsel %vm600, %v1318, 0
      %v1331 = vsel %vm600, %v1320, 0
      %v1333 = vsel %vm600, %v1322, 0
      %v1335 = vsel %vm600, %v1324, 0
      %1337 = vmatprep.subr.mxu0 0.0
      %1338 = vmatpush1.xpose.msra.mxu0 %v1331
      %1339 = vmatprep.subr.mxu0 0.0
      %1340 = vmatpush1.xpose.msra.mxu0 %v1333
      %1341 = vmatprep.subr.mxu0 0.0
      %1342 = vmatpush1.xpose.msra.mxu0 %v1335
      %1343 = vmatprep.subr.mxu0 0.0
      %1344 = vmatpush1.xpose.msra.mxu0 0.0
      %1345 = vmatprep.subr.mxu0 0.0
      %1346 = vmatpush1.xpose.msra.mxu0 0.0
      %1347 = vmatprep.subr.mxu0 0.0
      %1348 = vmatpush1.xpose.msra.mxu0 0.0
      %1349 = vmatprep.subr.mxu0 0.0
      %1350 = vmatpush1.xpose.msra.mxu0 0.0
      %1351 = vmatprep.subr.mxu0 0.0
      %1352 = vmatpush1.xpose.msra.mxu0 0.0
      %1353 = vmatprep.subr.mxu0 0.0
      %1354 = vmatpush1.xpose.msra.mxu0 0.0
      %1355 = vmatprep.subr.mxu0 0.0
      %1356 = vmatpush1.xpose.msra.mxu0 0.0
      %1357 = vmatprep.subr.mxu0 0.0
      %1358 = vmatpush1.xpose.msra.mxu0 0.0
      %1359 = vmatprep.subr.mxu0 0.0
      %1360 = vmatpush1.xpose.msra.mxu0 0.0
      %1361 = vmatprep.subr.mxu0 0.0
      %1362 = vmatpush1.xpose.msra.mxu0 0.0
      %1363 = vmatprep.subr.mxu0 0.0
      %1364 = vmatpush1.xpose.msra.mxu0 0.0
      %1365 = vmatprep.subr.mxu0 0.0
      %1366 = vmatpush1.xpose.msra.mxu0 0.0
      %1367 = vmatprep.subr.mxu0 0.0
      %1368 = vmatpush1.xpose.msra.mxu0 0.0
      %1369 = vmatprep.subr.mxu0 0.0
      %1370 = vmatpush1.xpose.msra.mxu0 0.0
      %1371 = vmatprep.subr.mxu0 0.0
      %1372 = vmatpush1.xpose.msra.mxu0 0.0
      %1373 = vmatprep.subr.mxu0 0.0
      %1374 = vmatpush1.xpose.msra.mxu0 0.0
      %1375 = vmatprep.subr.mxu0 0.0
      %1376 = vmatpush1.xpose.msra.mxu0 0.0
      %1377 = vmatprep.subr.mxu0 0.0
      %1378 = vmatpush1.xpose.msra.mxu0 0.0
      %1379 = vmatprep.subr.mxu0 0.0
      %1380 = vmatpush1.xpose.msra.mxu0 0.0
      %1381 = vmatprep.subr.mxu0 0.0
      %1382 = vmatpush1.xpose.msra.mxu0 0.0
      %1383 = vmatprep.subr.mxu0 0.0
      %1384 = vmatpush1.xpose.msra.mxu0 0.0
      %1385 = vmatprep.subr.mxu0 0.0
      %1386 = vmatpush1.xpose.msra.mxu0 0.0
      %1387 = vmatprep.subr.mxu0 0.0
      %1388 = vmatpush1.xpose.msra.mxu0 0.0
      %1389 = vmatprep.subr.mxu0 0.0
      %1390 = vmatpush1.xpose.msra.mxu0 0.0
      %1391 = vmatprep.subr.mxu0 0.0
      %1392 = vmatpush1.xpose.msra.mxu0 0.0
      %1393 = vmatprep.subr.mxu0 0.0
      %1394 = vmatpush1.xpose.msra.mxu0 0.0
      %1395 = vmatprep.subr.mxu0 0.0
      %1396 = vmatpush1.xpose.msra.mxu0 0.0
      %1397 = vmatprep.subr.mxu0 0.0
      %1398 = vmatpush1.xpose.msra.mxu0 0.0
      %1399 = vmatprep.subr.mxu0 0.0
      %1400 = vmatpush1.xpose.msra.mxu0 0.0
      %1401 = vmatprep.mubr.f32.mxu0 0.0
      %1402 = vmatmul.mubr.f32.gmra.mrb[0].mxu0 %v1325
      %v1403 = vpop.f32.mrb[0].mxu0
      %v1404 = vadd.f32 0.0, %v1403
      %v1405 = vpop.f32.mrb[0].mxu0
      %1406 = vmatprep.mubr.f32.mxu0 0.0
      %1407 = vmatmul.mubr.f32.gmra.mrb[0].mxu0 %v1327
      %v1408 = vpop.f32.mrb[0].mxu0
      %v1409 = vadd.f32 0.0, %v1408
      %v1410 = vpop.f32.mrb[0].mxu0
      %1411 = vmatprep.mubr.f32.mxu0 0.0
      %1412 = vmatmul.mubr.f32.gmra.mrb[0].mxu0 %v1329
      %v1413 = vpop.f32.mrb[0].mxu0
      %v1414 = vadd.f32 0.0, %v1413
      %v1415 = vpop.f32.mrb[0].mxu0
      %1416 = vdwg.mxu0
      %v1417 = vmul.f32 %v1404, 0.35355338
      %v1418 = vmul.f32 %v1409, 0.35355338
      %v1419 = vmul.f32 %v1414, 0.35355338
      %v1420 = vsel %vm590, %v1417, -1e+30
      %v1421 = vsel %vm590, %v1418, -1e+30
      %v1422 = vsel %vm590, %v1419, -1e+30
      %v1423 = vsel %vm699, %v1420, -inf
      %1424 = vmax.xlane.f32.xlu0 %v1423
      %v1425 = vpop.xlane.xlu0 %1424
      %v1426 = vsel %vm699, %v1421, -inf
      %1427 = vmax.xlane.f32.xlu0 %v1426
      %v1428 = vpop.xlane.xlu0 %1427
      %v1429 = vsel %vm699, %v1422, -inf
      %1430 = vmax.xlane.f32.xlu0 %v1429
      %v1431 = vpop.xlane.xlu0 %1430
      %v1432 = vsub.f32 %v1420, %v1425
      %v1433 = vsub.f32 %v1421, %v1428
      %v1434 = vsub.f32 %v1422, %v1431
      %v1435 = vmul.f32 %v1432, 1.442695
      %v1436 = vpow.pop %v1435
      %v1437 = vmul.f32 %v1433, 1.442695
      %v1438 = vpow.pop %v1437
      %v1439 = vmul.f32 %v1434, 1.442695
      %v1440 = vpow.pop %v1439
      %v1441 = vsel %vm699, %v1436, 0.0
      %1442 = vadd.xlane.f32.xlu0 %v1441
      %v1443 = vpop.xlane.xlu0 %1442
      %v1444 = vsel %vm699, %v1438, 0.0
      %1445 = vadd.xlane.f32.xlu0 %v1444
      %v1446 = vpop.xlane.xlu0 %1445
      %v1447 = vsel %vm699, %v1440, 0.0
      %1448 = vadd.xlane.f32.xlu0 %v1447
      %v1449 = vpop.xlane.xlu0 %1448
      %v1450 = vrcp.pop %v1443
      %v1451 = vrcp.pop %v1446
      %v1452 = vrcp.pop %v1449
      %v1453 = vmul.f32 %v1436, %v1450
      %v1454 = vmul.f32 %v1438, %v1451
      %v1455 = vmul.f32 %v1440, %v1452
      %1456 = vrot.lane.b32.xlu0 %v577, 40
      %v1457 = vpop.permute.xlu0 %1456
      %1458 = vrot.lane.b32.xlu0 %v582, 40
      %v1459 = vpop.permute.xlu0 %1458
      %1460 = vrot.lane.b32.xlu0 %v587, 40
      %v1461 = vpop.permute.xlu0 %1460
      %v1466 = vsel %vm699, %v1453, 0
      %v1469 = vsel %vm699, %v1454, 0
      %v1472 = vsel %vm699, %v1455, 0
      %1474 = vmatprep.subr.mxu0 0.0
      %1475 = vmatpush1.msra.mxu0 %v1457
      %1476 = vmatprep.subr.mxu0 0.0
      %1477 = vmatpush1.msra.mxu0 %v1459
      %1478 = vmatprep.subr.mxu0 0.0
      %1479 = vmatpush1.msra.mxu0 %v1461
      %1480 = vmatprep.subr.mxu0 0.0
      %1481 = vmatpush1.msra.mxu0 0.0
      %1482 = vmatprep.subr.mxu0 0.0
      %1483 = vmatpush1.msra.mxu0 0.0
      %1484 = vmatprep.subr.mxu0 0.0
      %1485 = vmatpush1.msra.mxu0 0.0
      %1486 = vmatprep.subr.mxu0 0.0
      %1487 = vmatpush1.msra.mxu0 0.0
      %1488 = vmatprep.subr.mxu0 0.0
      %1489 = vmatpush1.msra.mxu0 0.0
      %1490 = vmatprep.subr.mxu0 0.0
      %1491 = vmatpush1.msra.mxu0 0.0
      %1492 = vmatprep.subr.mxu0 0.0
      %1493 = vmatpush1.msra.mxu0 0.0
      %1494 = vmatprep.subr.mxu0 0.0
      %1495 = vmatpush1.msra.mxu0 0.0
      %1496 = vmatprep.subr.mxu0 0.0
      %1497 = vmatpush1.msra.mxu0 0.0
      %1498 = vmatprep.subr.mxu0 0.0
      %1499 = vmatpush1.msra.mxu0 0.0
      %1500 = vmatprep.subr.mxu0 0.0
      %1501 = vmatpush1.msra.mxu0 0.0
      %1502 = vmatprep.subr.mxu0 0.0
      %1503 = vmatpush1.msra.mxu0 0.0
      %1504 = vmatprep.subr.mxu0 0.0
      %1505 = vmatpush1.msra.mxu0 0.0
      %1506 = vmatprep.subr.mxu0 0.0
      %1507 = vmatpush1.msra.mxu0 0.0
      %1508 = vmatprep.subr.mxu0 0.0
      %1509 = vmatpush1.msra.mxu0 0.0
      %1510 = vmatprep.subr.mxu0 0.0
      %1511 = vmatpush1.msra.mxu0 0.0
      %1512 = vmatprep.subr.mxu0 0.0
      %1513 = vmatpush1.msra.mxu0 0.0
      %1514 = vmatprep.subr.mxu0 0.0
      %1515 = vmatpush1.msra.mxu0 0.0
      %1516 = vmatprep.subr.mxu0 0.0
      %1517 = vmatpush1.msra.mxu0 0.0
      %1518 = vmatprep.subr.mxu0 0.0
      %1519 = vmatpush1.msra.mxu0 0.0
      %1520 = vmatprep.subr.mxu0 0.0
      %1521 = vmatpush1.msra.mxu0 0.0
      %1522 = vmatprep.subr.mxu0 0.0
      %1523 = vmatpush1.msra.mxu0 0.0
      %1524 = vmatprep.subr.mxu0 0.0
      %1525 = vmatpush1.msra.mxu0 0.0
      %1526 = vmatprep.subr.mxu0 0.0
      %1527 = vmatpush1.msra.mxu0 0.0
      %1528 = vmatprep.subr.mxu0 0.0
      %1529 = vmatpush1.msra.mxu0 0.0
      %1530 = vmatprep.subr.mxu0 0.0
      %1531 = vmatpush1.msra.mxu0 0.0
      %1532 = vmatprep.subr.mxu0 0.0
      %1533 = vmatpush1.msra.mxu0 0.0
      %1534 = vmatprep.subr.mxu0 0.0
      %1535 = vmatpush1.msra.mxu0 0.0
      %1536 = vmatprep.subr.mxu0 0.0
      %1537 = vmatpush1.msra.mxu0 0.0
      %1538 = vmatprep.mubr.f32.mxu0 0.0
      %1539 = vmatmul.mubr.f32.gmra.mrb[0].mxu0 %v1466
      %v1540 = vpop.f32.mrb[0].mxu0
      %v1541 = vadd.f32 0.0, %v1540
      %v1542 = vpop.f32.mrb[0].mxu0
      %1543 = vmatprep.mubr.f32.mxu0 0.0
      %1544 = vmatmul.mubr.f32.gmra.mrb[0].mxu0 %v1469
      %v1545 = vpop.f32.mrb[0].mxu0
      %v1546 = vadd.f32 0.0, %v1545
      %v1547 = vpop.f32.mrb[0].mxu0
      %1548 = vmatprep.mubr.f32.mxu0 0.0
      %1549 = vmatmul.mubr.f32.gmra.mrb[0].mxu0 %v1472
      %v1550 = vpop.f32.mrb[0].mxu0
      %v1551 = vadd.f32 0.0, %v1550
      %v1552 = vpop.f32.mrb[0].mxu0
      %1553 = vdwg.mxu0
      %1557 = vrot.lane.b32.xlu0 %v1059, 8
      %v1558 = vpop.permute.xlu0 %1557
      %1559 = vrot.lane.b32.xlu0 %v1064, 8
      %v1560 = vpop.permute.xlu0 %1559
      %1561 = vrot.lane.b32.xlu0 %v1069, 8
      %v1562 = vpop.permute.xlu0 %1561
      %1569 = vrot.lane.b32.xlu0 %v1300, 16
      %v1570 = vpop.permute.xlu0 %1569
      %1571 = vrot.lane.b32.xlu0 %v1305, 16
      %v1572 = vpop.permute.xlu0 %1571
      %1573 = vrot.lane.b32.xlu0 %v1310, 16
      %v1574 = vpop.permute.xlu0 %1573
      %1581 = vrot.lane.b32.xlu0 %v1541, 24
      %v1582 = vpop.permute.xlu0 %1581
      %1583 = vrot.lane.b32.xlu0 %v1546, 24
      %v1584 = vpop.permute.xlu0 %1583
      %1585 = vrot.lane.b32.xlu0 %v1551, 24
      %v1586 = vpop.permute.xlu0 %1585
      %v1590 = vsel %vm600, %v818, %v1558
      %v1591 = vsel %vm600, %v823, %v1560
      %v1592 = vsel %vm600, %v828, %v1562
      %vm1593 = vcmask 130048
      %v1594 = vsel %vm1593, %v1590, %v1570
      %v1595 = vsel %vm1593, %v1591, %v1572
      %v1596 = vsel %vm1593, %v1592, %v1574
      %v1597 = vsel %vm699, %v1594, %v1582
      %v1598 = vsel %vm699, %v1595, %v1584
      %v1599 = vsel %vm699, %v1596, %v1586
      %v1600 = vld [vmem:[%s4] sm:$0xff]
      %v1601 = vld [vmem:[%s4 + $0x8] sm:$0xff]
      %v1602 = vld [vmem:[%s4 + $0x10] sm:$0xff]
      %v1603 = vld [vmem:[%s4 + $0x18] sm:$0xff]
      %v1604 = vld [vmem:[%s5] sm:$0x1]
      %v1606 = vlaneseq
      %v1607 = vshrl.u32 %v1606, 7
      %v1608 = vsub.s32 0, %v1607
      %v1609 = vrot.slane %v1604, %v1608
      %vm1611 = vcmask 261120
      %v1613 = vsel %vm1611, %v1597, 0
      %v1616 = vsel %vm1611, %v1598, 0
      %v1619 = vsel %vm1611, %v1599, 0
      %1621 = vmatprep.subr.mxu0 0.0
      %1622 = vmatpush1.msra.mxu0 %v1600
      %1623 = vmatprep.subr.mxu0 0.0
      %1624 = vmatpush1.msra.mxu0 %v1601
      %1625 = vmatprep.subr.mxu0 0.0
      %1626 = vmatpush1.msra.mxu0 %v1602
      %1627 = vmatprep.subr.mxu0 0.0
      %1628 = vmatpush1.msra.mxu0 %v1603
      %1629 = vmatprep.subr.mxu0 0.0
      %1630 = vmatpush1.msra.mxu0 0.0
      %1631 = vmatprep.subr.mxu0 0.0
      %1632 = vmatpush1.msra.mxu0 0.0
      %1633 = vmatprep.subr.mxu0 0.0
      %1634 = vmatpush1.msra.mxu0 0.0
      %1635 = vmatprep.subr.mxu0 0.0
      %1636 = vmatpush1.msra.mxu0 0.0
      %1637 = vmatprep.subr.mxu0 0.0
      %1638 = vmatpush1.msra.mxu0 0.0
      %1639 = vmatprep.subr.mxu0 0.0
      %1640 = vmatpush1.msra.mxu0 0.0
      %1641 = vmatprep.subr.mxu0 0.0
      %1642 = vmatpush1.msra.mxu0 0.0
      %1643 = vmatprep.subr.mxu0 0.0
      %1644 = vmatpush1.msra.mxu0 0.0
      %1645 = vmatprep.subr.mxu0 0.0
      %1646 = vmatpush1.msra.mxu0 0.0
      %1647 = vmatprep.subr.mxu0 0.0
      %1648 = vmatpush1.msra.mxu0 0.0
      %1649 = vmatprep.subr.mxu0 0.0
      %1650 = vmatpush1.msra.mxu0 0.0
      %1651 = vmatprep.subr.mxu0 0.0
      %1652 = vmatpush1.msra.mxu0 0.0
      %1653 = vmatprep.subr.mxu0 0.0
      %1654 = vmatpush1.msra.mxu0 0.0
      %1655 = vmatprep.subr.mxu0 0.0
      %1656 = vmatpush1.msra.mxu0 0.0
      %1657 = vmatprep.subr.mxu0 0.0
      %1658 = vmatpush1.msra.mxu0 0.0
      %1659 = vmatprep.subr.mxu0 0.0
      %1660 = vmatpush1.msra.mxu0 0.0
      %1661 = vmatprep.subr.mxu0 0.0
      %1662 = vmatpush1.msra.mxu0 0.0
      %1663 = vmatprep.subr.mxu0 0.0
      %1664 = vmatpush1.msra.mxu0 0.0
      %1665 = vmatprep.subr.mxu0 0.0
      %1666 = vmatpush1.msra.mxu0 0.0
      %1667 = vmatprep.subr.mxu0 0.0
      %1668 = vmatpush1.msra.mxu0 0.0
      %1669 = vmatprep.subr.mxu0 0.0
      %1670 = vmatpush1.msra.mxu0 0.0
      %1671 = vmatprep.subr.mxu0 0.0
      %1672 = vmatpush1.msra.mxu0 0.0
      %1673 = vmatprep.subr.mxu0 0.0
      %1674 = vmatpush1.msra.mxu0 0.0
      %1675 = vmatprep.subr.mxu0 0.0
      %1676 = vmatpush1.msra.mxu0 0.0
      %1677 = vmatprep.subr.mxu0 0.0
      %1678 = vmatpush1.msra.mxu0 0.0
      %1679 = vmatprep.subr.mxu0 0.0
      %1680 = vmatpush1.msra.mxu0 0.0
      %1681 = vmatprep.subr.mxu0 0.0
      %1682 = vmatpush1.msra.mxu0 0.0
      %1683 = vmatprep.subr.mxu0 0.0
      %1684 = vmatpush1.msra.mxu0 0.0
      %1685 = vmatprep.mubr.f32.mxu0 0.0
      %1686 = vmatmul.mubr.f32.gmra.mrb[0].mxu0 %v1613
      %v1687 = vpop.f32.mrb[0].mxu0
      %v1688 = vadd.f32 %v1609, %v1687
      %v1689 = vpop.f32.mrb[0].mxu0
      %1690 = vmatprep.mubr.f32.mxu0 0.0
      %1691 = vmatmul.mubr.f32.gmra.mrb[0].mxu0 %v1616
      %v1692 = vpop.f32.mrb[0].mxu0
      %v1693 = vadd.f32 %v1609, %v1692
      %v1694 = vpop.f32.mrb[0].mxu0
      %1695 = vmatprep.mubr.f32.mxu0 0.0
      %1696 = vmatmul.mubr.f32.gmra.mrb[0].mxu0 %v1619
      %v1697 = vpop.f32.mrb[0].mxu0
      %v1698 = vadd.f32 %v1609, %v1697
      %v1699 = vpop.f32.mrb[0].mxu0
      %1700 = vdwg.mxu0
      %v1701 = vadd.f32 %v1688, %v414
      %v1702 = vadd.f32 %v1693, %v415
      %v1703 = vadd.f32 %v1698, %v416
      %1704 = vadd.xlane.f32.xlu0 %v1701
      %v1705 = vpop.xlane.xlu0 %1704
      %1706 = vadd.xlane.f32.xlu0 %v1702
      %v1707 = vpop.xlane.xlu0 %1706
      %1708 = vadd.xlane.f32.xlu0 %v1703
      %v1709 = vpop.xlane.xlu0 %1708
      %v1710 = vmul.f32 %v1705, 0.03125
      %v1711 = vmul.f32 %v1707, 0.03125
      %v1712 = vmul.f32 %v1709, 0.03125
      %v1713 = vsub.f32 %v1701, %v1710
      %v1714 = vsub.f32 %v1702, %v1711
      %v1715 = vsub.f32 %v1703, %v1712
      %v1716 = vsel %vm440, %v1713, 0.0
      %v1717 = vsel %vm440, %v1714, 0.0
      %v1718 = vsel %vm440, %v1715, 0.0
      %v1719 = vmul.f32 %v1716, %v1716
      %v1720 = vmul.f32 %v1717, %v1717
      %v1721 = vmul.f32 %v1718, %v1718
      %1722 = vadd.xlane.f32.xlu0 %v1719
      %v1723 = vpop.xlane.xlu0 %1722
      %1724 = vadd.xlane.f32.xlu0 %v1720
      %v1725 = vpop.xlane.xlu0 %1724
      %1726 = vadd.xlane.f32.xlu0 %v1721
      %v1727 = vpop.xlane.xlu0 %1726
      %v1728 = vmul.f32 %v1723, 0.03125
      %v1729 = vmul.f32 %v1725, 0.03125
      %v1730 = vmul.f32 %v1727, 0.03125
      %v1731 = vadd.f32 %v1728, 1e-05
      %v1732 = vadd.f32 %v1729, 1e-05
      %v1733 = vadd.f32 %v1730, 1e-05
      %v1734 = vrsqrt.pop %v1731
      %v1735 = vrsqrt.pop %v1732
      %v1736 = vrsqrt.pop %v1733
      %v1737 = vmul.f32 %v1716, %v1734
      %v1738 = vmul.f32 %v1717, %v1735
      %v1739 = vmul.f32 %v1718, %v1736
      %v1740 = vld [vmem:[%s6] sm:$0x1]
      %v1742 = vlaneseq
      %v1743 = vshrl.u32 %v1742, 7
      %v1744 = vsub.s32 0, %v1743
      %v1745 = vrot.slane %v1740, %v1744
      %v1747 = vmul.f32 %v1737, %v1745
      %v1748 = vmul.f32 %v1738, %v1745
      %v1749 = vmul.f32 %v1739, %v1745
      %v1750 = vld [vmem:[%s7] sm:$0x1]
      %v1752 = vlaneseq
      %v1753 = vshrl.u32 %v1752, 7
      %v1754 = vsub.s32 0, %v1753
      %v1755 = vrot.slane %v1750, %v1754
      %v1757 = vadd.f32 %v1747, %v1755
      %v1758 = vadd.f32 %v1748, %v1755
      %v1759 = vadd.f32 %v1749, %v1755
      %v1760 = vld [vmem:[%s8] sm:$0xff]
      %v1761 = vld [vmem:[%s8 + $0x8] sm:$0xff]
      %v1762 = vld [vmem:[%s8 + $0x10] sm:$0xff]
      %v1763 = vld [vmem:[%s8 + $0x18] sm:$0xff]
      %v1764 = vld [vmem:[%s8 + $0x20] sm:$0xff]
      %v1765 = vld [vmem:[%s8 + $0x28] sm:$0xff]
      %v1766 = vld [vmem:[%s8 + $0x30] sm:$0xff]
      %v1767 = vld [vmem:[%s8 + $0x38] sm:$0xff]
      %v1768 = vld [vmem:[%s8 + $0x40] sm:$0xff]
      %v1769 = vld [vmem:[%s8 + $0x48] sm:$0xff]
      %v1770 = vld [vmem:[%s8 + $0x50] sm:$0xff]
      %v1771 = vld [vmem:[%s8 + $0x58] sm:$0xff]
      %v1772 = vld [vmem:[%s8 + $0x60] sm:$0xff]
      %v1773 = vld [vmem:[%s8 + $0x68] sm:$0xff]
      %v1774 = vld [vmem:[%s8 + $0x70] sm:$0xff]
      %v1775 = vld [vmem:[%s8 + $0x78] sm:$0xff]
      %v1776 = vld [vmem:[%s9] sm:$0x1]
      %v1778 = vlaneseq
      %v1779 = vshrl.u32 %v1778, 7
      %v1780 = vsub.s32 0, %v1779
      %v1781 = vrot.slane %v1776, %v1780
      %1783 = vmatprep.subr.mxu0 0.0
      %1784 = vmatpush1.msra.mxu0 %v1760
      %1785 = vmatprep.subr.mxu0 0.0
      %1786 = vmatpush1.msra.mxu0 %v1761
      %1787 = vmatprep.subr.mxu0 0.0
      %1788 = vmatpush1.msra.mxu0 %v1762
      %1789 = vmatprep.subr.mxu0 0.0
      %1790 = vmatpush1.msra.mxu0 %v1763
      %1791 = vmatprep.subr.mxu0 0.0
      %1792 = vmatpush1.msra.mxu0 %v1764
      %1793 = vmatprep.subr.mxu0 0.0
      %1794 = vmatpush1.msra.mxu0 %v1765
      %1795 = vmatprep.subr.mxu0 0.0
      %1796 = vmatpush1.msra.mxu0 %v1766
      %1797 = vmatprep.subr.mxu0 0.0
      %1798 = vmatpush1.msra.mxu0 %v1767
      %1799 = vmatprep.subr.mxu0 0.0
      %1800 = vmatpush1.msra.mxu0 %v1768
      %1801 = vmatprep.subr.mxu0 0.0
      %1802 = vmatpush1.msra.mxu0 %v1769
      %1803 = vmatprep.subr.mxu0 0.0
      %1804 = vmatpush1.msra.mxu0 %v1770
      %1805 = vmatprep.subr.mxu0 0.0
      %1806 = vmatpush1.msra.mxu0 %v1771
      %1807 = vmatprep.subr.mxu0 0.0
      %1808 = vmatpush1.msra.mxu0 %v1772
      %1809 = vmatprep.subr.mxu0 0.0
      %1810 = vmatpush1.msra.mxu0 %v1773
      %1811 = vmatprep.subr.mxu0 0.0
      %1812 = vmatpush1.msra.mxu0 %v1774
      %1813 = vmatprep.subr.mxu0 0.0
      %1814 = vmatpush1.msra.mxu0 %v1775
      %1815 = vmatprep.subr.mxu0 0.0
      %1816 = vmatpush1.msra.mxu0 0.0
      %1817 = vmatprep.subr.mxu0 0.0
      %1818 = vmatpush1.msra.mxu0 0.0
      %1819 = vmatprep.subr.mxu0 0.0
      %1820 = vmatpush1.msra.mxu0 0.0
      %1821 = vmatprep.subr.mxu0 0.0
      %1822 = vmatpush1.msra.mxu0 0.0
      %1823 = vmatprep.subr.mxu0 0.0
      %1824 = vmatpush1.msra.mxu0 0.0
      %1825 = vmatprep.subr.mxu0 0.0
      %1826 = vmatpush1.msra.mxu0 0.0
      %1827 = vmatprep.subr.mxu0 0.0
      %1828 = vmatpush1.msra.mxu0 0.0
      %1829 = vmatprep.subr.mxu0 0.0
      %1830 = vmatpush1.msra.mxu0 0.0
      %1831 = vmatprep.subr.mxu0 0.0
      %1832 = vmatpush1.msra.mxu0 0.0
      %1833 = vmatprep.subr.mxu0 0.0
      %1834 = vmatpush1.msra.mxu0 0.0
      %1835 = vmatprep.subr.mxu0 0.0
      %1836 = vmatpush1.msra.mxu0 0.0
      %1837 = vmatprep.subr.mxu0 0.0
      %1838 = vmatpush1.msra.mxu0 0.0
      %1839 = vmatprep.subr.mxu0 0.0
      %1840 = vmatpush1.msra.mxu0 0.0
      %1841 = vmatprep.subr.mxu0 0.0
      %1842 = vmatpush1.msra.mxu0 0.0
      %1843 = vmatprep.subr.mxu0 0.0
      %1844 = vmatpush1.msra.mxu0 0.0
      %1845 = vmatprep.subr.mxu0 0.0
      %1846 = vmatpush1.msra.mxu0 0.0
      %1847 = vmatprep.mubr.f32.mxu0 0.0
      %1848 = vmatmul.mubr.f32.gmra.mrb[0].mxu0 %v1757
      %v1849 = vpop.f32.mrb[0].mxu0
      %v1850 = vadd.f32 %v1781, %v1849
      %v1851 = vpop.f32.mrb[0].mxu0
      %1852 = vmatprep.mubr.f32.mxu0 0.0
      %1853 = vmatmul.mubr.f32.gmra.mrb[0].mxu0 %v1758
      %v1854 = vpop.f32.mrb[0].mxu0
      %v1855 = vadd.f32 %v1781, %v1854
      %v1856 = vpop.f32.mrb[0].mxu0
      %1857 = vmatprep.mubr.f32.mxu0 0.0
      %1858 = vmatmul.mubr.f32.gmra.mrb[0].mxu0 %v1759
      %v1859 = vpop.f32.mrb[0].mxu0
      %v1860 = vadd.f32 %v1781, %v1859
      %v1861 = vpop.f32.mrb[0].mxu0
      %1862 = vdwg.mxu0
      %v1863 = vmul.f32 %v1850, 0.5
      %v1864 = vmul.f32 %v1855, 0.5
      %v1865 = vmul.f32 %v1860, 0.5
      %v1866 = vmul.f32 %v1850, 0.70710677
      %v1867 = vmul.f32 %v1855, 0.70710677
      %v1868 = vmul.f32 %v1860, 0.70710677
      %v1869 = verf.f32.pop %v1866
      %v1870 = verf.f32.pop %v1867
      %v1871 = verf.f32.pop %v1868
      %v1872 = vadd.f32 %v1869, 1.0
      %v1873 = vadd.f32 %v1870, 1.0
      %v1874 = vadd.f32 %v1871, 1.0
      %v1875 = vmul.f32 %v1863, %v1872
      %v1876 = vmul.f32 %v1864, %v1873
      %v1877 = vmul.f32 %v1865, %v1874
      %v1878 = vld [vmem:[%s10] sm:$0xff]
      %v1879 = vld [vmem:[%s10 + $0x8] sm:$0xff]
      %v1880 = vld [vmem:[%s10 + $0x10] sm:$0xff]
      %v1881 = vld [vmem:[%s10 + $0x18] sm:$0xff]
      %v1882 = vld [vmem:[%s10 + $0x20] sm:$0xff]
      %v1883 = vld [vmem:[%s10 + $0x28] sm:$0xff]
      %v1884 = vld [vmem:[%s10 + $0x30] sm:$0xff]
      %v1885 = vld [vmem:[%s10 + $0x38] sm:$0xff]
      %v1886 = vld [vmem:[%s11] sm:$0x1]
      %v1888 = vlaneseq
      %v1889 = vshrl.u32 %v1888, 7
      %v1890 = vsub.s32 0, %v1889
      %v1891 = vrot.slane %v1886, %v1890
      %vm1893 = vcmask 523264
      %v1895 = vsel %vm1893, %v1875, 0
      %v1898 = vsel %vm1893, %v1876, 0
      %v1901 = vsel %vm1893, %v1877, 0
      %1903 = vmatprep.subr.mxu0 0.0
      %1904 = vmatpush1.msra.mxu0 %v1878
      %1905 = vmatprep.subr.mxu0 0.0
      %1906 = vmatpush1.msra.mxu0 %v1879
      %1907 = vmatprep.subr.mxu0 0.0
      %1908 = vmatpush1.msra.mxu0 %v1880
      %1909 = vmatprep.subr.mxu0 0.0
      %1910 = vmatpush1.msra.mxu0 %v1881
      %1911 = vmatprep.subr.mxu0 0.0
      %1912 = vmatpush1.msra.mxu0 %v1882
      %1913 = vmatprep.subr.mxu0 0.0
      %1914 = vmatpush1.msra.mxu0 %v1883
      %1915 = vmatprep.subr.mxu0 0.0
      %1916 = vmatpush1.msra.mxu0 %v1884
      %1917 = vmatprep.subr.mxu0 0.0
      %1918 = vmatpush1.msra.mxu0 %v1885
      %1919 = vmatprep.subr.mxu0 0.0
      %1920 = vmatpush1.msra.mxu0 0.0
      %1921 = vmatprep.subr.mxu0 0.0
      %1922 = vmatpush1.msra.mxu0 0.0
      %1923 = vmatprep.subr.mxu0 0.0
      %1924 = vmatpush1.msra.mxu0 0.0
      %1925 = vmatprep.subr.mxu0 0.0
      %1926 = vmatpush1.msra.mxu0 0.0
      %1927 = vmatprep.subr.mxu0 0.0
      %1928 = vmatpush1.msra.mxu0 0.0
      %1929 = vmatprep.subr.mxu0 0.0
      %1930 = vmatpush1.msra.mxu0 0.0
      %1931 = vmatprep.subr.mxu0 0.0
      %1932 = vmatpush1.msra.mxu0 0.0
      %1933 = vmatprep.subr.mxu0 0.0
      %1934 = vmatpush1.msra.mxu0 0.0
      %1935 = vmatprep.subr.mxu0 0.0
      %1936 = vmatpush1.msra.mxu0 0.0
      %1937 = vmatprep.subr.mxu0 0.0
      %1938 = vmatpush1.msra.mxu0 0.0
      %1939 = vmatprep.subr.mxu0 0.0
      %1940 = vmatpush1.msra.mxu0 0.0
      %1941 = vmatprep.subr.mxu0 0.0
      %1942 = vmatpush1.msra.mxu0 0.0
      %1943 = vmatprep.subr.mxu0 0.0
      %1944 = vmatpush1.msra.mxu0 0.0
      %1945 = vmatprep.subr.mxu0 0.0
      %1946 = vmatpush1.msra.mxu0 0.0
      %1947 = vmatprep.subr.mxu0 0.0
      %1948 = vmatpush1.msra.mxu0 0.0
      %1949 = vmatprep.subr.mxu0 0.0
      %1950 = vmatpush1.msra.mxu0 0.0
      %1951 = vmatprep.subr.mxu0 0.0
      %1952 = vmatpush1.msra.mxu0 0.0
      %1953 = vmatprep.subr.mxu0 0.0
      %1954 = vmatpush1.msra.mxu0 0.0
      %1955 = vmatprep.subr.mxu0 0.0
      %1956 = vmatpush1.msra.mxu0 0.0
      %1957 = vmatprep.subr.mxu0 0.0
      %1958 = vmatpush1.msra.mxu0 0.0
      %1959 = vmatprep.subr.mxu0 0.0
      %1960 = vmatpush1.msra.mxu0 0.0
      %1961 = vmatprep.subr.mxu0 0.0
      %1962 = vmatpush1.msra.mxu0 0.0
      %1963 = vmatprep.subr.mxu0 0.0
      %1964 = vmatpush1.msra.mxu0 0.0
      %1965 = vmatprep.subr.mxu0 0.0
      %1966 = vmatpush1.msra.mxu0 0.0
      %1967 = vmatprep.mubr.f32.mxu0 0.0
      %1968 = vmatmul.mubr.f32.gmra.mrb[0].mxu0 %v1895
      %v1969 = vpop.f32.mrb[0].mxu0
      %v1970 = vadd.f32 %v1891, %v1969
      %v1971 = vpop.f32.mrb[0].mxu0
      %1972 = vmatprep.mubr.f32.mxu0 0.0
      %1973 = vmatmul.mubr.f32.gmra.mrb[0].mxu0 %v1898
      %v1974 = vpop.f32.mrb[0].mxu0
      %v1975 = vadd.f32 %v1891, %v1974
      %v1976 = vpop.f32.mrb[0].mxu0
      %1977 = vmatprep.mubr.f32.mxu0 0.0
      %1978 = vmatmul.mubr.f32.gmra.mrb[0].mxu0 %v1901
      %v1979 = vpop.f32.mrb[0].mxu0
      %v1980 = vadd.f32 %v1891, %v1979
      %v1981 = vpop.f32.mrb[0].mxu0
      %1982 = vdwg.mxu0
      %v1983 = vadd.f32 %v1970, %v1701
      %v1984 = vadd.f32 %v1975, %v1702
      %v1985 = vadd.f32 %v1980, %v1703
      %1986 = vst [vmem:[%s413] sm:$0xff] %v1983
      %1987 = vst [vmem:[%s413 + $0x8] sm:$0xff] %v1984
      %1988 = vst [vmem:[%s413 + $0x10] sm:$0xff] %v1985
      %p1989 = scmp.lt.s32.totalorder %s23, 1
      %s1990 = scalar_select %p1989, %s23, 1
      %s1991 = smul.addr %s1990, 3
      %s1992 = smul.addr %s1991, 8
      %s1993 = scalar_lea.vmem %s12, %s1992
      // Predicated region
      $region69: #{vit_forward.5} parent=67 // pred_check
        %p1994 = pneg %p298
      $region70: #{vit_forward.5} parent=67 // pred_check_branch
        %1996 = sbr.rel (%p1994) target = $region72
      $region71: #{vit_forward.5} parent=67 // pred_region
        _
      $region72: #{vit_forward.5} parent=67 // pred_fallthru
        _
    $region68: #{vit_forward.5} parent=5 // pred_fallthru
      _
    %p1997 = scmp.le.s32.totalorder 2, %s18
    // Predicated region
    $region73: #{vit_forward.5} parent=5 // pred_check
      %p1998 = pneg %p1997
    $region74: #{vit_forward.5} parent=5 // pred_check_branch
      %2000 = sbr.rel (%p1998) target = $region76
    $region75: #{vit_forward.5} parent=5 // pred_region
      %s2001 = ssub.s32 %s18, 2
      // Predicated region
      $region77: #{vit_forward.5} parent=75 // pred_check
        %p2002 = pneg %p304
      $region78: #{vit_forward.5} parent=75 // pred_check_branch
        %2004 = sbr.rel (%p2002) target = $region80
      $region79: #{vit_forward.5} parent=75 // pred_region
        %p2005 = scmp.lt.s32.totalorder %s24, 1
        %s2006 = scalar_select %p2005, %s24, 1
        %s2007 = smul.addr %s2006, 3
        %s2008 = smul.addr %s2007, 8
        %s2009 = scalar_lea.vmem %s12, %s2008
      $region80: #{vit_forward.5} parent=75 // pred_fallthru
        _
    $region76: #{vit_forward.5} parent=5 // pred_fallthru
      _
  $region6: #{vit_forward.5} parent=0 // loop_footer
    %s22 = sadd.s32 1, %s18
  $region7: #{vit_forward.5} parent=0 // loop_footer_branch
    %17 = sbr.rel target = $region3
  $region8: #{vit_forward.5} parent=0 // loop_exit
    _

</llo_original>
